<compile_context>
chip_gen: v7x
topology: tpu7x:2x2x1
jax: 0.10.0
libtpu: 0.0.40
codegen_flags: <defaults>
</compile_context>

<pallas_src>
import functools

import jax
import jax.numpy as jnp
from jax import lax
from jax.experimental import pallas as pl
from jax.experimental.pallas import tpu as pltpu


# ----------------------------- Pallas kernels -----------------------------

def _upconv_conv1_kernel(x_ref, skip_ref, wup_ref, bup_ref, eo_ref,
                         w1s_ref, w1u_ref, b1_ref,
                         y_ref, ssum_ref, ssq_ref, ps_ref, pu_ref,
                         *, B, H, Hs, up_w, r0, c0, zero_full_up):
    """Fused: ConvTranspose2d(k=2,s=2) + F.pad + concat + Conv3x3 + bias + stats."""
    slab = Hs + 4                      # per-image rows: [spare, halo, Hs data, halo, spare]
    m_full = B * slab - 2              # rows fed to the 3 row-tap matmuls
    bf = ps_ref.dtype
    skip_w = ps_ref.shape[1]
    pu_w = pu_ref.shape[1]
    out_w = y_ref.shape[1]

    # Deconv for every image of this step in one MXU dot.  Columns [0:up_w]
    # hold the even output rows, [up_w:2*up_w] the odd ones.  f32 accumulate +
    # bias, then a single cast into the bf16 operand dtype.
    up = (jnp.dot(x_ref[...], wup_ref[...], preferred_element_type=jnp.float32)
          + bup_ref[...]).astype(bf)                               # (B*H, 2*up_w)

    for b in range(B):
        base = b * slab
        # Skip branch: zero only the halo rows, overwrite the interior.
        ps_ref[base:base + 2, :] = jnp.zeros((2, skip_w), bf)
        ps_ref[base + 2 + Hs:base + slab, :] = jnp.zeros((2, skip_w), bf)
        ps_ref[base + 2:base + 2 + Hs, :] = skip_ref[b * Hs:(b + 1) * Hs, :]

        # Up branch: zero halo + F.pad rows (full slab memset only if dX > 0
        # leaves columns the deconv writeback does not cover).
        if zero_full_up:
            pu_ref[base:base + slab, :] = jnp.zeros((slab, pu_w), bf)
        else:
            pu_ref[base:base + 1 + r0, :] = jnp.zeros((1 + r0, pu_w), bf)
            pu_ref[base + 1 + r0 + 2 * H:base + slab, :] = (
                jnp.zeros((slab - 1 - r0 - 2 * H, pu_w), bf))

        # Interleave even/odd deconv rows with two tiny 0/1 permutation
        # matmuls (exact; MXU is idle) and store the whole 2H-row slab once.
        ue = up[b * H:(b + 1) * H, :up_w]
        uo = up[b * H:(b + 1) * H, up_w:]
        inter = (jnp.dot(eo_ref[0], ue, preferred_element_type=jnp.float32) +
                 jnp.dot(eo_ref[1], uo, preferred_element_type=jnp.float32))
        pu_ref[base + 1 + r0:base + 1 + r0 + 2 * H, c0:c0 + up_w] = inter.astype(bf)

    # 3x3 conv over cat([skip, up]) as 6 MXU dots: kw taps are pre-summed into
    # the block-sparse weights, both branches share the same row window per kh.
    acc = jnp.dot(ps_ref[0:m_full, :], w1s_ref[0],
                  preferred_element_type=jnp.float32)
    acc += jnp.dot(pu_ref[0:m_full, :], w1u_ref[0],
                   preferred_element_type=jnp.float32)
    for kh in (1, 2):
        acc += jnp.dot(ps_ref[kh:kh + m_full, :], w1s_ref[kh],
                       preferred_element_type=jnp.float32)
        acc += jnp.dot(pu_ref[kh:kh + m_full, :], w1u_ref[kh],
                       preferred_element_type=jnp.float32)
    acc += b1_ref[...]

    # Raw conv1 output (BN1+ReLU is fused into kernel 2) + BN partial sums
    # (computed from the f32 accumulator; only the valid rows per image).
    s = jnp.zeros((1, out_w), jnp.float32)
    q = jnp.zeros((1, out_w), jnp.float32)
    for b in range(B):
        val = acc[b * slab + 1:b * slab + 1 + Hs, :]
        y_ref[b * Hs:(b + 1) * Hs, :] = val.astype(y_ref.dtype)
        s += jnp.sum(val, axis=0, keepdims=True)
        q += jnp.sum(val * val, axis=0, keepdims=True)
    ssum_ref[...] = jnp.broadcast_to(s[:, None, :], ssum_ref.shape)
    ssq_ref[...] = jnp.broadcast_to(q[:, None, :], ssq_ref.shape)


def _conv2_kernel(y1_ref, sc1_ref, sh1_ref, w2_ref, b2_ref,
                  y_ref, ssum_ref, ssq_ref, pa_ref, *, B, Hs):
    """Fused: (BN1 + ReLU applied on load) + Conv3x3 + bias + stats."""
    slab = Hs + 4
    m_full = B * slab - 2
    bf = pa_ref.dtype
    out_w = pa_ref.shape[1]

    # BN1 + ReLU fused onto conv1's output load, single cast into bf16 scratch.
    a1 = jnp.maximum(y1_ref[...] * sc1_ref[...] + sh1_ref[...], 0.0).astype(bf)
    for b in range(B):
        base = b * slab
        pa_ref[base:base + 2, :] = jnp.zeros((2, out_w), bf)
        pa_ref[base + 2 + Hs:base + slab, :] = jnp.zeros((2, out_w), bf)
        pa_ref[base + 2:base + 2 + Hs, :] = a1[b * Hs:(b + 1) * Hs, :]

    acc = jnp.dot(pa_ref[0:m_full, :], w2_ref[0],
                  preferred_element_type=jnp.float32)
    for kh in (1, 2):
        acc += jnp.dot(pa_ref[kh:kh + m_full, :], w2_ref[kh],
                       preferred_element_type=jnp.float32)
    acc += b2_ref[...]

    s = jnp.zeros((1, out_w), jnp.float32)
    q = jnp.zeros((1, out_w), jnp.float32)
    for b in range(B):
        val = acc[b * slab + 1:b * slab + 1 + Hs, :]
        y_ref[b * Hs:(b + 1) * Hs, :] = val.astype(y_ref.dtype)
        s += jnp.sum(val, axis=0, keepdims=True)
        q += jnp.sum(val * val, axis=0, keepdims=True)
    ssum_ref[...] = jnp.broadcast_to(s[:, None, :], ssum_ref.shape)
    ssq_ref[...] = jnp.broadcast_to(q[:, None, :], ssq_ref.shape)


def _bn_relu_kernel(x_ref, sc_ref, sh_ref, o_ref):
    # Final BN2 + ReLU over a lane-dense (rows, Ws*Cout) tile.
    o_ref[...] = jnp.maximum(x_ref[...] * sc_ref[...] + sh_ref[...], 0.0)


# ----------------------------- wrapper helpers -----------------------------

def _shifted_block_diag(k_tap, reps, shift):
    """(reps*k, reps*m) block-sparse matrix mapping input pixel-block (q+shift)
    to output pixel-block q.  Out-of-range blocks implement the conv zero
    padding along the width axis."""
    k, m = k_tap.shape
    sel = jnp.eye(reps, k=-shift, dtype=k_tap.dtype)   # sel[r, q] = 1 iff r == q + shift
    return (sel[:, None, :, None] * k_tap[None, :, None, :]).reshape(reps * k, reps * m)


def _conv_tap_weights(w_sub, reps, dtype):
    """Per-kh block-sparse weights with the three kw taps pre-summed (the LHS
    row window is identical for kw=0,1,2, and the shifted block-diagonals are
    disjoint, so this is exactly equivalent with 3x fewer MXU dots)."""
    return jnp.stack([
        sum(_shifted_block_diag(w_sub[:, :, kh, kw].T, reps, kw - 1)
            for kw in range(3))
        for kh in range(3)]).astype(dtype)


def _bn_scale_shift(ssum, ssq, count, gamma, beta, Cout, eps):
    # Reduce per-step partial sums -> per-channel scale/shift (training-mode
    # BN, biased variance), tiled along the row-flattened width.
    # TODO(synk): E[x^2]-E[x]^2 can cancel catastrophically for huge N*H*W with
    # mean >> std; switch to a shifted / Welford-style reduction at scale.
    s = ssum.reshape(-1, Cout).sum(axis=0)
    q = ssq.reshape(-1, Cout).sum(axis=0)
    mean = s / count
    var = q / count - mean * mean
    scale = gamma / jnp.sqrt(var + eps)
    shift = beta - mean * scale
    reps = ssum.shape[-1] // Cout
    return jnp.tile(scale, reps)[None, :], jnp.tile(shift, reps)[None, :]


def _pick_images_per_step(n_images, hs):
    # Batch images into the matmul M dimension (grid is a serial loop on one
    # TensorCore) while keeping the padded scratch <= ~256 rows; keep >= 2
    # 'parallel' grid steps when the per-step M is already tall (v7x megacore).
    best = 1
    for b in range(1, n_images + 1):
        if n_images % b:
            continue
        if b * (hs + 4) > 256:
            break
        if n_images // b < 2 and b * hs >= 128:
            break
        best = b
    return best


# ----------------------------- forward -----------------------------

def upblock_forward(x_nchw, skip_nchw, p, eps=1e-5):
    bf16 = jnp.bfloat16
    x = jnp.transpose(x_nchw, (0, 2, 3, 1)).astype(jnp.float32)       # (N,H,W,Cin)
    skip = jnp.transpose(skip_nchw, (0, 2, 3, 1)).astype(jnp.float32)  # (N,Hs,Ws,Cs)
    N, H, W, Cin = x.shape
    _, Hs, Ws, Cs = skip.shape
    Cout = p["up_b"].shape[0]
    dY, dX = Hs - 2 * H, Ws - 2 * W
    assert dY >= 0 and dX >= 0
    out_w = Ws * Cout
    up_w = 2 * W * Cout

    # Row-flattened NHWC activations in bf16 (MXU operand dtype, half the DMA).
    x_rows = x.reshape(N * H, W * Cin).astype(bf16)
    skip_rows = skip.reshape(N * Hs, Ws * Cs).astype(bf16)

    B = _pick_images_per_step(N, Hs)      # images per grid step
    G = N // B
    slab = Hs + 4

    # --- tiny host-built weights (block-sparse, bf16 for the MXU) -----------
    wup = p["up_w"].astype(jnp.float32)                    # (Cin, Cout, 2, 2)
    wup_cat = jnp.concatenate(
        [_shifted_block_diag(
            jnp.concatenate([wup[:, :, a, 0], wup[:, :, a, 1]], axis=1), W, 0)
         for a in (0, 1)], axis=1).astype(bf16)            # (W*Cin, 2*up_w)
    bup_row = jnp.tile(p["up_b"], 4 * W)[None, :].astype(jnp.float32)

    # Even/odd row-interleave permutation matrices (exact 0/1 values in bf16).
    eo = jnp.stack([jnp.kron(jnp.eye(H), jnp.array([[1.0], [0.0]])),
                    jnp.kron(jnp.eye(H), jnp.array([[0.0], [1.0]]))]).astype(bf16)

    w1s_bd = _conv_tap_weights(p["w1"][:, :Cs].astype(jnp.float32), Ws, bf16)
    w1u_bd = _conv_tap_weights(p["w1"][:, Cs:].astype(jnp.float32), Ws, bf16)
    w2_bd = _conv_tap_weights(p["w2"].astype(jnp.float32), Ws, bf16)
    b1_row = jnp.tile(p["b1"], Ws)[None, :].astype(jnp.float32)
    b2_row = jnp.tile(p["b2"], Ws)[None, :].astype(jnp.float32)

    parallel = pltpu.CompilerParams(dimension_semantics=("parallel",))

    # ---- stage 1: deconv + pad + concat + conv1 + stats (one fused kernel) ----
    k1 = functools.partial(_upconv_conv1_kernel, B=B, H=H, Hs=Hs, up_w=up_w,
                           r0=1 + dY // 2, c0=(dX // 2) * Cout,
                           zero_full_up=dX > 0)
    y1, s1, q1 = pl.pallas_call(
        k1,
        out_shape=(jax.ShapeDtypeStruct((N * Hs, out_w), bf16),
                   jax.ShapeDtypeStruct((G, 8, out_w), jnp.float32),
                   jax.ShapeDtypeStruct((G, 8, out_w), jnp.float32)),
        grid=(G,),
        in_specs=[pl.BlockSpec((B * H, W * Cin), lambda n: (n, 0)),
                  pl.BlockSpec((B * Hs, Ws * Cs), lambda n: (n, 0)),
                  pl.BlockSpec((W * Cin, 2 * up_w), lambda n: (0, 0)),
                  pl.BlockSpec((1, 2 * up_w), lambda n: (0, 0)),
                  pl.BlockSpec((2, 2 * H, H), lambda n: (0, 0, 0)),
                  pl.BlockSpec((3, Ws * Cs, out_w), lambda n: (0, 0, 0)),
                  pl.BlockSpec((3, Ws * Cout, out_w), lambda n: (0, 0, 0)),
                  pl.BlockSpec((1, out_w), lambda n: (0, 0))],
        out_specs=(pl.BlockSpec((B * Hs, out_w), lambda n: (n, 0)),
                   pl.BlockSpec((1, 8, out_w), lambda n: (n, 0, 0)),
                   pl.BlockSpec((1, 8, out_w), lambda n: (n, 0, 0))),
        scratch_shapes=[pltpu.VMEM((B * slab, Ws * Cs), bf16),
                        pltpu.VMEM((B * slab, Ws * Cout), bf16)],
        compiler_params=parallel,
    )(x_rows, skip_rows, wup_cat, bup_row, eo, w1s_bd, w1u_bd, b1_row)

    count = N * Hs * Ws
    sc1, sh1 = _bn_scale_shift(s1[:, 0, :], q1[:, 0, :], count,
                               p["g1"], p["be1"], Cout, eps)

    # ---- stage 2: (BN1+ReLU fused on load) + conv2 + stats ----
    k2 = functools.partial(_conv2_kernel, B=B, Hs=Hs)
    y2, s2, q2 = pl.pallas_call(
        k2,
        out_shape=(jax.ShapeDtypeStruct((N * Hs, out_w), bf16),
                   jax.ShapeDtypeStruct((G, 8, out_w), jnp.float32),
                   jax.ShapeDtypeStruct((G, 8, out_w), jnp.float32)),
        grid=(G,),
        in_specs=[pl.BlockSpec((B * Hs, out_w), lambda n: (n, 0)),
                  pl.BlockSpec((1, out_w), lambda n: (0, 0)),
                  pl.BlockSpec((1, out_w), lambda n: (0, 0)),
                  pl.BlockSpec((3, out_w, out_w), lambda n: (0, 0, 0)),
                  pl.BlockSpec((1, out_w), lambda n: (0, 0))],
        out_specs=(pl.BlockSpec((B * Hs, out_w), lambda n: (n, 0)),
                   pl.BlockSpec((1, 8, out_w), lambda n: (n, 0, 0)),
                   pl.BlockSpec((1, 8, out_w), lambda n: (n, 0, 0))),
        scratch_shapes=[pltpu.VMEM((B * slab, out_w), bf16)],
        compiler_params=parallel,
    )(y1, sc1, sh1, w2_bd, b2_row)

    sc2, sh2 = _bn_scale_shift(s2[:, 0, :], q2[:, 0, :], count,
                               p["g2"], p["be2"], Cout, eps)

    # ---- stage 3: final BN2 + ReLU, tiled lane-dense elementwise pass ----
    out_rows = pl.pallas_call(
        _bn_relu_kernel,
        out_shape=jax.ShapeDtypeStruct((N * Hs, out_w), jnp.float32),
        grid=(N,),
        in_specs=[pl.BlockSpec((Hs, out_w), lambda i: (i, 0)),
                  pl.BlockSpec((1, out_w), lambda i: (0, 0)),
                  pl.BlockSpec((1, out_w), lambda i: (0, 0))],
        out_specs=pl.BlockSpec((Hs, out_w), lambda i: (i, 0)),
        compiler_params=parallel,
    )(y2, sc2, sh2)

    out = out_rows.reshape(N, Hs, Ws, Cout)
    return jnp.transpose(out, (0, 3, 1, 2))                # back to NCHW
    # TODO(synk): BatchNorm running_mean/running_var buffer updates are not
    # reproduced (they do not affect the forward output in training mode).


# ----------------------------- pure-JAX reference -----------------------------

def _bn_relu_ref(x, gamma, beta, eps=1e-5):
    mean = x.mean(axis=(0, 1, 2))
    var = x.var(axis=(0, 1, 2))
    return jnp.maximum((x - mean) / jnp.sqrt(var + eps) * gamma + beta, 0.0)


def upblock_reference(x_nchw, skip_nchw, p, matmul_dtype=jnp.float32):
    x = jnp.transpose(x_nchw, (0, 2, 3, 1))
    skip = jnp.transpose(skip_nchw, (0, 2, 3, 1))
    N, H, W, _ = x.shape
    Cout = p["up_b"].shape[0]
    md = matmul_dtype
    up = jnp.einsum("nijc,codk->nidjko", x.astype(md), p["up_w"].astype(md),
                    preferred_element_type=jnp.float32
                    ).reshape(N, 2 * H, 2 * W, Cout) + p["up_b"]
    Hs, Ws = skip.shape[1], skip.shape[2]
    dY, dX = Hs - up.shape[1], Ws - up.shape[2]
    if dY != 0 or dX != 0:
        up = jnp.pad(up, ((0, 0), (dY // 2, dY - dY // 2),
                          (dX // 2, dX - dX // 2), (0, 0)))
    cat = jnp.concatenate([skip, up], axis=-1)
    dn = ("NHWC", "HWIO", "NHWC")
    y1 = lax.conv_general_dilated(cat.astype(md),
                                  jnp.transpose(p["w1"], (2, 3, 1, 0)).astype(md),
                                  (1, 1), "SAME", dimension_numbers=dn,
                                  preferred_element_type=jnp.float32) + p["b1"]
    a1 = _bn_relu_ref(y1, p["g1"], p["be1"])
    y2 = lax.conv_general_dilated(a1.astype(md),
                                  jnp.transpose(p["w2"], (2, 3, 1, 0)).astype(md),
                                  (1, 1), "SAME", dimension_numbers=dn,
                                  preferred_element_type=jnp.float32) + p["b2"]
    y2 = _bn_relu_ref(y2, p["g2"], p["be2"])
    return jnp.transpose(y2, (0, 3, 1, 2))


# ----------------------------- main -----------------------------

if __name__ == "__main__":
    key = jax.random.PRNGKey(0)
    ks = jax.random.split(key, 12)
    N = 2
    in_ch, skip_ch, out_ch = 4, 4, 8
    H = W = 8

    x = jax.random.normal(ks[0], (N, in_ch, H, W), jnp.float32)
    skip = jax.random.normal(ks[1], (N, skip_ch, 2 * H, 2 * W), jnp.float32)

    # Deterministic parameter init (shapes follow the PyTorch module __init__).
    p = {
        "up_w": 0.2 * jax.random.normal(ks[2], (in_ch, out_ch, 2, 2), jnp.float32),
        "up_b": 0.05 * jax.random.normal(ks[3], (out_ch,), jnp.float32),
        "w1": 0.1 * jax.random.normal(ks[4], (out_ch, skip_ch + out_ch, 3, 3), jnp.float32),
        "b1": 0.05 * jax.random.normal(ks[5], (out_ch,), jnp.float32),
        "g1": 1.0 + 0.1 * jax.random.normal(ks[6], (out_ch,), jnp.float32),
        "be1": 0.05 * jax.random.normal(ks[7], (out_ch,), jnp.float32),
        "w2": 0.1 * jax.random.normal(ks[8], (out_ch, out_ch, 3, 3), jnp.float32),
        "b2": 0.05 * jax.random.normal(ks[9], (out_ch,), jnp.float32),
        "g2": 1.0 + 0.1 * jax.random.normal(ks[10], (out_ch,), jnp.float32),
        "be2": 0.05 * jax.random.normal(ks[11], (out_ch,), jnp.float32),
    }

    out = jax.jit(upblock_forward)(x, skip, p)
    out = jax.block_until_ready(out)
    assert out.shape == (N, out_ch, 2 * H, 2 * W), out.shape

    # Primary check: reference using the same bf16-operand / f32-accumulate MXU
    # convention.  Tolerance covers the extra bf16 rounding of the inter-stage
    # activations (y1/y2 travel HBM->HBM in bf16 in the kernel path).
    ref_bf16 = upblock_reference(x, skip, p, matmul_dtype=jnp.bfloat16)
    assert jnp.allclose(out, ref_bf16, atol=3e-2, rtol=3e-2), \
        float(jnp.max(jnp.abs(out - ref_bf16)))

    # Sanity check vs. the full-f32 reference (bounded by bf16 operand rounding).
    ref_f32 = upblock_reference(x, skip, p, matmul_dtype=jnp.float32)
    assert jnp.allclose(out, ref_f32, atol=1e-1, rtol=1e-1), \
        float(jnp.max(jnp.abs(out - ref_f32)))

    print("KERNEL_OK")
</pallas_src>

<mosaic_0001>
module attributes {stable_mosaic.version = 11 : i64} {
  func.func @_upconv_conv1_kernel(%arg0: i32, %arg1: memref<16x32xbf16, #tpu.memory_space<vmem>>, %arg2: memref<32x64xbf16, #tpu.memory_space<vmem>>, %arg3: memref<32x256xbf16, #tpu.memory_space<vmem>>, %arg4: memref<1x256xf32, #tpu.memory_space<vmem>>, %arg5: memref<2x16x8xbf16, #tpu.memory_space<vmem>>, %arg6: memref<3x64x128xbf16, #tpu.memory_space<vmem>>, %arg7: memref<3x128x128xbf16, #tpu.memory_space<vmem>>, %arg8: memref<1x128xf32, #tpu.memory_space<vmem>>, %arg9: memref<32x128xbf16, #tpu.memory_space<vmem>>, %arg10: memref<1x8x128xf32, #tpu.memory_space<vmem>>, %arg11: memref<1x8x128xf32, #tpu.memory_space<vmem>>, %arg12: memref<40x64xbf16, #tpu.memory_space<vmem>>, %arg13: memref<40x128xbf16, #tpu.memory_space<vmem>>) attributes {dimension_semantics = [#tpu.dimension_semantics<parallel>], iteration_bounds = array<i64: 1>, scalar_prefetch = 0 : i64, scratch_operands = 2 : i64, tpu.core_type = #tpu.core_type<tc>, window_params = [{transform_indices = @transform_0, window_bounds = array<i64: 16, 32>}, {transform_indices = @transform_1, window_bounds = array<i64: 32, 64>}, {pipeline_mode = #tpu.pipeline_mode<synchronous>, transform_indices = @transform_2, window_bounds = array<i64: 32, 256>}, {pipeline_mode = #tpu.pipeline_mode<synchronous>, transform_indices = @transform_3, window_bounds = array<i64: 1, 256>}, {pipeline_mode = #tpu.pipeline_mode<synchronous>, transform_indices = @transform_4, window_bounds = array<i64: 2, 16, 8>}, {pipeline_mode = #tpu.pipeline_mode<synchronous>, transform_indices = @transform_5, window_bounds = array<i64: 3, 64, 128>}, {pipeline_mode = #tpu.pipeline_mode<synchronous>, transform_indices = @transform_6, window_bounds = array<i64: 3, 128, 128>}, {pipeline_mode = #tpu.pipeline_mode<synchronous>, transform_indices = @transform_7, window_bounds = array<i64: 1, 128>}, {transform_indices = @transform_8, window_bounds = array<i64: 32, 128>}, {transform_indices = @transform_9, window_bounds = array<i64: 1, 8, 128>}, {transform_indices = @transform_10, window_bounds = array<i64: 1, 8, 128>}]} {
    %c0 = arith.constant 0 : index
    %c0_0 = arith.constant 0 : index
    %0 = vector.load %arg1[%c0, %c0_0] : memref<16x32xbf16, #tpu.memory_space<vmem>>, vector<16x32xbf16>
    %c0_1 = arith.constant 0 : index
    %c0_2 = arith.constant 0 : index
    %1 = vector.load %arg3[%c0_1, %c0_2] : memref<32x256xbf16, #tpu.memory_space<vmem>>, vector<32x256xbf16>
    %cst = arith.constant dense<0.000000e+00> : vector<16x256xf32>
    %2 = tpu.matmul %0, %1, %cst {dimension_numbers = #tpu.dot_dimension_numbers<[1], [0], [0], [1], [0, 0, 1, 1], [], []>} : vector<16x32xbf16>, vector<32x256xbf16>, vector<16x256xf32> -> vector<16x256xf32>
    %c0_3 = arith.constant 0 : index
    %c0_4 = arith.constant 0 : index
    %3 = vector.load %arg4[%c0_3, %c0_4] : memref<1x256xf32, #tpu.memory_space<vmem>>, vector<1x256xf32>
    %4 = vector.broadcast %3 : vector<1x256xf32> to vector<16x256xf32>
    %5 = arith.addf %2, %4 : vector<16x256xf32>
    %6 = arith.truncf %5 : vector<16x256xf32> to vector<16x256xbf16>
    %cst_5 = arith.constant 0.000000e+00 : bf16
    %7 = vector.broadcast %cst_5 : bf16 to vector<2x64xbf16>
    %c0_6 = arith.constant 0 : index
    %c0_7 = arith.constant 0 : index
    %8 = vector.load %arg12[%c0_6, %c0_7] : memref<40x64xbf16, #tpu.memory_space<vmem>>, vector<2x64xbf16>
    tpu.vector_store %arg12[%c0_6, %c0_7], %7 {strides = array<i32>} : memref<40x64xbf16, #tpu.memory_space<vmem>>, vector<2x64xbf16>,
    %cst_8 = arith.constant 0.000000e+00 : bf16
    %9 = vector.broadcast %cst_8 : bf16 to vector<2x64xbf16>
    %c18 = arith.constant 18 : index
    %c0_9 = arith.constant 0 : index
    %10 = vector.load %arg12[%c18, %c0_9] : memref<40x64xbf16, #tpu.memory_space<vmem>>, vector<2x64xbf16>
    tpu.vector_store %arg12[%c18, %c0_9], %9 {strides = array<i32>} : memref<40x64xbf16, #tpu.memory_space<vmem>>, vector<2x64xbf16>,
    %c0_10 = arith.constant 0 : index
    %c0_11 = arith.constant 0 : index
    %11 = vector.load %arg2[%c0_10, %c0_11] : memref<32x64xbf16, #tpu.memory_space<vmem>>, vector<16x64xbf16>
    %c2 = arith.constant 2 : index
    %c0_12 = arith.constant 0 : index
    %12 = vector.load %arg12[%c2, %c0_12] : memref<40x64xbf16, #tpu.memory_space<vmem>>, vector<16x64xbf16>
    tpu.vector_store %arg12[%c2, %c0_12], %11 {strides = array<i32>} : memref<40x64xbf16, #tpu.memory_space<vmem>>, vector<16x64xbf16>,
    %cst_13 = arith.constant 0.000000e+00 : bf16
    %13 = vector.broadcast %cst_13 : bf16 to vector<2x128xbf16>
    %c0_14 = arith.constant 0 : index
    %c0_15 = arith.constant 0 : index
    %14 = vector.load %arg13[%c0_14, %c0_15] : memref<40x128xbf16, #tpu.memory_space<vmem>>, vector<2x128xbf16>
    tpu.vector_store %arg13[%c0_14, %c0_15], %13 {strides = array<i32>} : memref<40x128xbf16, #tpu.memory_space<vmem>>, vector<2x128xbf16>,
    %cst_16 = arith.constant 0.000000e+00 : bf16
    %15 = vector.broadcast %cst_16 : bf16 to vector<2x128xbf16>
    %c18_17 = arith.constant 18 : index
    %c0_18 = arith.constant 0 : index
    %16 = vector.load %arg13[%c18_17, %c0_18] : memref<40x128xbf16, #tpu.memory_space<vmem>>, vector<2x128xbf16>
    tpu.vector_store %arg13[%c18_17, %c0_18], %15 {strides = array<i32>} : memref<40x128xbf16, #tpu.memory_space<vmem>>, vector<2x128xbf16>,
    %17 = vector.extract_strided_slice %6 {offsets = [0, 0], sizes = [8, 128], strides = [1, 1]} : vector<16x256xbf16> to vector<8x128xbf16>
    %18 = vector.extract_strided_slice %6 {offsets = [0, 128], sizes = [8, 128], strides = [1, 1]} : vector<16x256xbf16> to vector<8x128xbf16>
    %c0_19 = arith.constant 0 : index
    %c0_20 = arith.constant 0 : index
    %c0_21 = arith.constant 0 : index
    %19 = vector.load %arg5[%c0_19, %c0_20, %c0_21] : memref<2x16x8xbf16, #tpu.memory_space<vmem>>, vector<1x16x8xbf16>
    %20 = vector.shape_cast %19 : vector<1x16x8xbf16> to vector<16x8xbf16>
    %cst_22 = arith.constant dense<0.000000e+00> : vector<16x128xf32>
    %21 = tpu.matmul %20, %17, %cst_22 {dimension_numbers = #tpu.dot_dimension_numbers<[1], [0], [0], [1], [0, 0, 1, 1], [], []>} : vector<16x8xbf16>, vector<8x128xbf16>, vector<16x128xf32> -> vector<16x128xf32>
    %c1 = arith.constant 1 : index
    %c0_23 = arith.constant 0 : index
    %c0_24 = arith.constant 0 : index
    %22 = vector.load %arg5[%c1, %c0_23, %c0_24] : memref<2x16x8xbf16, #tpu.memory_space<vmem>>, vector<1x16x8xbf16>
    %23 = vector.shape_cast %22 : vector<1x16x8xbf16> to vector<16x8xbf16>
    %cst_25 = arith.constant dense<0.000000e+00> : vector<16x128xf32>
    %24 = tpu.matmul %23, %18, %cst_25 {dimension_numbers = #tpu.dot_dimension_numbers<[1], [0], [0], [1], [0, 0, 1, 1], [], []>} : vector<16x8xbf16>, vector<8x128xbf16>, vector<16x128xf32> -> vector<16x128xf32>
    %25 = arith.addf %21, %24 : vector<16x128xf32>
    %26 = arith.truncf %25 : vector<16x128xf32> to vector<16x128xbf16>
    %c2_26 = arith.constant 2 : index
    %c0_27 = arith.constant 0 : index
    %27 = vector.load %arg13[%c2_26, %c0_27] : memref<40x128xbf16, #tpu.memory_space<vmem>>, vector<16x128xbf16>
    tpu.vector_store %arg13[%c2_26, %c0_27], %26 {strides = array<i32>} : memref<40x128xbf16, #tpu.memory_space<vmem>>, vector<16x128xbf16>,
    %cst_28 = arith.constant 0.000000e+00 : bf16
    %28 = vector.broadcast %cst_28 : bf16 to vector<2x64xbf16>
    %c20 = arith.constant 20 : index
    %c0_29 = arith.constant 0 : index
    %29 = vector.load %arg12[%c20, %c0_29] : memref<40x64xbf16, #tpu.memory_space<vmem>>, vector<2x64xbf16>
    tpu.vector_store %arg12[%c20, %c0_29], %28 {strides = array<i32>} : memref<40x64xbf16, #tpu.memory_space<vmem>>, vector<2x64xbf16>,
    %cst_30 = arith.constant 0.000000e+00 : bf16
    %30 = vector.broadcast %cst_30 : bf16 to vector<2x64xbf16>
    %c38 = arith.constant 38 : index
    %c0_31 = arith.constant 0 : index
    %31 = vector.load %arg12[%c38, %c0_31] : memref<40x64xbf16, #tpu.memory_space<vmem>>, vector<2x64xbf16>
    tpu.vector_store %arg12[%c38, %c0_31], %30 {strides = array<i32>} : memref<40x64xbf16, #tpu.memory_space<vmem>>, vector<2x64xbf16>,
    %c16 = arith.constant 16 : index
    %c0_32 = arith.constant 0 : index
    %32 = vector.load %arg2[%c16, %c0_32] : memref<32x64xbf16, #tpu.memory_space<vmem>>, vector<16x64xbf16>
    %c22 = arith.constant 22 : index
    %c0_33 = arith.constant 0 : index
    %33 = vector.load %arg12[%c22, %c0_33] : memref<40x64xbf16, #tpu.memory_space<vmem>>, vector<16x64xbf16>
    tpu.vector_store %arg12[%c22, %c0_33], %32 {strides = array<i32>} : memref<40x64xbf16, #tpu.memory_space<vmem>>, vector<16x64xbf16>,
    %cst_34 = arith.constant 0.000000e+00 : bf16
    %34 = vector.broadcast %cst_34 : bf16 to vector<2x128xbf16>
    %c20_35 = arith.constant 20 : index
    %c0_36 = arith.constant 0 : index
    %35 = vector.load %arg13[%c20_35, %c0_36] : memref<40x128xbf16, #tpu.memory_space<vmem>>, vector<2x128xbf16>
    tpu.vector_store %arg13[%c20_35, %c0_36], %34 {strides = array<i32>} : memref<40x128xbf16, #tpu.memory_space<vmem>>, vector<2x128xbf16>,
    %cst_37 = arith.constant 0.000000e+00 : bf16
    %36 = vector.broadcast %cst_37 : bf16 to vector<2x128xbf16>
    %c38_38 = arith.constant 38 : index
    %c0_39 = arith.constant 0 : index
    %37 = vector.load %arg13[%c38_38, %c0_39] : memref<40x128xbf16, #tpu.memory_space<vmem>>, vector<2x128xbf16>
    tpu.vector_store %arg13[%c38_38, %c0_39], %36 {strides = array<i32>} : memref<40x128xbf16, #tpu.memory_space<vmem>>, vector<2x128xbf16>,
    %38 = vector.extract_strided_slice %6 {offsets = [8, 0], sizes = [8, 128], strides = [1, 1]} : vector<16x256xbf16> to vector<8x128xbf16>
    %39 = vector.extract_strided_slice %6 {offsets = [8, 128], sizes = [8, 128], strides = [1, 1]} : vector<16x256xbf16> to vector<8x128xbf16>
    %c0_40 = arith.constant 0 : index
    %c0_41 = arith.constant 0 : index
    %c0_42 = arith.constant 0 : index
    %40 = vector.load %arg5[%c0_40, %c0_41, %c0_42] : memref<2x16x8xbf16, #tpu.memory_space<vmem>>, vector<1x16x8xbf16>
    %41 = vector.shape_cast %40 : vector<1x16x8xbf16> to vector<16x8xbf16>
    %cst_43 = arith.constant dense<0.000000e+00> : vector<16x128xf32>
    %42 = tpu.matmul %41, %38, %cst_43 {dimension_numbers = #tpu.dot_dimension_numbers<[1], [0], [0], [1], [0, 0, 1, 1], [], []>} : vector<16x8xbf16>, vector<8x128xbf16>, vector<16x128xf32> -> vector<16x128xf32>
    %c1_44 = arith.constant 1 : index
    %c0_45 = arith.constant 0 : index
    %c0_46 = arith.constant 0 : index
    %43 = vector.load %arg5[%c1_44, %c0_45, %c0_46] : memref<2x16x8xbf16, #tpu.memory_space<vmem>>, vector<1x16x8xbf16>
    %44 = vector.shape_cast %43 : vector<1x16x8xbf16> to vector<16x8xbf16>
    %cst_47 = arith.constant dense<0.000000e+00> : vector<16x128xf32>
    %45 = tpu.matmul %44, %39, %cst_47 {dimension_numbers = #tpu.dot_dimension_numbers<[1], [0], [0], [1], [0, 0, 1, 1], [], []>} : vector<16x8xbf16>, vector<8x128xbf16>, vector<16x128xf32> -> vector<16x128xf32>
    %46 = arith.addf %42, %45 : vector<16x128xf32>
    %47 = arith.truncf %46 : vector<16x128xf32> to vector<16x128xbf16>
    %c22_48 = arith.constant 22 : index
    %c0_49 = arith.constant 0 : index
    %48 = vector.load %arg13[%c22_48, %c0_49] : memref<40x128xbf16, #tpu.memory_space<vmem>>, vector<16x128xbf16>
    tpu.vector_store %arg13[%c22_48, %c0_49], %47 {strides = array<i32>} : memref<40x128xbf16, #tpu.memory_space<vmem>>, vector<16x128xbf16>,
    %c0_50 = arith.constant 0 : index
    %c0_51 = arith.constant 0 : index
    %49 = vector.load %arg12[%c0_50, %c0_51] : memref<40x64xbf16, #tpu.memory_space<vmem>>, vector<38x64xbf16>
    %c0_52 = arith.constant 0 : index
    %c0_53 = arith.constant 0 : index
    %c0_54 = arith.constant 0 : index
    %50 = vector.load %arg6[%c0_52, %c0_53, %c0_54] : memref<3x64x128xbf16, #tpu.memory_space<vmem>>, vector<1x64x128xbf16>
    %51 = vector.shape_cast %50 : vector<1x64x128xbf16> to vector<64x128xbf16>
    %cst_55 = arith.constant dense<0.000000e+00> : vector<38x128xf32>
    %52 = tpu.matmul %49, %51, %cst_55 {dimension_numbers = #tpu.dot_dimension_numbers<[1], [0], [0], [1], [0, 0, 1, 1], [], []>} : vector<38x64xbf16>, vector<64x128xbf16>, vector<38x128xf32> -> vector<38x128xf32>
    %c0_56 = arith.constant 0 : index
    %c0_57 = arith.constant 0 : index
    %53 = vector.load %arg13[%c0_56, %c0_57] : memref<40x128xbf16, #tpu.memory_space<vmem>>, vector<38x128xbf16>
    %c0_58 = arith.constant 0 : index
    %c0_59 = arith.constant 0 : index
    %c0_60 = arith.constant 0 : index
    %54 = vector.load %arg7[%c0_58, %c0_59, %c0_60] : memref<3x128x128xbf16, #tpu.memory_space<vmem>>, vector<1x128x128xbf16>
    %55 = vector.shape_cast %54 : vector<1x128x128xbf16> to vector<128x128xbf16>
    %cst_61 = arith.constant dense<0.000000e+00> : vector<38x128xf32>
    %56 = tpu.matmul %53, %55, %cst_61 {dimension_numbers = #tpu.dot_dimension_numbers<[1], [0], [0], [1], [0, 0, 1, 1], [], []>} : vector<38x128xbf16>, vector<128x128xbf16>, vector<38x128xf32> -> vector<38x128xf32>
    %57 = arith.addf %52, %56 : vector<38x128xf32>
    %c1_62 = arith.constant 1 : index
    %c0_63 = arith.constant 0 : index
    %58 = vector.load %arg12[%c1_62, %c0_63] : memref<40x64xbf16, #tpu.memory_space<vmem>>, vector<38x64xbf16>
    %c1_64 = arith.constant 1 : index
    %c0_65 = arith.constant 0 : index
    %c0_66 = arith.constant 0 : index
    %59 = vector.load %arg6[%c1_64, %c0_65, %c0_66] : memref<3x64x128xbf16, #tpu.memory_space<vmem>>, vector<1x64x128xbf16>
    %60 = vector.shape_cast %59 : vector<1x64x128xbf16> to vector<64x128xbf16>
    %cst_67 = arith.constant dense<0.000000e+00> : vector<38x128xf32>
    %61 = tpu.matmul %58, %60, %cst_67 {dimension_numbers = #tpu.dot_dimension_numbers<[1], [0], [0], [1], [0, 0, 1, 1], [], []>} : vector<38x64xbf16>, vector<64x128xbf16>, vector<38x128xf32> -> vector<38x128xf32>
    %62 = arith.addf %57, %61 : vector<38x128xf32>
    %c1_68 = arith.constant 1 : index
    %c0_69 = arith.constant 0 : index
    %63 = vector.load %arg13[%c1_68, %c0_69] : memref<40x128xbf16, #tpu.memory_space<vmem>>, vector<38x128xbf16>
    %c1_70 = arith.constant 1 : index
    %c0_71 = arith.constant 0 : index
    %c0_72 = arith.constant 0 : index
    %64 = vector.load %arg7[%c1_70, %c0_71, %c0_72] : memref<3x128x128xbf16, #tpu.memory_space<vmem>>, vector<1x128x128xbf16>
    %65 = vector.shape_cast %64 : vector<1x128x128xbf16> to vector<128x128xbf16>
    %cst_73 = arith.constant dense<0.000000e+00> : vector<38x128xf32>
    %66 = tpu.matmul %63, %65, %cst_73 {dimension_numbers = #tpu.dot_dimension_numbers<[1], [0], [0], [1], [0, 0, 1, 1], [], []>} : vector<38x128xbf16>, vector<128x128xbf16>, vector<38x128xf32> -> vector<38x128xf32>
    %67 = arith.addf %62, %66 : vector<38x128xf32>
    %c2_74 = arith.constant 2 : index
    %c0_75 = arith.constant 0 : index
    %68 = vector.load %arg12[%c2_74, %c0_75] : memref<40x64xbf16, #tpu.memory_space<vmem>>, vector<38x64xbf16>
    %c2_76 = arith.constant 2 : index
    %c0_77 = arith.constant 0 : index
    %c0_78 = arith.constant 0 : index
    %69 = vector.load %arg6[%c2_76, %c0_77, %c0_78] : memref<3x64x128xbf16, #tpu.memory_space<vmem>>, vector<1x64x128xbf16>
    %70 = vector.shape_cast %69 : vector<1x64x128xbf16> to vector<64x128xbf16>
    %cst_79 = arith.constant dense<0.000000e+00> : vector<38x128xf32>
    %71 = tpu.matmul %68, %70, %cst_79 {dimension_numbers = #tpu.dot_dimension_numbers<[1], [0], [0], [1], [0, 0, 1, 1], [], []>} : vector<38x64xbf16>, vector<64x128xbf16>, vector<38x128xf32> -> vector<38x128xf32>
    %72 = arith.addf %67, %71 : vector<38x128xf32>
    %c2_80 = arith.constant 2 : index
    %c0_81 = arith.constant 0 : index
    %73 = vector.load %arg13[%c2_80, %c0_81] : memref<40x128xbf16, #tpu.memory_space<vmem>>, vector<38x128xbf16>
    %c2_82 = arith.constant 2 : index
    %c0_83 = arith.constant 0 : index
    %c0_84 = arith.constant 0 : index
    %74 = vector.load %arg7[%c2_82, %c0_83, %c0_84] : memref<3x128x128xbf16, #tpu.memory_space<vmem>>, vector<1x128x128xbf16>
    %75 = vector.shape_cast %74 : vector<1x128x128xbf16> to vector<128x128xbf16>
    %cst_85 = arith.constant dense<0.000000e+00> : vector<38x128xf32>
    %76 = tpu.matmul %73, %75, %cst_85 {dimension_numbers = #tpu.dot_dimension_numbers<[1], [0], [0], [1], [0, 0, 1, 1], [], []>} : vector<38x128xbf16>, vector<128x128xbf16>, vector<38x128xf32> -> vector<38x128xf32>
    %77 = arith.addf %72, %76 : vector<38x128xf32>
    %c0_86 = arith.constant 0 : index
    %c0_87 = arith.constant 0 : index
    %78 = vector.load %arg8[%c0_86, %c0_87] : memref<1x128xf32, #tpu.memory_space<vmem>>, vector<1x128xf32>
    %79 = vector.broadcast %78 : vector<1x128xf32> to vector<38x128xf32>
    %80 = arith.addf %77, %79 : vector<38x128xf32>
    %cst_88 = arith.constant 0.000000e+00 : f32
    %81 = vector.broadcast %cst_88 : f32 to vector<1x128xf32>
    %cst_89 = arith.constant 0.000000e+00 : f32
    %82 = vector.broadcast %cst_89 : f32 to vector<1x128xf32>
    %83 = vector.extract_strided_slice %80 {offsets = [1, 0], sizes = [16, 128], strides = [1, 1]} : vector<38x128xf32> to vector<16x128xf32>
    %84 = arith.truncf %83 : vector<16x128xf32> to vector<16x128xbf16>
    %c0_90 = arith.constant 0 : index
    %c0_91 = arith.constant 0 : index
    %85 = vector.load %arg9[%c0_90, %c0_91] : memref<32x128xbf16, #tpu.memory_space<vmem>>, vector<16x128xbf16>
    tpu.vector_store %arg9[%c0_90, %c0_91], %84 {strides = array<i32>} : memref<32x128xbf16, #tpu.memory_space<vmem>>, vector<16x128xbf16>,
    %cst_92 = arith.constant dense<0.000000e+00> : vector<128xf32>
    %86 = vector.multi_reduction <add>, %83, %cst_92 [0] : vector<16x128xf32> to vector<128xf32>
    %87 = vector.shape_cast %86 : vector<128xf32> to vector<1x128xf32>
    %88 = arith.addf %81, %87 : vector<1x128xf32>
    %89 = arith.mulf %83, %83 : vector<16x128xf32>
    %cst_93 = arith.constant dense<0.000000e+00> : vector<128xf32>
    %90 = vector.multi_reduction <add>, %89, %cst_93 [0] : vector<16x128xf32> to vector<128xf32>
    %91 = vector.shape_cast %90 : vector<128xf32> to vector<1x128xf32>
    %92 = arith.addf %82, %91 : vector<1x128xf32>
    %93 = vector.extract_strided_slice %80 {offsets = [21, 0], sizes = [16, 128], strides = [1, 1]} : vector<38x128xf32> to vector<16x128xf32>
    %94 = arith.truncf %93 : vector<16x128xf32> to vector<16x128xbf16>
    %c16_94 = arith.constant 16 : index
    %c0_95 = arith.constant 0 : index
    %95 = vector.load %arg9[%c16_94, %c0_95] : memref<32x128xbf16, #tpu.memory_space<vmem>>, vector<16x128xbf16>
    tpu.vector_store %arg9[%c16_94, %c0_95], %94 {strides = array<i32>} : memref<32x128xbf16, #tpu.memory_space<vmem>>, vector<16x128xbf16>,
    %cst_96 = arith.constant dense<0.000000e+00> : vector<128xf32>
    %96 = vector.multi_reduction <add>, %93, %cst_96 [0] : vector<16x128xf32> to vector<128xf32>
    %97 = vector.shape_cast %96 : vector<128xf32> to vector<1x128xf32>
    %98 = arith.addf %88, %97 : vector<1x128xf32>
    %99 = arith.mulf %93, %93 : vector<16x128xf32>
    %cst_97 = arith.constant dense<0.000000e+00> : vector<128xf32>
    %100 = vector.multi_reduction <add>, %99, %cst_97 [0] : vector<16x128xf32> to vector<128xf32>
    %101 = vector.shape_cast %100 : vector<128xf32> to vector<1x128xf32>
    %102 = arith.addf %92, %101 : vector<1x128xf32>
    %103 = vector.shape_cast %98 : vector<1x128xf32> to vector<1x1x128xf32>
    %104 = vector.shape_cast %103 : vector<1x1x128xf32> to vector<1x1x128xf32>
    %105 = vector.broadcast %104 : vector<1x1x128xf32> to vector<1x8x128xf32>
    %c0_98 = arith.constant 0 : index
    %c0_99 = arith.constant 0 : index
    %c0_100 = arith.constant 0 : index
    %106 = vector.load %arg10[%c0_98, %c0_99, %c0_100] : memref<1x8x128xf32, #tpu.memory_space<vmem>>, vector<1x8x128xf32>
    tpu.vector_store %arg10[%c0_98, %c0_99, %c0_100], %105 {strides = array<i32>} : memref<1x8x128xf32, #tpu.memory_space<vmem>>, vector<1x8x128xf32>,
    %107 = vector.shape_cast %102 : vector<1x128xf32> to vector<1x1x128xf32>
    %108 = vector.shape_cast %107 : vector<1x1x128xf32> to vector<1x1x128xf32>
    %109 = vector.broadcast %108 : vector<1x1x128xf32> to vector<1x8x128xf32>
    %c0_101 = arith.constant 0 : index
    %c0_102 = arith.constant 0 : index
    %c0_103 = arith.constant 0 : index
    %110 = vector.load %arg11[%c0_101, %c0_102, %c0_103] : memref<1x8x128xf32, #tpu.memory_space<vmem>>, vector<1x8x128xf32>
    tpu.vector_store %arg11[%c0_101, %c0_102, %c0_103], %109 {strides = array<i32>} : memref<1x8x128xf32, #tpu.memory_space<vmem>>, vector<1x8x128xf32>,
    return
  }
  func.func @transform_0(%arg0: i32) -> (i32, i32) {
    %c0_i32 = arith.constant 0 : i32
    %c0_i32_0 = arith.constant 0 : i32
    return %arg0, %c0_i32 : i32, i32
  }
  func.func @transform_1(%arg0: i32) -> (i32, i32) {
    %c0_i32 = arith.constant 0 : i32
    %c0_i32_0 = arith.constant 0 : i32
    return %arg0, %c0_i32 : i32, i32
  }
  func.func @transform_2(%arg0: i32) -> (i32, i32) {
    %c0_i32 = arith.constant 0 : i32
    %c0_i32_0 = arith.constant 0 : i32
    %c0_i32_1 = arith.constant 0 : i32
    return %c0_i32, %c0_i32_0 : i32, i32
  }
  func.func @transform_3(%arg0: i32) -> (i32, i32) {
    %c0_i32 = arith.constant 0 : i32
    %c0_i32_0 = arith.constant 0 : i32
    %c0_i32_1 = arith.constant 0 : i32
    return %c0_i32, %c0_i32_0 : i32, i32
  }
  func.func @transform_4(%arg0: i32) -> (i32, i32, i32) {
    %c0_i32 = arith.constant 0 : i32
    %c0_i32_0 = arith.constant 0 : i32
    %c0_i32_1 = arith.constant 0 : i32
    %c0_i32_2 = arith.constant 0 : i32
    return %c0_i32, %c0_i32_0, %c0_i32_1 : i32, i32, i32
  }
  func.func @transform_5(%arg0: i32) -> (i32, i32, i32) {
    %c0_i32 = arith.constant 0 : i32
    %c0_i32_0 = arith.constant 0 : i32
    %c0_i32_1 = arith.constant 0 : i32
    %c0_i32_2 = arith.constant 0 : i32
    return %c0_i32, %c0_i32_0, %c0_i32_1 : i32, i32, i32
  }
  func.func @transform_6(%arg0: i32) -> (i32, i32, i32) {
    %c0_i32 = arith.constant 0 : i32
    %c0_i32_0 = arith.constant 0 : i32
    %c0_i32_1 = arith.constant 0 : i32
    %c0_i32_2 = arith.constant 0 : i32
    return %c0_i32, %c0_i32_0, %c0_i32_1 : i32, i32, i32
  }
  func.func @transform_7(%arg0: i32) -> (i32, i32) {
    %c0_i32 = arith.constant 0 : i32
    %c0_i32_0 = arith.constant 0 : i32
    %c0_i32_1 = arith.constant 0 : i32
    return %c0_i32, %c0_i32_0 : i32, i32
  }
  func.func @transform_8(%arg0: i32) -> (i32, i32) {
    %c0_i32 = arith.constant 0 : i32
    %c0_i32_0 = arith.constant 0 : i32
    return %arg0, %c0_i32 : i32, i32
  }
  func.func @transform_9(%arg0: i32) -> (i32, i32, i32) {
    %c0_i32 = arith.constant 0 : i32
    %c0_i32_0 = arith.constant 0 : i32
    %c0_i32_1 = arith.constant 0 : i32
    return %arg0, %c0_i32, %c0_i32_0 : i32, i32, i32
  }
  func.func @transform_10(%arg0: i32) -> (i32, i32, i32) {
    %c0_i32 = arith.constant 0 : i32
    %c0_i32_0 = arith.constant 0 : i32
    %c0_i32_1 = arith.constant 0 : i32
    return %arg0, %c0_i32, %c0_i32_0 : i32, i32, i32
  }
}

module attributes {stable_mosaic.version = 11 : i64} {
  func.func @_bn_relu_kernel(%arg0: i32, %arg1: memref<16x128xbf16, #tpu.memory_space<vmem>>, %arg2: memref<1x128xf32, #tpu.memory_space<vmem>>, %arg3: memref<1x128xf32, #tpu.memory_space<vmem>>, %arg4: memref<16x128xf32, #tpu.memory_space<vmem>>) attributes {dimension_semantics = [#tpu.dimension_semantics<parallel>], iteration_bounds = array<i64: 2>, scalar_prefetch = 0 : i64, scratch_operands = 0 : i64, tpu.core_type = #tpu.core_type<tc>, window_params = [{transform_indices = @transform_0, window_bounds = array<i64: 16, 128>}, {pipeline_mode = #tpu.pipeline_mode<synchronous>, transform_indices = @transform_1, window_bounds = array<i64: 1, 128>}, {pipeline_mode = #tpu.pipeline_mode<synchronous>, transform_indices = @transform_2, window_bounds = array<i64: 1, 128>}, {transform_indices = @transform_3, window_bounds = array<i64: 16, 128>}]} {
    %c0 = arith.constant 0 : index
    %c0_0 = arith.constant 0 : index
    %0 = vector.load %arg1[%c0, %c0_0] : memref<16x128xbf16, #tpu.memory_space<vmem>>, vector<16x128xbf16>
    %c0_1 = arith.constant 0 : index
    %c0_2 = arith.constant 0 : index
    %1 = vector.load %arg2[%c0_1, %c0_2] : memref<1x128xf32, #tpu.memory_space<vmem>>, vector<1x128xf32>
    %2 = arith.extf %0 : vector<16x128xbf16> to vector<16x128xf32>
    %3 = vector.broadcast %1 : vector<1x128xf32> to vector<16x128xf32>
    %4 = arith.mulf %2, %3 : vector<16x128xf32>
    %c0_3 = arith.constant 0 : index
    %c0_4 = arith.constant 0 : index
    %5 = vector.load %arg3[%c0_3, %c0_4] : memref<1x128xf32, #tpu.memory_space<vmem>>, vector<1x128xf32>
    %6 = vector.broadcast %5 : vector<1x128xf32> to vector<16x128xf32>
    %7 = arith.addf %4, %6 : vector<16x128xf32>
    %cst = arith.constant 0.000000e+00 : f32
    %8 = vector.broadcast %cst : f32 to vector<16x128xf32>
    %9 = arith.maximumf %7, %8 : vector<16x128xf32>
    %c0_5 = arith.constant 0 : index
    %c0_6 = arith.constant 0 : index
    %10 = vector.load %arg4[%c0_5, %c0_6] : memref<16x128xf32, #tpu.memory_space<vmem>>, vector<16x128xf32>
    tpu.vector_store %arg4[%c0_5, %c0_6], %9 {strides = array<i32>} : memref<16x128xf32, #tpu.memory_space<vmem>>, vector<16x128xf32>,
    return
  }
  func.func @transform_0(%arg0: i32) -> (i32, i32) {
    %c0_i32 = arith.constant 0 : i32
    %c0_i32_0 = arith.constant 0 : i32
    return %arg0, %c0_i32 : i32, i32
  }
  func.func @transform_1(%arg0: i32) -> (i32, i32) {
    %c0_i32 = arith.constant 0 : i32
    %c0_i32_0 = arith.constant 0 : i32
    %c0_i32_1 = arith.constant 0 : i32
    return %c0_i32, %c0_i32_0 : i32, i32
  }
  func.func @transform_2(%arg0: i32) -> (i32, i32) {
    %c0_i32 = arith.constant 0 : i32
    %c0_i32_0 = arith.constant 0 : i32
    %c0_i32_1 = arith.constant 0 : i32
    return %c0_i32, %c0_i32_0 : i32, i32
  }
  func.func @transform_3(%arg0: i32) -> (i32, i32) {
    %c0_i32 = arith.constant 0 : i32
    %c0_i32_0 = arith.constant 0 : i32
    return %arg0, %c0_i32 : i32, i32
  }
}

module attributes {stable_mosaic.version = 11 : i64} {
  func.func @_conv2_kernel(%arg0: i32, %arg1: memref<32x128xbf16, #tpu.memory_space<vmem>>, %arg2: memref<1x128xf32, #tpu.memory_space<vmem>>, %arg3: memref<1x128xf32, #tpu.memory_space<vmem>>, %arg4: memref<3x128x128xbf16, #tpu.memory_space<vmem>>, %arg5: memref<1x128xf32, #tpu.memory_space<vmem>>, %arg6: memref<32x128xbf16, #tpu.memory_space<vmem>>, %arg7: memref<1x8x128xf32, #tpu.memory_space<vmem>>, %arg8: memref<1x8x128xf32, #tpu.memory_space<vmem>>, %arg9: memref<40x128xbf16, #tpu.memory_space<vmem>>) attributes {dimension_semantics = [#tpu.dimension_semantics<parallel>], iteration_bounds = array<i64: 1>, scalar_prefetch = 0 : i64, scratch_operands = 1 : i64, tpu.core_type = #tpu.core_type<tc>, window_params = [{transform_indices = @transform_0, window_bounds = array<i64: 32, 128>}, {pipeline_mode = #tpu.pipeline_mode<synchronous>, transform_indices = @transform_1, window_bounds = array<i64: 1, 128>}, {pipeline_mode = #tpu.pipeline_mode<synchronous>, transform_indices = @transform_2, window_bounds = array<i64: 1, 128>}, {pipeline_mode = #tpu.pipeline_mode<synchronous>, transform_indices = @transform_3, window_bounds = array<i64: 3, 128, 128>}, {pipeline_mode = #tpu.pipeline_mode<synchronous>, transform_indices = @transform_4, window_bounds = array<i64: 1, 128>}, {transform_indices = @transform_5, window_bounds = array<i64: 32, 128>}, {transform_indices = @transform_6, window_bounds = array<i64: 1, 8, 128>}, {transform_indices = @transform_7, window_bounds = array<i64: 1, 8, 128>}]} {
    %c0 = arith.constant 0 : index
    %c0_0 = arith.constant 0 : index
    %0 = vector.load %arg1[%c0, %c0_0] : memref<32x128xbf16, #tpu.memory_space<vmem>>, vector<32x128xbf16>
    %c0_1 = arith.constant 0 : index
    %c0_2 = arith.constant 0 : index
    %1 = vector.load %arg2[%c0_1, %c0_2] : memref<1x128xf32, #tpu.memory_space<vmem>>, vector<1x128xf32>
    %2 = arith.extf %0 : vector<32x128xbf16> to vector<32x128xf32>
    %3 = vector.broadcast %1 : vector<1x128xf32> to vector<32x128xf32>
    %4 = arith.mulf %2, %3 : vector<32x128xf32>
    %c0_3 = arith.constant 0 : index
    %c0_4 = arith.constant 0 : index
    %5 = vector.load %arg3[%c0_3, %c0_4] : memref<1x128xf32, #tpu.memory_space<vmem>>, vector<1x128xf32>
    %6 = vector.broadcast %5 : vector<1x128xf32> to vector<32x128xf32>
    %7 = arith.addf %4, %6 : vector<32x128xf32>
    %cst = arith.constant 0.000000e+00 : f32
    %8 = vector.broadcast %cst : f32 to vector<32x128xf32>
    %9 = arith.maximumf %7, %8 : vector<32x128xf32>
    %10 = arith.truncf %9 : vector<32x128xf32> to vector<32x128xbf16>
    %cst_5 = arith.constant 0.000000e+00 : bf16
    %11 = vector.broadcast %cst_5 : bf16 to vector<2x128xbf16>
    %c0_6 = arith.constant 0 : index
    %c0_7 = arith.constant 0 : index
    %12 = vector.load %arg9[%c0_6, %c0_7] : memref<40x128xbf16, #tpu.memory_space<vmem>>, vector<2x128xbf16>
    tpu.vector_store %arg9[%c0_6, %c0_7], %11 {strides = array<i32>} : memref<40x128xbf16, #tpu.memory_space<vmem>>, vector<2x128xbf16>,
    %cst_8 = arith.constant 0.000000e+00 : bf16
    %13 = vector.broadcast %cst_8 : bf16 to vector<2x128xbf16>
    %c18 = arith.constant 18 : index
    %c0_9 = arith.constant 0 : index
    %14 = vector.load %arg9[%c18, %c0_9] : memref<40x128xbf16, #tpu.memory_space<vmem>>, vector<2x128xbf16>
    tpu.vector_store %arg9[%c18, %c0_9], %13 {strides = array<i32>} : memref<40x128xbf16, #tpu.memory_space<vmem>>, vector<2x128xbf16>,
    %15 = vector.extract_strided_slice %10 {offsets = [0, 0], sizes = [16, 128], strides = [1, 1]} : vector<32x128xbf16> to vector<16x128xbf16>
    %c2 = arith.constant 2 : index
    %c0_10 = arith.constant 0 : index
    %16 = vector.load %arg9[%c2, %c0_10] : memref<40x128xbf16, #tpu.memory_space<vmem>>, vector<16x128xbf16>
    tpu.vector_store %arg9[%c2, %c0_10], %15 {strides = array<i32>} : memref<40x128xbf16, #tpu.memory_space<vmem>>, vector<16x128xbf16>,
    %cst_11 = arith.constant 0.000000e+00 : bf16
    %17 = vector.broadcast %cst_11 : bf16 to vector<2x128xbf16>
    %c20 = arith.constant 20 : index
    %c0_12 = arith.constant 0 : index
    %18 = vector.load %arg9[%c20, %c0_12] : memref<40x128xbf16, #tpu.memory_space<vmem>>, vector<2x128xbf16>
    tpu.vector_store %arg9[%c20, %c0_12], %17 {strides = array<i32>} : memref<40x128xbf16, #tpu.memory_space<vmem>>, vector<2x128xbf16>,
    %cst_13 = arith.constant 0.000000e+00 : bf16
    %19 = vector.broadcast %cst_13 : bf16 to vector<2x128xbf16>
    %c38 = arith.constant 38 : index
    %c0_14 = arith.constant 0 : index
    %20 = vector.load %arg9[%c38, %c0_14] : memref<40x128xbf16, #tpu.memory_space<vmem>>, vector<2x128xbf16>
    tpu.vector_store %arg9[%c38, %c0_14], %19 {strides = array<i32>} : memref<40x128xbf16, #tpu.memory_space<vmem>>, vector<2x128xbf16>,
    %21 = vector.extract_strided_slice %10 {offsets = [16, 0], sizes = [16, 128], strides = [1, 1]} : vector<32x128xbf16> to vector<16x128xbf16>
    %c22 = arith.constant 22 : index
    %c0_15 = arith.constant 0 : index
    %22 = vector.load %arg9[%c22, %c0_15] : memref<40x128xbf16, #tpu.memory_space<vmem>>, vector<16x128xbf16>
    tpu.vector_store %arg9[%c22, %c0_15], %21 {strides = array<i32>} : memref<40x128xbf16, #tpu.memory_space<vmem>>, vector<16x128xbf16>,
    %c0_16 = arith.constant 0 : index
    %c0_17 = arith.constant 0 : index
    %23 = vector.load %arg9[%c0_16, %c0_17] : memref<40x128xbf16, #tpu.memory_space<vmem>>, vector<38x128xbf16>
    %c0_18 = arith.constant 0 : index
    %c0_19 = arith.constant 0 : index
    %c0_20 = arith.constant 0 : index
    %24 = vector.load %arg4[%c0_18, %c0_19, %c0_20] : memref<3x128x128xbf16, #tpu.memory_space<vmem>>, vector<1x128x128xbf16>
    %25 = vector.shape_cast %24 : vector<1x128x128xbf16> to vector<128x128xbf16>
    %cst_21 = arith.constant dense<0.000000e+00> : vector<38x128xf32>
    %26 = tpu.matmul %23, %25, %cst_21 {dimension_numbers = #tpu.dot_dimension_numbers<[1], [0], [0], [1], [0, 0, 1, 1], [], []>} : vector<38x128xbf16>, vector<128x128xbf16>, vector<38x128xf32> -> vector<38x128xf32>
    %c1 = arith.constant 1 : index
    %c0_22 = arith.constant 0 : index
    %27 = vector.load %arg9[%c1, %c0_22] : memref<40x128xbf16, #tpu.memory_space<vmem>>, vector<38x128xbf16>
    %c1_23 = arith.constant 1 : index
    %c0_24 = arith.constant 0 : index
    %c0_25 = arith.constant 0 : index
    %28 = vector.load %arg4[%c1_23, %c0_24, %c0_25] : memref<3x128x128xbf16, #tpu.memory_space<vmem>>, vector<1x128x128xbf16>
    %29 = vector.shape_cast %28 : vector<1x128x128xbf16> to vector<128x128xbf16>
    %cst_26 = arith.constant dense<0.000000e+00> : vector<38x128xf32>
    %30 = tpu.matmul %27, %29, %cst_26 {dimension_numbers = #tpu.dot_dimension_numbers<[1], [0], [0], [1], [0, 0, 1, 1], [], []>} : vector<38x128xbf16>, vector<128x128xbf16>, vector<38x128xf32> -> vector<38x128xf32>
    %31 = arith.addf %26, %30 : vector<38x128xf32>
    %c2_27 = arith.constant 2 : index
    %c0_28 = arith.constant 0 : index
    %32 = vector.load %arg9[%c2_27, %c0_28] : memref<40x128xbf16, #tpu.memory_space<vmem>>, vector<38x128xbf16>
    %c2_29 = arith.constant 2 : index
    %c0_30 = arith.constant 0 : index
    %c0_31 = arith.constant 0 : index
    %33 = vector.load %arg4[%c2_29, %c0_30, %c0_31] : memref<3x128x128xbf16, #tpu.memory_space<vmem>>, vector<1x128x128xbf16>
    %34 = vector.shape_cast %33 : vector<1x128x128xbf16> to vector<128x128xbf16>
    %cst_32 = arith.constant dense<0.000000e+00> : vector<38x128xf32>
    %35 = tpu.matmul %32, %34, %cst_32 {dimension_numbers = #tpu.dot_dimension_numbers<[1], [0], [0], [1], [0, 0, 1, 1], [], []>} : vector<38x128xbf16>, vector<128x128xbf16>, vector<38x128xf32> -> vector<38x128xf32>
    %36 = arith.addf %31, %35 : vector<38x128xf32>
    %c0_33 = arith.constant 0 : index
    %c0_34 = arith.constant 0 : index
    %37 = vector.load %arg5[%c0_33, %c0_34] : memref<1x128xf32, #tpu.memory_space<vmem>>, vector<1x128xf32>
    %38 = vector.broadcast %37 : vector<1x128xf32> to vector<38x128xf32>
    %39 = arith.addf %36, %38 : vector<38x128xf32>
    %cst_35 = arith.constant 0.000000e+00 : f32
    %40 = vector.broadcast %cst_35 : f32 to vector<1x128xf32>
    %cst_36 = arith.constant 0.000000e+00 : f32
    %41 = vector.broadcast %cst_36 : f32 to vector<1x128xf32>
    %42 = vector.extract_strided_slice %39 {offsets = [1, 0], sizes = [16, 128], strides = [1, 1]} : vector<38x128xf32> to vector<16x128xf32>
    %43 = arith.truncf %42 : vector<16x128xf32> to vector<16x128xbf16>
    %c0_37 = arith.constant 0 : index
    %c0_38 = arith.constant 0 : index
    %44 = vector.load %arg6[%c0_37, %c0_38] : memref<32x128xbf16, #tpu.memory_space<vmem>>, vector<16x128xbf16>
    tpu.vector_store %arg6[%c0_37, %c0_38], %43 {strides = array<i32>} : memref<32x128xbf16, #tpu.memory_space<vmem>>, vector<16x128xbf16>,
    %cst_39 = arith.constant dense<0.000000e+00> : vector<128xf32>
    %45 = vector.multi_reduction <add>, %42, %cst_39 [0] : vector<16x128xf32> to vector<128xf32>
    %46 = vector.shape_cast %45 : vector<128xf32> to vector<1x128xf32>
    %47 = arith.addf %40, %46 : vector<1x128xf32>
    %48 = arith.mulf %42, %42 : vector<16x128xf32>
    %cst_40 = arith.constant dense<0.000000e+00> : vector<128xf32>
    %49 = vector.multi_reduction <add>, %48, %cst_40 [0] : vector<16x128xf32> to vector<128xf32>
    %50 = vector.shape_cast %49 : vector<128xf32> to vector<1x128xf32>
    %51 = arith.addf %41, %50 : vector<1x128xf32>
    %52 = vector.extract_strided_slice %39 {offsets = [21, 0], sizes = [16, 128], strides = [1, 1]} : vector<38x128xf32> to vector<16x128xf32>
    %53 = arith.truncf %52 : vector<16x128xf32> to vector<16x128xbf16>
    %c16 = arith.constant 16 : index
    %c0_41 = arith.constant 0 : index
    %54 = vector.load %arg6[%c16, %c0_41] : memref<32x128xbf16, #tpu.memory_space<vmem>>, vector<16x128xbf16>
    tpu.vector_store %arg6[%c16, %c0_41], %53 {strides = array<i32>} : memref<32x128xbf16, #tpu.memory_space<vmem>>, vector<16x128xbf16>,
    %cst_42 = arith.constant dense<0.000000e+00> : vector<128xf32>
    %55 = vector.multi_reduction <add>, %52, %cst_42 [0] : vector<16x128xf32> to vector<128xf32>
    %56 = vector.shape_cast %55 : vector<128xf32> to vector<1x128xf32>
    %57 = arith.addf %47, %56 : vector<1x128xf32>
    %58 = arith.mulf %52, %52 : vector<16x128xf32>
    %cst_43 = arith.constant dense<0.000000e+00> : vector<128xf32>
    %59 = vector.multi_reduction <add>, %58, %cst_43 [0] : vector<16x128xf32> to vector<128xf32>
    %60 = vector.shape_cast %59 : vector<128xf32> to vector<1x128xf32>
    %61 = arith.addf %51, %60 : vector<1x128xf32>
    %62 = vector.shape_cast %57 : vector<1x128xf32> to vector<1x1x128xf32>
    %63 = vector.shape_cast %62 : vector<1x1x128xf32> to vector<1x1x128xf32>
    %64 = vector.broadcast %63 : vector<1x1x128xf32> to vector<1x8x128xf32>
    %c0_44 = arith.constant 0 : index
    %c0_45 = arith.constant 0 : index
    %c0_46 = arith.constant 0 : index
    %65 = vector.load %arg7[%c0_44, %c0_45, %c0_46] : memref<1x8x128xf32, #tpu.memory_space<vmem>>, vector<1x8x128xf32>
    tpu.vector_store %arg7[%c0_44, %c0_45, %c0_46], %64 {strides = array<i32>} : memref<1x8x128xf32, #tpu.memory_space<vmem>>, vector<1x8x128xf32>,
    %66 = vector.shape_cast %61 : vector<1x128xf32> to vector<1x1x128xf32>
    %67 = vector.shape_cast %66 : vector<1x1x128xf32> to vector<1x1x128xf32>
    %68 = vector.broadcast %67 : vector<1x1x128xf32> to vector<1x8x128xf32>
    %c0_47 = arith.constant 0 : index
    %c0_48 = arith.constant 0 : index
    %c0_49 = arith.constant 0 : index
    %69 = vector.load %arg8[%c0_47, %c0_48, %c0_49] : memref<1x8x128xf32, #tpu.memory_space<vmem>>, vector<1x8x128xf32>
    tpu.vector_store %arg8[%c0_47, %c0_48, %c0_49], %68 {strides = array<i32>} : memref<1x8x128xf32, #tpu.memory_space<vmem>>, vector<1x8x128xf32>,
    return
  }
  func.func @transform_0(%arg0: i32) -> (i32, i32) {
    %c0_i32 = arith.constant 0 : i32
    %c0_i32_0 = arith.constant 0 : i32
    return %arg0, %c0_i32 : i32, i32
  }
  func.func @transform_1(%arg0: i32) -> (i32, i32) {
    %c0_i32 = arith.constant 0 : i32
    %c0_i32_0 = arith.constant 0 : i32
    %c0_i32_1 = arith.constant 0 : i32
    return %c0_i32, %c0_i32_0 : i32, i32
  }
  func.func @transform_2(%arg0: i32) -> (i32, i32) {
    %c0_i32 = arith.constant 0 : i32
    %c0_i32_0 = arith.constant 0 : i32
    %c0_i32_1 = arith.constant 0 : i32
    return %c0_i32, %c0_i32_0 : i32, i32
  }
  func.func @transform_3(%arg0: i32) -> (i32, i32, i32) {
    %c0_i32 = arith.constant 0 : i32
    %c0_i32_0 = arith.constant 0 : i32
    %c0_i32_1 = arith.constant 0 : i32
    %c0_i32_2 = arith.constant 0 : i32
    return %c0_i32, %c0_i32_0, %c0_i32_1 : i32, i32, i32
  }
  func.func @transform_4(%arg0: i32) -> (i32, i32) {
    %c0_i32 = arith.constant 0 : i32
    %c0_i32_0 = arith.constant 0 : i32
    %c0_i32_1 = arith.constant 0 : i32
    return %c0_i32, %c0_i32_0 : i32, i32
  }
  func.func @transform_5(%arg0: i32) -> (i32, i32) {
    %c0_i32 = arith.constant 0 : i32
    %c0_i32_0 = arith.constant 0 : i32
    return %arg0, %c0_i32 : i32, i32
  }
  func.func @transform_6(%arg0: i32) -> (i32, i32, i32) {
    %c0_i32 = arith.constant 0 : i32
    %c0_i32_0 = arith.constant 0 : i32
    %c0_i32_1 = arith.constant 0 : i32
    return %arg0, %c0_i32, %c0_i32_0 : i32, i32, i32
  }
  func.func @transform_7(%arg0: i32) -> (i32, i32, i32) {
    %c0_i32 = arith.constant 0 : i32
    %c0_i32_0 = arith.constant 0 : i32
    %c0_i32_1 = arith.constant 0 : i32
    return %arg0, %c0_i32, %c0_i32_0 : i32, i32, i32
  }
}

</mosaic_0001>

<llo_original>
// kernel: tile.38
$region0: #{tile.38}
  #allocation0 [shape = 's32[1]{0}', space=sflag, size = 0x4, scoped, tag = 'scoped memory for tile.38']
  %s0 = inlined_call_operand.vmem [shape: f32[8], index: 0, kind: input, shape index: {}]
  %s1 = inlined_call_operand.vmem [shape: f32[32,8], index: 1, kind: output, shape index: {}]
  // Predicated region
  $region2: #{tile.38} parent=0 // pred_check
    _
  $region3: #{tile.38} parent=0 // pred_check_branch
    %3 = sbr.rel (0) target = $region5
  $region4: #{tile.38} parent=0 // pred_region
    _
  $region5: #{tile.38} parent=0 // pred_fallthru
    _
  %v4 = vld [vmem:[%s0] ss:$0 sm:$0xff]
  %5 = vst [vmem:[%s1] sm:$0xff] %v4
  %s6 = scalar_lea.vmem %s1, 8
  %7 = vst [vmem:[%s6] sm:$0xff] %v4
  %s8 = scalar_lea.vmem %s1, 16
  %9 = vst [vmem:[%s8] sm:$0xff] %v4
  %s10 = scalar_lea.vmem %s1, 24
  %11 = vst [vmem:[%s10] sm:$0xff] %v4

// kernel: tile.39
$region0: #{tile.39}
  %s0 = inlined_call_operand.vmem [shape: f32[32,8], index: 0, kind: input, shape index: {}]
  %s1 = inlined_call_operand.vmem [shape: f32[1,256], index: 1, kind: output, shape index: {}]
  $region1: #{tile.39} parent=0
    #allocation0 [shape = 'u8[8192]{0}', space=vmem, size = 0x2000, scoped, tag = 'scoped mem for output reshape']
    %s2 = smov 3
    %v3 = vld [vmem:[%s0] ss:$16 sm:%s2]
    %vm4 = vcmask 64512
    %5 = vst.msk [vmem:[#allocation0] ss:$8 sm:$0x3] %vm4, %v3
    %s6 = scalar_lea.vmem %s0, 15
    %s7 = smov 3
    %v8 = vld [vmem:[%s6] ss:$16 sm:%s7]
    %9 = vrot.lane.b32.xlu0 %v8, 120
    %v10 = vpop.permute.xlu0 %9
    %vm11 = vcmask 1048512
    %12 = vst.msk [vmem:[#allocation0] ss:$8 sm:$0x3] %vm11, %v10
    %s13 = scalar_lea.vmem %s0, 14
    %s14 = smov 3
    %v15 = vld [vmem:[%s13] ss:$16 sm:%s14]
    %16 = vrot.lane.b32.xlu0 %v15, 112
    %v17 = vpop.permute.xlu0 %16
    %vm18 = vcmask 982912
    %19 = vst.msk [vmem:[#allocation0] ss:$8 sm:$0x3] %vm18, %v17
    %s20 = scalar_lea.vmem %s0, 13
    %s21 = smov 3
    %v22 = vld [vmem:[%s20] ss:$16 sm:%s21]
    %23 = vrot.lane.b32.xlu0 %v22, 104
    %v24 = vpop.permute.xlu0 %23
    %vm25 = vcmask 917312
    %26 = vst.msk [vmem:[#allocation0] ss:$8 sm:$0x3] %vm25, %v24
    %s27 = scalar_lea.vmem %s0, 12
    %s28 = smov 3
    %v29 = vld [vmem:[%s27] ss:$16 sm:%s28]
    %30 = vrot.lane.b32.xlu0 %v29, 96
    %v31 = vpop.permute.xlu0 %30
    %vm32 = vcmask 851712
    %33 = vst.msk [vmem:[#allocation0] ss:$8 sm:$0x3] %vm32, %v31
    %s34 = scalar_lea.vmem %s0, 11
    %s35 = smov 3
    %v36 = vld [vmem:[%s34] ss:$16 sm:%s35]
    %37 = vrot.lane.b32.xlu0 %v36, 88
    %v38 = vpop.permute.xlu0 %37
    %vm39 = vcmask 786112
    %40 = vst.msk [vmem:[#allocation0] ss:$8 sm:$0x3] %vm39, %v38
    %s41 = scalar_lea.vmem %s0, 10
    %s42 = smov 3
    %v43 = vld [vmem:[%s41] ss:$16 sm:%s42]
    %44 = vrot.lane.b32.xlu0 %v43, 80
    %v45 = vpop.permute.xlu0 %44
    %vm46 = vcmask 720512
    %47 = vst.msk [vmem:[#allocation0] ss:$8 sm:$0x3] %vm46, %v45
    %s48 = scalar_lea.vmem %s0, 9
    %s49 = smov 3
    %v50 = vld [vmem:[%s48] ss:$16 sm:%s49]
    %51 = vrot.lane.b32.xlu0 %v50, 72
    %v52 = vpop.permute.xlu0 %51
    %vm53 = vcmask 654912
    %54 = vst.msk [vmem:[#allocation0] ss:$8 sm:$0x3] %vm53, %v52
    %s55 = scalar_lea.vmem %s0, 8
    %s56 = smov 3
    %v57 = vld [vmem:[%s55] ss:$16 sm:%s56]
    %58 = vrot.lane.b32.xlu0 %v57, 64
    %v59 = vpop.permute.xlu0 %58
    %vm60 = vcmask 589312
    %61 = vst.msk [vmem:[#allocation0] ss:$8 sm:$0x3] %vm60, %v59
    %s62 = scalar_lea.vmem %s0, 7
    %s63 = smov 3
    %v64 = vld [vmem:[%s62] ss:$16 sm:%s63]
    %65 = vrot.lane.b32.xlu0 %v64, 56
    %v66 = vpop.permute.xlu0 %65
    %vm67 = vcmask 523712
    %68 = vst.msk [vmem:[#allocation0] ss:$8 sm:$0x3] %vm67, %v66
    %s69 = scalar_lea.vmem %s0, 6
    %s70 = smov 3
    %v71 = vld [vmem:[%s69] ss:$16 sm:%s70]
    %72 = vrot.lane.b32.xlu0 %v71, 48
    %v73 = vpop.permute.xlu0 %72
    %vm74 = vcmask 458112
    %75 = vst.msk [vmem:[#allocation0] ss:$8 sm:$0x3] %vm74, %v73
    %s76 = scalar_lea.vmem %s0, 5
    %s77 = smov 3
    %v78 = vld [vmem:[%s76] ss:$16 sm:%s77]
    %79 = vrot.lane.b32.xlu0 %v78, 40
    %v80 = vpop.permute.xlu0 %79
    %vm81 = vcmask 392512
    %82 = vst.msk [vmem:[#allocation0] ss:$8 sm:$0x3] %vm81, %v80
    %s83 = scalar_lea.vmem %s0, 4
    %s84 = smov 3
    %v85 = vld [vmem:[%s83] ss:$16 sm:%s84]
    %86 = vrot.lane.b32.xlu0 %v85, 32
    %v87 = vpop.permute.xlu0 %86
    %vm88 = vcmask 326912
    %89 = vst.msk [vmem:[#allocation0] ss:$8 sm:$0x3] %vm88, %v87
    %s90 = scalar_lea.vmem %s0, 3
    %s91 = smov 3
    %v92 = vld [vmem:[%s90] ss:$16 sm:%s91]
    %93 = vrot.lane.b32.xlu0 %v92, 24
    %v94 = vpop.permute.xlu0 %93
    %vm95 = vcmask 261312
    %96 = vst.msk [vmem:[#allocation0] ss:$8 sm:$0x3] %vm95, %v94
    %s97 = scalar_lea.vmem %s0, 2
    %s98 = smov 3
    %v99 = vld [vmem:[%s97] ss:$16 sm:%s98]
    %100 = vrot.lane.b32.xlu0 %v99, 16
    %v101 = vpop.permute.xlu0 %100
    %vm102 = vcmask 195712
    %103 = vst.msk [vmem:[#allocation0] ss:$8 sm:$0x3] %vm102, %v101
    %s104 = scalar_lea.vmem %s0, 1
    %s105 = smov 3
    %v106 = vld [vmem:[%s104] ss:$16 sm:%s105]
    %107 = vrot.lane.b32.xlu0 %v106, 8
    %v108 = vpop.permute.xlu0 %107
    %vm109 = vcmask 130112
    %110 = vst.msk [vmem:[#allocation0] ss:$8 sm:$0x3] %vm109, %v108
    %s112 = sshllo.u32 0, 1
    %v114 = vld [vmem:[#allocation0] sm:%s112]
    %s115 = sshllo.u32 0, 1
    %116 = vst [vmem:[%s1] sm:%s115] %v114
    %s117 = scalar_lea.vmem [#allocation0], 8
    %v118 = vld [vmem:[%s117] sm:%s112]
    %s119 = sshllo.u32 0, 1
    %s120 = scalar_lea.vmem %s1, 1
    %121 = vst [vmem:[%s120] sm:%s119] %v118

// kernel: tile.43
$region0: #{tile.43}
  #allocation0 [shape = 's32[1]{0}', space=sflag, size = 0x4, scoped, tag = 'scoped memory for tile.43']
  %s0 = inlined_call_operand.vmem [shape: f32[8], index: 0, kind: input, shape index: {}]
  %s1 = inlined_call_operand.vmem [shape: f32[16,8], index: 1, kind: output, shape index: {}]
  // Predicated region
  $region2: #{tile.43} parent=0 // pred_check
    _
  $region3: #{tile.43} parent=0 // pred_check_branch
    %3 = sbr.rel (0) target = $region5
  $region4: #{tile.43} parent=0 // pred_region
    _
  $region5: #{tile.43} parent=0 // pred_fallthru
    _
  %v4 = vld [vmem:[%s0] ss:$0 sm:$0xff]
  %5 = vst [vmem:[%s1] sm:$0xff] %v4
  %s6 = scalar_lea.vmem %s1, 8
  %7 = vst [vmem:[%s6] sm:$0xff] %v4

// kernel: tile.44
$region0: #{tile.44}
  %s0 = inlined_call_operand.vmem [shape: f32[16,8], index: 0, kind: input, shape index: {}]
  %s1 = inlined_call_operand.vmem [shape: f32[1,128], index: 1, kind: output, shape index: {}]
  $region1: #{tile.44} parent=0
    #allocation0 [shape = 'u8[4096]{0}', space=vmem, size = 0x1000, scoped, tag = 'scoped mem for output reshape']
    %v2 = vld [vmem:[%s0] sm:$0x1]
    %vm3 = vcmask 64512
    %4 = vst.msk [vmem:[#allocation0] sm:$0x1] %vm3, %v2
    %s5 = scalar_lea.vmem %s0, 15
    %v6 = vld [vmem:[%s5] sm:$0x1]
    %7 = vrot.lane.b32.xlu0 %v6, 120
    %v8 = vpop.permute.xlu0 %7
    %vm9 = vcmask 1048512
    %10 = vst.msk [vmem:[#allocation0] sm:$0x1] %vm9, %v8
    %s11 = scalar_lea.vmem %s0, 14
    %v12 = vld [vmem:[%s11] sm:$0x1]
    %13 = vrot.lane.b32.xlu0 %v12, 112
    %v14 = vpop.permute.xlu0 %13
    %vm15 = vcmask 982912
    %16 = vst.msk [vmem:[#allocation0] sm:$0x1] %vm15, %v14
    %s17 = scalar_lea.vmem %s0, 13
    %v18 = vld [vmem:[%s17] sm:$0x1]
    %19 = vrot.lane.b32.xlu0 %v18, 104
    %v20 = vpop.permute.xlu0 %19
    %vm21 = vcmask 917312
    %22 = vst.msk [vmem:[#allocation0] sm:$0x1] %vm21, %v20
    %s23 = scalar_lea.vmem %s0, 12
    %v24 = vld [vmem:[%s23] sm:$0x1]
    %25 = vrot.lane.b32.xlu0 %v24, 96
    %v26 = vpop.permute.xlu0 %25
    %vm27 = vcmask 851712
    %28 = vst.msk [vmem:[#allocation0] sm:$0x1] %vm27, %v26
    %s29 = scalar_lea.vmem %s0, 11
    %v30 = vld [vmem:[%s29] sm:$0x1]
    %31 = vrot.lane.b32.xlu0 %v30, 88
    %v32 = vpop.permute.xlu0 %31
    %vm33 = vcmask 786112
    %34 = vst.msk [vmem:[#allocation0] sm:$0x1] %vm33, %v32
    %s35 = scalar_lea.vmem %s0, 10
    %v36 = vld [vmem:[%s35] sm:$0x1]
    %37 = vrot.lane.b32.xlu0 %v36, 80
    %v38 = vpop.permute.xlu0 %37
    %vm39 = vcmask 720512
    %40 = vst.msk [vmem:[#allocation0] sm:$0x1] %vm39, %v38
    %s41 = scalar_lea.vmem %s0, 9
    %v42 = vld [vmem:[%s41] sm:$0x1]
    %43 = vrot.lane.b32.xlu0 %v42, 72
    %v44 = vpop.permute.xlu0 %43
    %vm45 = vcmask 654912
    %46 = vst.msk [vmem:[#allocation0] sm:$0x1] %vm45, %v44
    %s47 = scalar_lea.vmem %s0, 8
    %v48 = vld [vmem:[%s47] sm:$0x1]
    %49 = vrot.lane.b32.xlu0 %v48, 64
    %v50 = vpop.permute.xlu0 %49
    %vm51 = vcmask 589312
    %52 = vst.msk [vmem:[#allocation0] sm:$0x1] %vm51, %v50
    %s53 = scalar_lea.vmem %s0, 7
    %v54 = vld [vmem:[%s53] sm:$0x1]
    %55 = vrot.lane.b32.xlu0 %v54, 56
    %v56 = vpop.permute.xlu0 %55
    %vm57 = vcmask 523712
    %58 = vst.msk [vmem:[#allocation0] sm:$0x1] %vm57, %v56
    %s59 = scalar_lea.vmem %s0, 6
    %v60 = vld [vmem:[%s59] sm:$0x1]
    %61 = vrot.lane.b32.xlu0 %v60, 48
    %v62 = vpop.permute.xlu0 %61
    %vm63 = vcmask 458112
    %64 = vst.msk [vmem:[#allocation0] sm:$0x1] %vm63, %v62
    %s65 = scalar_lea.vmem %s0, 5
    %v66 = vld [vmem:[%s65] sm:$0x1]
    %67 = vrot.lane.b32.xlu0 %v66, 40
    %v68 = vpop.permute.xlu0 %67
    %vm69 = vcmask 392512
    %70 = vst.msk [vmem:[#allocation0] sm:$0x1] %vm69, %v68
    %s71 = scalar_lea.vmem %s0, 4
    %v72 = vld [vmem:[%s71] sm:$0x1]
    %73 = vrot.lane.b32.xlu0 %v72, 32
    %v74 = vpop.permute.xlu0 %73
    %vm75 = vcmask 326912
    %76 = vst.msk [vmem:[#allocation0] sm:$0x1] %vm75, %v74
    %s77 = scalar_lea.vmem %s0, 3
    %v78 = vld [vmem:[%s77] sm:$0x1]
    %79 = vrot.lane.b32.xlu0 %v78, 24
    %v80 = vpop.permute.xlu0 %79
    %vm81 = vcmask 261312
    %82 = vst.msk [vmem:[#allocation0] sm:$0x1] %vm81, %v80
    %s83 = scalar_lea.vmem %s0, 2
    %v84 = vld [vmem:[%s83] sm:$0x1]
    %85 = vrot.lane.b32.xlu0 %v84, 16
    %v86 = vpop.permute.xlu0 %85
    %vm87 = vcmask 195712
    %88 = vst.msk [vmem:[#allocation0] sm:$0x1] %vm87, %v86
    %s89 = scalar_lea.vmem %s0, 1
    %v90 = vld [vmem:[%s89] sm:$0x1]
    %91 = vrot.lane.b32.xlu0 %v90, 8
    %v92 = vpop.permute.xlu0 %91
    %vm93 = vcmask 130112
    %94 = vst.msk [vmem:[#allocation0] sm:$0x1] %vm93, %v92
    %s96 = sshllo.u32 0, 1
    %v98 = vld [vmem:[#allocation0] sm:%s96]
    %s99 = sshllo.u32 0, 1
    %100 = vst [vmem:[%s1] sm:%s99] %v98

// kernel: squeeze.66
$region0: #{squeeze.66}
  %s0 = inlined_call_operand.vmem [shape: f32[128], index: 0, kind: input, shape index: {}]
  %s1 = inlined_call_operand.vmem [shape: f32[16,8], index: 1, kind: output, shape index: {}]
  $region1: #{squeeze.66} parent=0
    #allocation0 [shape = 'u8[4096]{0}', space=vmem, size = 0x1000, scoped, tag = 'scoped mem for input reshape']
    %s3 = sshllo.u32 0, 1
    %v4 = vld [vmem:[%s0] sm:%s3]
    %5 = vst [vmem:[#allocation0] sm:%s3] %v4
    %v6 = vld [vmem:[#allocation0] sm:$0x1]
    %vm7 = vcmask 64512
    %8 = vst.msk [vmem:[%s1] sm:$0x1] %vm7, %v6
    %v9 = vld [vmem:[#allocation0] sm:$0x1]
    %10 = vrot.lane.b32.xlu0 %v9, 120
    %v11 = vpop.permute.xlu0 %10
    %vm12 = vcmask 64512
    %s13 = scalar_lea.vmem %s1, 1
    %14 = vst.msk [vmem:[%s13] sm:$0x1] %vm12, %v11
    %v15 = vld [vmem:[#allocation0] sm:$0x1]
    %16 = vrot.lane.b32.xlu0 %v15, 112
    %v17 = vpop.permute.xlu0 %16
    %vm18 = vcmask 64512
    %s19 = scalar_lea.vmem %s1, 2
    %20 = vst.msk [vmem:[%s19] sm:$0x1] %vm18, %v17
    %v21 = vld [vmem:[#allocation0] sm:$0x1]
    %22 = vrot.lane.b32.xlu0 %v21, 104
    %v23 = vpop.permute.xlu0 %22
    %vm24 = vcmask 64512
    %s25 = scalar_lea.vmem %s1, 3
    %26 = vst.msk [vmem:[%s25] sm:$0x1] %vm24, %v23
    %v27 = vld [vmem:[#allocation0] sm:$0x1]
    %28 = vrot.lane.b32.xlu0 %v27, 96
    %v29 = vpop.permute.xlu0 %28
    %vm30 = vcmask 64512
    %s31 = scalar_lea.vmem %s1, 4
    %32 = vst.msk [vmem:[%s31] sm:$0x1] %vm30, %v29
    %v33 = vld [vmem:[#allocation0] sm:$0x1]
    %34 = vrot.lane.b32.xlu0 %v33, 88
    %v35 = vpop.permute.xlu0 %34
    %vm36 = vcmask 64512
    %s37 = scalar_lea.vmem %s1, 5
    %38 = vst.msk [vmem:[%s37] sm:$0x1] %vm36, %v35
    %v39 = vld [vmem:[#allocation0] sm:$0x1]
    %40 = vrot.lane.b32.xlu0 %v39, 80
    %v41 = vpop.permute.xlu0 %40
    %vm42 = vcmask 64512
    %s43 = scalar_lea.vmem %s1, 6
    %44 = vst.msk [vmem:[%s43] sm:$0x1] %vm42, %v41
    %v45 = vld [vmem:[#allocation0] sm:$0x1]
    %46 = vrot.lane.b32.xlu0 %v45, 72
    %v47 = vpop.permute.xlu0 %46
    %vm48 = vcmask 64512
    %s49 = scalar_lea.vmem %s1, 7
    %50 = vst.msk [vmem:[%s49] sm:$0x1] %vm48, %v47
    %v51 = vld [vmem:[#allocation0] sm:$0x1]
    %52 = vrot.lane.b32.xlu0 %v51, 64
    %v53 = vpop.permute.xlu0 %52
    %vm54 = vcmask 64512
    %s55 = scalar_lea.vmem %s1, 8
    %56 = vst.msk [vmem:[%s55] sm:$0x1] %vm54, %v53
    %v57 = vld [vmem:[#allocation0] sm:$0x1]
    %58 = vrot.lane.b32.xlu0 %v57, 56
    %v59 = vpop.permute.xlu0 %58
    %vm60 = vcmask 64512
    %s61 = scalar_lea.vmem %s1, 9
    %62 = vst.msk [vmem:[%s61] sm:$0x1] %vm60, %v59
    %v63 = vld [vmem:[#allocation0] sm:$0x1]
    %64 = vrot.lane.b32.xlu0 %v63, 48
    %v65 = vpop.permute.xlu0 %64
    %vm66 = vcmask 64512
    %s67 = scalar_lea.vmem %s1, 10
    %68 = vst.msk [vmem:[%s67] sm:$0x1] %vm66, %v65
    %v69 = vld [vmem:[#allocation0] sm:$0x1]
    %70 = vrot.lane.b32.xlu0 %v69, 40
    %v71 = vpop.permute.xlu0 %70
    %vm72 = vcmask 64512
    %s73 = scalar_lea.vmem %s1, 11
    %74 = vst.msk [vmem:[%s73] sm:$0x1] %vm72, %v71
    %v75 = vld [vmem:[#allocation0] sm:$0x1]
    %76 = vrot.lane.b32.xlu0 %v75, 32
    %v77 = vpop.permute.xlu0 %76
    %vm78 = vcmask 64512
    %s79 = scalar_lea.vmem %s1, 12
    %80 = vst.msk [vmem:[%s79] sm:$0x1] %vm78, %v77
    %v81 = vld [vmem:[#allocation0] sm:$0x1]
    %82 = vrot.lane.b32.xlu0 %v81, 24
    %v83 = vpop.permute.xlu0 %82
    %vm84 = vcmask 64512
    %s85 = scalar_lea.vmem %s1, 13
    %86 = vst.msk [vmem:[%s85] sm:$0x1] %vm84, %v83
    %v87 = vld [vmem:[#allocation0] sm:$0x1]
    %88 = vrot.lane.b32.xlu0 %v87, 16
    %v89 = vpop.permute.xlu0 %88
    %vm90 = vcmask 64512
    %s91 = scalar_lea.vmem %s1, 14
    %92 = vst.msk [vmem:[%s91] sm:$0x1] %vm90, %v89
    %v93 = vld [vmem:[#allocation0] sm:$0x1]
    %94 = vrot.lane.b32.xlu0 %v93, 8
    %v95 = vpop.permute.xlu0 %94
    %vm96 = vcmask 64512
    %s97 = scalar_lea.vmem %s1, 15
    %98 = vst.msk [vmem:[%s97] sm:$0x1] %vm96, %v95

// kernel: upblock_forward.5
$region0: #{upblock_forward.5}
  #allocation0 [shape = 'u32[]', space=smem, size = 0x4, offset = 0x4, fixed_abs, tag = 'smem constant byte address 0x4 - core index']
  #allocation1 [shape = 'u32[144,128]{1,0:T(1,128)}', space=vmem, size = 0x12000, scoped, tag = 'internal scratch']
  %s0 = inlined_call_operand.vmem [shape: bf16[32,128], index: 0, kind: input, shape index: {}]
  %s1 = inlined_call_operand.vmem [shape: f32[1,128], index: 1, kind: input, shape index: {}]
  %s2 = inlined_call_operand.vmem [shape: f32[1,128], index: 2, kind: input, shape index: {}]
  %s3 = inlined_call_operand.vmem [shape: f32[32,128], index: 3, kind: output, shape index: {}]
  %s4 = sld [smem:[#allocation0]]
  $region45: #{upblock_forward.5} parent=0
    _
  %s6 = ssub.s32 1, %s4
  %s7 = scalar_select 0, %s6, %s4
  loop: start=0, step=1, limit=4
  $region2: #{upblock_forward.5} parent=0 // loop_pre_header
    _
  $region3: #{upblock_forward.5} parent=0 // loop_header
    %s9 = sphi 0, %s13
    %p10 = scmp.ge.s32.totalorder %s9, 4
    %s19 = sphi 0, %s21
    %s22 = sphi 0, %s19
    %s23 = sphi 0, %s22
    %s39 = sphi 0, %s23
    %s43 = sphi 0, %s43
    %s45 = sphi 0, %s43
    %s46 = sphi 0, %s45
    %s60 = sphi 0, %s46
    %s64 = sphi 0, %s64
    %s66 = sphi 0, %s64
    %s67 = sphi 0, %s66
    %s81 = sphi 0, %s67
    %s87 = sphi 0, %s89
    %s90 = sphi 0, %s87
    %s91 = sphi 0, %s90
    %s107 = sphi 0, %s91
  $region4: #{upblock_forward.5} parent=0 // loop_header_branch
    %12 = sbr.rel (%p10) target = $region8
  $region5: #{upblock_forward.5} parent=0 // loop_body
    %s14 = ssub.s32 %s9, 1
    %s15 = ssub.s32 %s9, 2
    %s16 = sadd.s32 %s9, 1
    %s17 = ssub.s32 %s9, %s16
    %p18 = scmp.eq.s32.totalorder %s17, 0
    %s20 = sadd.s32 %s19, 1
    %s21 = scalar_select %p18, %s19, %s20
    %p24 = pneg %p18
    %p25 = scmp.eq.s32.totalorder %s9, 1
    %p26 = por %p24, %p25
    %p27 = scmp.ne.s32.totalorder %s19, %s22
    %p28 = scmp.eq.s32.totalorder %s9, 0
    %p29 = por %p27, %p28
    %p30 = scmp.ne.s32.totalorder %s19, %s22
    %p31 = scmp.eq.s32.totalorder %s14, 1
    %p32 = por %p30, %p31
    %p33 = scmp.ne.s32.totalorder %s22, %s23
    %p34 = scmp.eq.s32.totalorder %s14, 0
    %p35 = por %p33, %p34
    %p36 = scmp.ne.s32.totalorder %s22, %s23
    %p37 = scmp.eq.s32.totalorder %s15, 1
    %p38 = por %p36, %p37
    %p40 = scmp.ne.s32.totalorder %s23, %s39
    %p41 = scmp.eq.s32.totalorder %s15, 0
    %p42 = por %p40, %p41
    %s44 = sadd.s32 %s43, 1
    %p47 = scmp.eq.s32.totalorder %s9, 1
    %p48 = scmp.ne.s32.totalorder %s43, %s45
    %p49 = scmp.eq.s32.totalorder %s9, 0
    %p50 = por %p48, %p49
    %p51 = scmp.ne.s32.totalorder %s43, %s45
    %p52 = scmp.eq.s32.totalorder %s14, 1
    %p53 = por %p51, %p52
    %p54 = scmp.ne.s32.totalorder %s45, %s46
    %p55 = scmp.eq.s32.totalorder %s14, 0
    %p56 = por %p54, %p55
    %p57 = scmp.ne.s32.totalorder %s45, %s46
    %p58 = scmp.eq.s32.totalorder %s15, 1
    %p59 = por %p57, %p58
    %p61 = scmp.ne.s32.totalorder %s46, %s60
    %p62 = scmp.eq.s32.totalorder %s15, 0
    %p63 = por %p61, %p62
    %s65 = sadd.s32 %s64, 1
    %p68 = scmp.eq.s32.totalorder %s9, 1
    %p69 = scmp.ne.s32.totalorder %s64, %s66
    %p70 = scmp.eq.s32.totalorder %s9, 0
    %p71 = por %p69, %p70
    %p72 = scmp.ne.s32.totalorder %s64, %s66
    %p73 = scmp.eq.s32.totalorder %s14, 1
    %p74 = por %p72, %p73
    %p75 = scmp.ne.s32.totalorder %s66, %s67
    %p76 = scmp.eq.s32.totalorder %s14, 0
    %p77 = por %p75, %p76
    %p78 = scmp.ne.s32.totalorder %s66, %s67
    %p79 = scmp.eq.s32.totalorder %s15, 1
    %p80 = por %p78, %p79
    %p82 = scmp.ne.s32.totalorder %s67, %s81
    %p83 = scmp.eq.s32.totalorder %s15, 0
    %p84 = por %p82, %p83
    %s85 = ssub.s32 %s9, %s16
    %p86 = scmp.eq.s32.totalorder %s85, 0
    %s88 = sadd.s32 %s87, 1
    %s89 = scalar_select %p86, %s87, %s88
    %p92 = pneg %p86
    %p93 = scmp.eq.s32.totalorder %s9, 1
    %p94 = por %p92, %p93
    %p95 = scmp.ne.s32.totalorder %s87, %s90
    %p96 = scmp.eq.s32.totalorder %s9, 0
    %p97 = por %p95, %p96
    %p98 = scmp.ne.s32.totalorder %s87, %s90
    %p99 = scmp.eq.s32.totalorder %s14, 1
    %p100 = por %p98, %p99
    %p101 = scmp.ne.s32.totalorder %s90, %s91
    %p102 = scmp.eq.s32.totalorder %s14, 0
    %p103 = por %p101, %p102
    %p104 = scmp.ne.s32.totalorder %s90, %s91
    %p105 = scmp.eq.s32.totalorder %s15, 1
    %p106 = por %p104, %p105
    %p108 = scmp.ne.s32.totalorder %s91, %s107
    %p109 = scmp.eq.s32.totalorder %s15, 0
    %p110 = por %p108, %p109
    %p111 = scmp.le.s32.totalorder 1, %s9
    %p112 = scmp.lt.s32.totalorder %s9, 3
    %p113 = pnand %p111, %p112
    %p114 = pneg %p113
    // Predicated region
    $region9: #{upblock_forward.5} parent=5 // pred_check
      _
    $region10: #{upblock_forward.5} parent=5 // pred_check_branch
      %116 = sbr.rel (%p113) target = $region12
    $region11: #{upblock_forward.5} parent=5 // pred_region
      %s117 = ssub.s32 %s9, 1
      // Predicated region
      $region13: #{upblock_forward.5} parent=11 // pred_check
        %p118 = pneg %p56
      $region14: #{upblock_forward.5} parent=11 // pred_check_branch
        %120 = sbr.rel (%p118) target = $region16
      $region15: #{upblock_forward.5} parent=11 // pred_region
        _
      $region16: #{upblock_forward.5} parent=11 // pred_fallthru
        _
      // Predicated region
      $region17: #{upblock_forward.5} parent=11 // pred_check
        %p121 = pneg %p77
      $region18: #{upblock_forward.5} parent=11 // pred_check_branch
        %123 = sbr.rel (%p121) target = $region20
      $region19: #{upblock_forward.5} parent=11 // pred_region
        _
      $region20: #{upblock_forward.5} parent=11 // pred_fallthru
        _
    $region12: #{upblock_forward.5} parent=5 // pred_fallthru
      _
    %p124 = scmp.lt.s32.totalorder %s9, 2
    // Predicated region
    $region21: #{upblock_forward.5} parent=5 // pred_check
      %p125 = pneg %p124
    $region22: #{upblock_forward.5} parent=5 // pred_check_branch
      %127 = sbr.rel (%p125) target = $region24
    $region23: #{upblock_forward.5} parent=5 // pred_region
      // Predicated region
      $region25: #{upblock_forward.5} parent=23 // pred_check
        %p128 = pneg %p29
      $region26: #{upblock_forward.5} parent=23 // pred_check_branch
        %130 = sbr.rel (%p128) target = $region28
      $region27: #{upblock_forward.5} parent=23 // pred_region
        %s131 = smul.u32 2, %s9
        %p132 = scmp.lt.s32.totalorder %s131, 3
        %s133 = scalar_select %p132, %s131, 3
        %s134 = smul.addr %s133, 4
        %s135 = scalar_lea.vmem %s0, %s134
        %s136 = smul.u32 2, %s9
      $region28: #{upblock_forward.5} parent=23 // pred_fallthru
        _
    $region24: #{upblock_forward.5} parent=5 // pred_fallthru
      _
    %p137 = scmp.le.s32.totalorder 1, %s9
    %p138 = scmp.lt.s32.totalorder %s9, 3
    %p139 = pnand %p137, %p138
    %p140 = pneg %p139
    // Predicated region
    $region29: #{upblock_forward.5} parent=5 // pred_check
      _
    $region30: #{upblock_forward.5} parent=5 // pred_check_branch
      %142 = sbr.rel (%p139) target = $region32
    $region31: #{upblock_forward.5} parent=5 // pred_region
      %s143 = ssub.s32 %s9, 1
      %s144 = smul.u32 2, %s14
      %p145 = scmp.lt.s32.totalorder %s144, 3
      %s146 = scalar_select %p145, %s144, 3
      %s147 = smul.addr %s146, 4
      %s148 = scalar_lea.vmem %s0, %s147
      %p149 = pneg %p35
      %p150 = pneg %p32
      %p151 = pneg %p56
      %p152 = pneg %p53
      %p153 = pneg %p77
      %p154 = pneg %p74
      %p155 = pneg %p103
      %p156 = pneg %p100
      %s157 = smul.u32 2, %s14
      %p158 = scmp.lt.s32.totalorder %s157, 3
      %s159 = scalar_select %p158, %s157, 3
      %s160 = smul.addr %s159, 8
      %s161 = scalar_lea.vmem %s3, %s160
      %s162 = smul.u32 2, %s14
      %p163 = scmp.lt.s32.totalorder %s162, 3
      %s164 = scalar_select %p163, %s162, 3
      %s165 = smul.addr %s164, 4
      %s166 = scalar_lea.vmem %s0, %s165
      %s167 = smul.u32 2, %s14
      %s168 = smul.u32 2, %s14
      %p169 = scmp.lt.s32.totalorder %s168, 3
      %s170 = scalar_select %p169, %s168, 3
      %s171 = smul.addr %s170, 8
      %s172 = scalar_lea.vmem %s3, %s171
      %s173 = smul.u32 2, %s14
      %v174 = vld [vmem:[%s166] sm:$0xf]
      %v175 = vld [vmem:[%s166 + $0x4] sm:$0xf]
      %v176 = vld [vmem:[%s1] sm:$0x1]
      %v177 = vunpack.c.l.bf16 %v174
      %v178 = vunpack.c.l.bf16 %v175
      %v180 = vlaneseq
      %v181 = vshrl.u32 %v180, 7
      %v182 = vsub.s32 0, %v181
      %v183 = vrot.slane %v176, %v182
      %v185 = vmul.f32 %v177, %v183
      %v186 = vmul.f32 %v178, %v183
      %v187 = vld [vmem:[%s2] sm:$0x1]
      %v189 = vlaneseq
      %v190 = vshrl.u32 %v189, 7
      %v191 = vsub.s32 0, %v190
      %v192 = vrot.slane %v187, %v191
      %v194 = vadd.f32 %v185, %v192
      %v195 = vadd.f32 %v186, %v192
      %v196 = vmax.f32 %v194, 0.0
      %v197 = vmax.f32 %v195, 0.0
      %198 = vst [vmem:[%s172] sm:$0xff] %v196
      %199 = vst [vmem:[%s172 + $0x8] sm:$0xff] %v197
      %s200 = smul.u32 2, %s14
      %p201 = scmp.lt.s32.totalorder %s200, 3
      %s202 = scalar_select %p201, %s200, 3
      %s203 = smul.addr %s202, 8
      %s204 = scalar_lea.vmem %s3, %s203
      // Predicated region
      $region33: #{upblock_forward.5} parent=31 // pred_check
        %p205 = pneg %p100
      $region34: #{upblock_forward.5} parent=31 // pred_check_branch
        %207 = sbr.rel (%p205) target = $region36
      $region35: #{upblock_forward.5} parent=31 // pred_region
        %s208 = smul.u32 2, %s14
      $region36: #{upblock_forward.5} parent=31 // pred_fallthru
        _
    $region32: #{upblock_forward.5} parent=5 // pred_fallthru
      _
    %p209 = scmp.le.s32.totalorder 2, %s9
    // Predicated region
    $region37: #{upblock_forward.5} parent=5 // pred_check
      %p210 = pneg %p209
    $region38: #{upblock_forward.5} parent=5 // pred_check_branch
      %212 = sbr.rel (%p210) target = $region40
    $region39: #{upblock_forward.5} parent=5 // pred_region
      %s213 = ssub.s32 %s9, 2
      // Predicated region
      $region41: #{upblock_forward.5} parent=39 // pred_check
        %p214 = pneg %p106
      $region42: #{upblock_forward.5} parent=39 // pred_check_branch
        %216 = sbr.rel (%p214) target = $region44
      $region43: #{upblock_forward.5} parent=39 // pred_region
        %s217 = smul.u32 2, %s15
        %p218 = scmp.lt.s32.totalorder %s217, 3
        %s219 = scalar_select %p218, %s217, 3
        %s220 = smul.addr %s219, 8
        %s221 = scalar_lea.vmem %s3, %s220
      $region44: #{upblock_forward.5} parent=39 // pred_fallthru
        _
    $region40: #{upblock_forward.5} parent=5 // pred_fallthru
      _
  $region6: #{upblock_forward.5} parent=0 // loop_footer
    %s13 = sadd.s32 1, %s9
  $region7: #{upblock_forward.5} parent=0 // loop_footer_branch
    %8 = sbr.rel target = $region3
  $region8: #{upblock_forward.5} parent=0 // loop_exit
    _

// kernel: upblock_forward.4
$region0: #{upblock_forward.4}
  #allocation0 [shape = 'u32[]', space=smem, size = 0x4, offset = 0x4, fixed_abs, tag = 'smem constant byte address 0x4 - core index']
  #allocation1 [shape = 'u32[144,128]{1,0:T(1,128)}', space=vmem, size = 0x12000, scoped, tag = 'internal scratch']
  #allocation2 [shape = 'bf16[40,128]{1,0:T(8,128)(2,1)}', space=vmem, size = 0x2800, scoped, tag = 'scratch operand']
  %s0 = inlined_call_operand.vmem [shape: bf16[32,128], index: 0, kind: input, shape index: {}]
  %s1 = inlined_call_operand.vmem [shape: f32[1,128], index: 1, kind: input, shape index: {}]
  %s2 = inlined_call_operand.vmem [shape: f32[1,128], index: 2, kind: input, shape index: {}]
  %s3 = inlined_call_operand.vmem [shape: bf16[3,128,128], index: 3, kind: input, shape index: {}]
  %s4 = inlined_call_operand.vmem [shape: f32[1,128], index: 4, kind: input, shape index: {}]
  %s5 = inlined_call_operand.vmem [shape: bf16[32,128], index: 5, kind: output, shape index: {0}]
  %s6 = inlined_call_operand.vmem [shape: f32[1,8,128], index: 6, kind: output, shape index: {1}]
  %s7 = inlined_call_operand.vmem [shape: f32[1,8,128], index: 7, kind: output, shape index: {2}]
  %8 = xla_tuple %s5, %s6, %s7
  %s9 = sld [smem:[#allocation0]]
  $region46: #{upblock_forward.4} parent=0
    _
  %s11 = ssub.s32 1, %s9
  %s12 = scalar_select 0, %s11, %s9
  // Predicated region
  $region2: #{upblock_forward.4} parent=0 // pred_check
    _
  $region3: #{upblock_forward.4} parent=0 // pred_check_branch
    %14 = sbr.rel (0) target = $region5
  $region4: #{upblock_forward.4} parent=0 // pred_region
    _
  $region5: #{upblock_forward.4} parent=0 // pred_fallthru
    _
  // Predicated region
  $region6: #{upblock_forward.4} parent=0 // pred_check
    _
  $region7: #{upblock_forward.4} parent=0 // pred_check_branch
    %16 = sbr.rel (0) target = $region9
  $region8: #{upblock_forward.4} parent=0 // pred_region
    _
  $region9: #{upblock_forward.4} parent=0 // pred_fallthru
    _
  // Predicated region
  $region10: #{upblock_forward.4} parent=0 // pred_check
    _
  $region11: #{upblock_forward.4} parent=0 // pred_check_branch
    %18 = sbr.rel (0) target = $region13
  $region12: #{upblock_forward.4} parent=0 // pred_region
    _
  $region13: #{upblock_forward.4} parent=0 // pred_fallthru
    _
  // Predicated region
  $region14: #{upblock_forward.4} parent=0 // pred_check
    _
  $region15: #{upblock_forward.4} parent=0 // pred_check_branch
    %20 = sbr.rel (0) target = $region17
  $region16: #{upblock_forward.4} parent=0 // pred_region
    _
  $region17: #{upblock_forward.4} parent=0 // pred_fallthru
    _
  // Predicated region
  $region18: #{upblock_forward.4} parent=0 // pred_check
    _
  $region19: #{upblock_forward.4} parent=0 // pred_check_branch
    %22 = sbr.rel (0) target = $region21
  $region20: #{upblock_forward.4} parent=0 // pred_region
    _
  $region21: #{upblock_forward.4} parent=0 // pred_fallthru
    _
  %v24 = vld [vmem:[%s0] sm:$0xf]
  %v25 = vld [vmem:[%s0 + $0x4] sm:$0xf]
  %v26 = vld [vmem:[%s0 + $0x8] sm:$0xf]
  %v27 = vld [vmem:[%s0 + $0xc] sm:$0xf]
  %v28 = vld [vmem:[%s1] sm:$0x1]
  %v29 = vunpack.c.l.bf16 %v24
  %v30 = vunpack.c.l.bf16 %v25
  %v31 = vunpack.c.l.bf16 %v26
  %v32 = vunpack.c.l.bf16 %v27
  %v34 = vlaneseq
  %v35 = vshrl.u32 %v34, 7
  %v36 = vsub.s32 0, %v35
  %v37 = vrot.slane %v28, %v36
  %v39 = vmul.f32 %v29, %v37
  %v40 = vmul.f32 %v30, %v37
  %v41 = vmul.f32 %v31, %v37
  %v42 = vmul.f32 %v32, %v37
  %v43 = vld [vmem:[%s2] sm:$0x1]
  %v45 = vlaneseq
  %v46 = vshrl.u32 %v45, 7
  %v47 = vsub.s32 0, %v46
  %v48 = vrot.slane %v43, %v47
  %v50 = vadd.f32 %v39, %v48
  %v51 = vadd.f32 %v40, %v48
  %v52 = vadd.f32 %v41, %v48
  %v53 = vadd.f32 %v42, %v48
  %v54 = vmax.f32 %v50, 0.0
  %v55 = vmax.f32 %v51, 0.0
  %v56 = vmax.f32 %v52, 0.0
  %v57 = vmax.f32 %v53, 0.0
  %v58 = vpack.c.bf16 %v55, %v54
  %v59 = vpack.c.bf16 %v57, %v56
  %60 = vst [vmem:[#allocation2] sm:$0x1] 0
  %61 = vst [vmem:[#allocation2 + $0x8] sm:$0x2] 0
  %v63 = vunpack.c.l.b16 %v58
  %v64 = vunpack.c.h.b16 %v58
  %v65 = vpack.c.b16 %v63, %v63
  %v66 = vpack.c.b16 %v64, %v64
  %vm67 = vcmask 1040384
  %vm68 = vcmask 1044484
  %vm69 = vmor %vm67, %vm68
  %v70 = vrot.slane %v65, 7
  %v71 = vrot.slane %v70, 4
  %v72 = vrot.slane %v66, 7
  %v73 = vsel %vm69, %v71, %v72
  %v74 = vrot.slane %v72, 4
  %78 = vst [vmem:[#allocation2] sm:$0xe] %v70
  %79 = vst [vmem:[#allocation2 + $0x4] sm:$0xf] %v73
  %80 = vst [vmem:[#allocation2 + $0x8] sm:$0x1] %v74
  %81 = vst [vmem:[#allocation2 + $0x8] sm:$0x4] 0
  %82 = vst [vmem:[#allocation2 + $0x10] sm:$0x8] 0
  %v84 = vunpack.c.l.b16 %v59
  %v85 = vunpack.c.h.b16 %v59
  %v86 = vpack.c.b16 %v84, %v84
  %v87 = vpack.c.b16 %v85, %v85
  %vm88 = vcmask 1042432
  %vm89 = vcmask 1046532
  %vm90 = vmor %vm88, %vm89
  %v91 = vrot.slane %v86, 5
  %v92 = vrot.slane %v91, 4
  %v93 = vrot.slane %v87, 5
  %v94 = vsel %vm90, %v92, %v93
  %v95 = vrot.slane %v93, 4
  %99 = vst [vmem:[#allocation2 + $0x8] sm:$0x8] %v91
  %100 = vst [vmem:[#allocation2 + $0xc] sm:$0xf] %v94
  %101 = vst [vmem:[#allocation2 + $0x10] sm:$0x7] %v95
  %v102 = vld [vmem:[#allocation2] sm:$0xf]
  %v103 = vld [vmem:[#allocation2 + $0x4] sm:$0xf]
  %v104 = vld [vmem:[#allocation2 + $0x8] sm:$0xf]
  %v105 = vld [vmem:[#allocation2 + $0xc] sm:$0xf]
  %v106 = vld [vmem:[#allocation2 + $0x10] sm:$0x7]
  %v107 = vld [vmem:[%s3] sm:$0xf]
  %v108 = vld [vmem:[%s3 + $0x4] sm:$0xf]
  %v109 = vld [vmem:[%s3 + $0x8] sm:$0xf]
  %v110 = vld [vmem:[%s3 + $0xc] sm:$0xf]
  %v111 = vld [vmem:[%s3 + $0x10] sm:$0xf]
  %v112 = vld [vmem:[%s3 + $0x14] sm:$0xf]
  %v113 = vld [vmem:[%s3 + $0x18] sm:$0xf]
  %v114 = vld [vmem:[%s3 + $0x1c] sm:$0xf]
  %v115 = vld [vmem:[%s3 + $0x20] sm:$0xf]
  %v116 = vld [vmem:[%s3 + $0x24] sm:$0xf]
  %v117 = vld [vmem:[%s3 + $0x28] sm:$0xf]
  %v118 = vld [vmem:[%s3 + $0x2c] sm:$0xf]
  %v119 = vld [vmem:[%s3 + $0x30] sm:$0xf]
  %v120 = vld [vmem:[%s3 + $0x34] sm:$0xf]
  %v121 = vld [vmem:[%s3 + $0x38] sm:$0xf]
  %v122 = vld [vmem:[%s3 + $0x3c] sm:$0xf]
  %v123 = vld [vmem:[#allocation2 + $0x10] sm:$0xf]
  %s124 = scalar_lea.vmem %s3, 64
  %v125 = vld [vmem:[%s124] sm:$0xf]
  %v126 = vld [vmem:[%s124 + $0x4] sm:$0xf]
  %v127 = vld [vmem:[%s124 + $0x8] sm:$0xf]
  %v128 = vld [vmem:[%s124 + $0xc] sm:$0xf]
  %v129 = vld [vmem:[%s124 + $0x10] sm:$0xf]
  %v130 = vld [vmem:[%s124 + $0x14] sm:$0xf]
  %v131 = vld [vmem:[%s124 + $0x18] sm:$0xf]
  %v132 = vld [vmem:[%s124 + $0x1c] sm:$0xf]
  %v133 = vld [vmem:[%s124 + $0x20] sm:$0xf]
  %v134 = vld [vmem:[%s124 + $0x24] sm:$0xf]
  %v135 = vld [vmem:[%s124 + $0x28] sm:$0xf]
  %v136 = vld [vmem:[%s124 + $0x2c] sm:$0xf]
  %v137 = vld [vmem:[%s124 + $0x30] sm:$0xf]
  %v138 = vld [vmem:[%s124 + $0x34] sm:$0xf]
  %v139 = vld [vmem:[%s124 + $0x38] sm:$0xf]
  %v140 = vld [vmem:[%s124 + $0x3c] sm:$0xf]
  %v146 = vunpack.c.l.b16 %v102
  %v147 = vunpack.c.l.b16 %v103
  %v148 = vunpack.c.l.b16 %v104
  %v149 = vunpack.c.l.b16 %v105
  %v150 = vunpack.c.l.b16 %v123
  %v151 = vpack.c.b16 %v147, %v146
  %v152 = vpack.c.b16 %v149, %v148
  %v153 = vpack.c.b16 %v150, %v150
  %vm154 = vsmask.f32 7424
  %v156 = vshrl.u32 %v151, 16
  %v158 = vshll.u32 %v151, 16
  %v160 = vrot.slane %v158, 1
  %v161 = vor.u32 %v156, %v160
  %v163 = vshll.u32 %v152, 16
  %v165 = vrot.slane %v163, 1
  %v166 = vsel %vm154, %v161, %v165
  %v167 = vshrl.u32 %v152, 16
  %v169 = vor.u32 %v167, %v165
  %v171 = vshll.u32 %v153, 16
  %v173 = vrot.slane %v171, 1
  %v174 = vsel %vm154, %v169, %v173
  %v175 = vshrl.u32 %v153, 16
  %v177 = vor.u32 %v175, %v173
  %v197 = vunpack.c.l.b16 %v125
  %v198 = vunpack.c.l.b16 %v126
  %v199 = vunpack.c.l.b16 %v127
  %v200 = vunpack.c.l.b16 %v128
  %v201 = vunpack.c.l.b16 %v129
  %v202 = vunpack.c.l.b16 %v130
  %v203 = vunpack.c.l.b16 %v131
  %v204 = vunpack.c.l.b16 %v132
  %v205 = vunpack.c.l.b16 %v133
  %v206 = vunpack.c.l.b16 %v134
  %v207 = vunpack.c.l.b16 %v135
  %v208 = vunpack.c.l.b16 %v136
  %v209 = vunpack.c.l.b16 %v137
  %v210 = vunpack.c.l.b16 %v138
  %v211 = vunpack.c.l.b16 %v139
  %v212 = vunpack.c.l.b16 %v140
  %v213 = vpack.c.b16 %v198, %v197
  %v214 = vpack.c.b16 %v200, %v199
  %v215 = vpack.c.b16 %v202, %v201
  %v216 = vpack.c.b16 %v204, %v203
  %v217 = vpack.c.b16 %v206, %v205
  %v218 = vpack.c.b16 %v208, %v207
  %v219 = vpack.c.b16 %v210, %v209
  %v220 = vpack.c.b16 %v212, %v211
  %229 = vmatprep.subr.bf16.mxu0 0
  %230 = vmatpush1.bf16.msra.mxu0 %v213
  %231 = vmatprep.subr.bf16.mxu0 0
  %232 = vmatpush1.bf16.msra.mxu0 %v214
  %233 = vmatprep.subr.bf16.mxu0 0
  %234 = vmatpush1.bf16.msra.mxu0 %v215
  %235 = vmatprep.subr.bf16.mxu0 0
  %236 = vmatpush1.bf16.msra.mxu0 %v216
  %237 = vmatprep.subr.bf16.mxu0 0
  %238 = vmatpush1.bf16.msra.mxu0 %v217
  %239 = vmatprep.subr.bf16.mxu0 0
  %240 = vmatpush1.bf16.msra.mxu0 %v218
  %241 = vmatprep.subr.bf16.mxu0 0
  %242 = vmatpush1.bf16.msra.mxu0 %v219
  %243 = vmatprep.subr.bf16.mxu0 0
  %244 = vmatpush1.bf16.msra.mxu0 %v220
  %245 = vmatprep.subr.bf16.mxu0 0
  %246 = vmatpush1.bf16.msra.mxu0 0
  %247 = vmatprep.subr.bf16.mxu0 0
  %248 = vmatpush1.bf16.msra.mxu0 0
  %249 = vmatprep.subr.bf16.mxu0 0
  %250 = vmatpush1.bf16.msra.mxu0 0
  %251 = vmatprep.subr.bf16.mxu0 0
  %252 = vmatpush1.bf16.msra.mxu0 0
  %253 = vmatprep.subr.bf16.mxu0 0
  %254 = vmatpush1.bf16.msra.mxu0 0
  %255 = vmatprep.subr.bf16.mxu0 0
  %256 = vmatpush1.bf16.msra.mxu0 0
  %257 = vmatprep.subr.bf16.mxu0 0
  %258 = vmatpush1.bf16.msra.mxu0 0
  %259 = vmatprep.subr.bf16.mxu0 0
  %260 = vmatpush1.bf16.msra.mxu0 0
  %261 = vmatprep.mubr.bf16.mxu0 0
  %262 = vmatmul.mubr.bf16.gmra.mrb[0].mxu0 %v166
  %v263 = vpop.f32.mrb[0].mxu0
  %v264 = vadd.f32 0.0, %v263
  %v265 = vpop.f32.mrb[0].mxu0
  %v266 = vpop.f32.mrb[0].mxu0
  %v267 = vadd.f32 0.0, %v266
  %v268 = vpop.f32.mrb[0].mxu0
  %269 = vmatprep.mubr.bf16.mxu0 0
  %270 = vmatmul.mubr.bf16.gmra.mrb[0].mxu0 %v174
  %v271 = vpop.f32.mrb[0].mxu0
  %v272 = vadd.f32 0.0, %v271
  %v273 = vpop.f32.mrb[0].mxu0
  %v274 = vpop.f32.mrb[0].mxu0
  %v275 = vadd.f32 0.0, %v274
  %v276 = vpop.f32.mrb[0].mxu0
  %277 = vmatprep.mubr.bf16.mxu0 0
  %278 = vmatmul.mubr.bf16.gmra.mrb[0].mxu0 %v177
  %v279 = vpop.f32.mrb[0].mxu0
  %v280 = vadd.f32 0.0, %v279
  %v281 = vpop.f32.mrb[0].mxu0
  %v282 = vpop.f32.mrb[0].mxu0
  %v283 = vpop.f32.mrb[0].mxu0
  %284 = vdwg.mxu0
  %v286 = vunpack.c.l.b16 %v106
  %v287 = vpack.c.b16 %v286, %v286
  %v307 = vunpack.c.l.b16 %v107
  %v308 = vunpack.c.l.b16 %v108
  %v309 = vunpack.c.l.b16 %v109
  %v310 = vunpack.c.l.b16 %v110
  %v311 = vunpack.c.l.b16 %v111
  %v312 = vunpack.c.l.b16 %v112
  %v313 = vunpack.c.l.b16 %v113
  %v314 = vunpack.c.l.b16 %v114
  %v315 = vunpack.c.l.b16 %v115
  %v316 = vunpack.c.l.b16 %v116
  %v317 = vunpack.c.l.b16 %v117
  %v318 = vunpack.c.l.b16 %v118
  %v319 = vunpack.c.l.b16 %v119
  %v320 = vunpack.c.l.b16 %v120
  %v321 = vunpack.c.l.b16 %v121
  %v322 = vunpack.c.l.b16 %v122
  %v323 = vpack.c.b16 %v308, %v307
  %v324 = vpack.c.b16 %v310, %v309
  %v325 = vpack.c.b16 %v312, %v311
  %v326 = vpack.c.b16 %v314, %v313
  %v327 = vpack.c.b16 %v316, %v315
  %v328 = vpack.c.b16 %v318, %v317
  %v329 = vpack.c.b16 %v320, %v319
  %v330 = vpack.c.b16 %v322, %v321
  %339 = vmatprep.subr.bf16.mxu0 0
  %340 = vmatpush1.bf16.msra.mxu0 %v323
  %341 = vmatprep.subr.bf16.mxu0 0
  %342 = vmatpush1.bf16.msra.mxu0 %v324
  %343 = vmatprep.subr.bf16.mxu0 0
  %344 = vmatpush1.bf16.msra.mxu0 %v325
  %345 = vmatprep.subr.bf16.mxu0 0
  %346 = vmatpush1.bf16.msra.mxu0 %v326
  %347 = vmatprep.subr.bf16.mxu0 0
  %348 = vmatpush1.bf16.msra.mxu0 %v327
  %349 = vmatprep.subr.bf16.mxu0 0
  %350 = vmatpush1.bf16.msra.mxu0 %v328
  %351 = vmatprep.subr.bf16.mxu0 0
  %352 = vmatpush1.bf16.msra.mxu0 %v329
  %353 = vmatprep.subr.bf16.mxu0 0
  %354 = vmatpush1.bf16.msra.mxu0 %v330
  %355 = vmatprep.subr.bf16.mxu0 0
  %356 = vmatpush1.bf16.msra.mxu0 0
  %357 = vmatprep.subr.bf16.mxu0 0
  %358 = vmatpush1.bf16.msra.mxu0 0
  %359 = vmatprep.subr.bf16.mxu0 0
  %360 = vmatpush1.bf16.msra.mxu0 0
  %361 = vmatprep.subr.bf16.mxu0 0
  %362 = vmatpush1.bf16.msra.mxu0 0
  %363 = vmatprep.subr.bf16.mxu0 0
  %364 = vmatpush1.bf16.msra.mxu0 0
  %365 = vmatprep.subr.bf16.mxu0 0
  %366 = vmatpush1.bf16.msra.mxu0 0
  %367 = vmatprep.subr.bf16.mxu0 0
  %368 = vmatpush1.bf16.msra.mxu0 0
  %369 = vmatprep.subr.bf16.mxu0 0
  %370 = vmatpush1.bf16.msra.mxu0 0
  %371 = vmatprep.mubr.bf16.mxu0 0
  %372 = vmatmul.mubr.bf16.gmra.mrb[0].mxu0 %v151
  %v373 = vpop.f32.mrb[0].mxu0
  %v374 = vadd.f32 %v264, %v373
  %v375 = vpop.f32.mrb[0].mxu0
  %v376 = vpop.f32.mrb[0].mxu0
  %v377 = vadd.f32 %v267, %v376
  %v378 = vpop.f32.mrb[0].mxu0
  %379 = vmatprep.mubr.bf16.mxu0 0
  %380 = vmatmul.mubr.bf16.gmra.mrb[0].mxu0 %v152
  %v381 = vpop.f32.mrb[0].mxu0
  %v382 = vadd.f32 %v272, %v381
  %v383 = vpop.f32.mrb[0].mxu0
  %v384 = vpop.f32.mrb[0].mxu0
  %v385 = vadd.f32 %v275, %v384
  %v386 = vpop.f32.mrb[0].mxu0
  %387 = vmatprep.mubr.bf16.mxu0 0
  %388 = vmatmul.mubr.bf16.gmra.mrb[0].mxu0 %v287
  %v389 = vpop.f32.mrb[0].mxu0
  %v390 = vadd.f32 %v280, %v389
  %v391 = vpop.f32.mrb[0].mxu0
  %v392 = vpop.f32.mrb[0].mxu0
  %v393 = vpop.f32.mrb[0].mxu0
  %394 = vdwg.mxu0
  %v395 = vld [vmem:[#allocation2] sm:$0xe]
  %s396 = scalar_lea.vmem %s3, 128
  %v397 = vld [vmem:[%s396] sm:$0xf]
  %v398 = vld [vmem:[%s396 + $0x4] sm:$0xf]
  %v399 = vld [vmem:[%s396 + $0x8] sm:$0xf]
  %v400 = vld [vmem:[%s396 + $0xc] sm:$0xf]
  %v401 = vld [vmem:[%s396 + $0x10] sm:$0xf]
  %v402 = vld [vmem:[%s396 + $0x14] sm:$0xf]
  %v403 = vld [vmem:[%s396 + $0x18] sm:$0xf]
  %v404 = vld [vmem:[%s396 + $0x1c] sm:$0xf]
  %v405 = vld [vmem:[%s396 + $0x20] sm:$0xf]
  %v406 = vld [vmem:[%s396 + $0x24] sm:$0xf]
  %v407 = vld [vmem:[%s396 + $0x28] sm:$0xf]
  %v408 = vld [vmem:[%s396 + $0x2c] sm:$0xf]
  %v409 = vld [vmem:[%s396 + $0x30] sm:$0xf]
  %v410 = vld [vmem:[%s396 + $0x34] sm:$0xf]
  %v411 = vld [vmem:[%s396 + $0x38] sm:$0xf]
  %v412 = vld [vmem:[%s396 + $0x3c] sm:$0xf]
  %v414 = vunpack.c.l.b16 %v395
  %v415 = vpack.c.b16 %v147, %v414
  %vm416 = vcmask 1046528
  %v417 = vrot.slane %v415, 1
  %v418 = vrot.slane %v152, 1
  %v419 = vsel %vm416, %v417, %v418
  %v420 = vrot.slane %v153, 1
  %v421 = vsel %vm416, %v418, %v420
  %v441 = vunpack.c.l.b16 %v397
  %v442 = vunpack.c.l.b16 %v398
  %v443 = vunpack.c.l.b16 %v399
  %v444 = vunpack.c.l.b16 %v400
  %v445 = vunpack.c.l.b16 %v401
  %v446 = vunpack.c.l.b16 %v402
  %v447 = vunpack.c.l.b16 %v403
  %v448 = vunpack.c.l.b16 %v404
  %v449 = vunpack.c.l.b16 %v405
  %v450 = vunpack.c.l.b16 %v406
  %v451 = vunpack.c.l.b16 %v407
  %v452 = vunpack.c.l.b16 %v408
  %v453 = vunpack.c.l.b16 %v409
  %v454 = vunpack.c.l.b16 %v410
  %v455 = vunpack.c.l.b16 %v411
  %v456 = vunpack.c.l.b16 %v412
  %v457 = vpack.c.b16 %v442, %v441
  %v458 = vpack.c.b16 %v444, %v443
  %v459 = vpack.c.b16 %v446, %v445
  %v460 = vpack.c.b16 %v448, %v447
  %v461 = vpack.c.b16 %v450, %v449
  %v462 = vpack.c.b16 %v452, %v451
  %v463 = vpack.c.b16 %v454, %v453
  %v464 = vpack.c.b16 %v456, %v455
  %473 = vmatprep.subr.bf16.mxu0 0
  %474 = vmatpush1.bf16.msra.mxu0 %v457
  %475 = vmatprep.subr.bf16.mxu0 0
  %476 = vmatpush1.bf16.msra.mxu0 %v458
  %477 = vmatprep.subr.bf16.mxu0 0
  %478 = vmatpush1.bf16.msra.mxu0 %v459
  %479 = vmatprep.subr.bf16.mxu0 0
  %480 = vmatpush1.bf16.msra.mxu0 %v460
  %481 = vmatprep.subr.bf16.mxu0 0
  %482 = vmatpush1.bf16.msra.mxu0 %v461
  %483 = vmatprep.subr.bf16.mxu0 0
  %484 = vmatpush1.bf16.msra.mxu0 %v462
  %485 = vmatprep.subr.bf16.mxu0 0
  %486 = vmatpush1.bf16.msra.mxu0 %v463
  %487 = vmatprep.subr.bf16.mxu0 0
  %488 = vmatpush1.bf16.msra.mxu0 %v464
  %489 = vmatprep.subr.bf16.mxu0 0
  %490 = vmatpush1.bf16.msra.mxu0 0
  %491 = vmatprep.subr.bf16.mxu0 0
  %492 = vmatpush1.bf16.msra.mxu0 0
  %493 = vmatprep.subr.bf16.mxu0 0
  %494 = vmatpush1.bf16.msra.mxu0 0
  %495 = vmatprep.subr.bf16.mxu0 0
  %496 = vmatpush1.bf16.msra.mxu0 0
  %497 = vmatprep.subr.bf16.mxu0 0
  %498 = vmatpush1.bf16.msra.mxu0 0
  %499 = vmatprep.subr.bf16.mxu0 0
  %500 = vmatpush1.bf16.msra.mxu0 0
  %501 = vmatprep.subr.bf16.mxu0 0
  %502 = vmatpush1.bf16.msra.mxu0 0
  %503 = vmatprep.subr.bf16.mxu0 0
  %504 = vmatpush1.bf16.msra.mxu0 0
  %505 = vmatprep.mubr.bf16.mxu0 0
  %506 = vmatmul.mubr.bf16.gmra.mrb[0].mxu0 %v419
  %v507 = vpop.f32.mrb[0].mxu0
  %v508 = vadd.f32 0.0, %v507
  %v509 = vpop.f32.mrb[0].mxu0
  %v510 = vpop.f32.mrb[0].mxu0
  %v511 = vadd.f32 0.0, %v510
  %v512 = vpop.f32.mrb[0].mxu0
  %513 = vmatprep.mubr.bf16.mxu0 0
  %514 = vmatmul.mubr.bf16.gmra.mrb[0].mxu0 %v421
  %v515 = vpop.f32.mrb[0].mxu0
  %v516 = vadd.f32 0.0, %v515
  %v517 = vpop.f32.mrb[0].mxu0
  %v518 = vpop.f32.mrb[0].mxu0
  %v519 = vadd.f32 0.0, %v518
  %v520 = vpop.f32.mrb[0].mxu0
  %521 = vmatprep.mubr.bf16.mxu0 0
  %522 = vmatmul.mubr.bf16.gmra.mrb[0].mxu0 %v420
  %v523 = vpop.f32.mrb[0].mxu0
  %v524 = vadd.f32 0.0, %v523
  %v525 = vpop.f32.mrb[0].mxu0
  %v526 = vpop.f32.mrb[0].mxu0
  %v527 = vpop.f32.mrb[0].mxu0
  %528 = vdwg.mxu0
  %v529 = vadd.f32 %v374, %v508
  %v530 = vadd.f32 %v377, %v511
  %v531 = vadd.f32 %v382, %v516
  %v532 = vadd.f32 %v385, %v519
  %v533 = vadd.f32 %v390, %v524
  %v534 = vld [vmem:[%s4] sm:$0x1]
  %v536 = vlaneseq
  %v537 = vshrl.u32 %v536, 7
  %v538 = vsub.s32 0, %v537
  %v539 = vrot.slane %v534, %v538
  %v541 = vadd.f32 %v529, %v539
  %v542 = vadd.f32 %v530, %v539
  %v543 = vadd.f32 %v531, %v539
  %v544 = vadd.f32 %v532, %v539
  %v545 = vadd.f32 %v533, %v539
  %v546 = vpack.c.bf16 %v542, %v541
  %v547 = vpack.c.bf16 %v543, %v543
  %v550 = vunpack.c.l.b16 %v546
  %v551 = vunpack.c.h.b16 %v546
  %v552 = vunpack.c.l.b16 %v547
  %v553 = vpack.c.b16 %v550, %v550
  %v554 = vpack.c.b16 %v551, %v551
  %v555 = vpack.c.b16 %v552, %v552
  %vm556 = vsmask.f32 3328
  %vm557 = vsmask.f32 7440
  %vm558 = vmor %vm556, %vm557
  %v560 = vshrl.u32 %v553, 16
  %v562 = vrot.slane %v560, 4
  %v563 = vshll.u32 %v553, 16
  %v565 = vrot.slane %v563, 5
  %v566 = vor.u32 %v562, %v565
  %v567 = vrot.slane %v566, 4
  %v569 = vshll.u32 %v554, 16
  %v571 = vrot.slane %v569, 5
  %v572 = vsel %vm558, %v567, %v571
  %v573 = vshrl.u32 %v554, 16
  %v575 = vrot.slane %v573, 4
  %v576 = vor.u32 %v575, %v571
  %v577 = vrot.slane %v576, 4
  %v579 = vshll.u32 %v555, 16
  %v581 = vrot.slane %v579, 5
  %v582 = vsel %vm558, %v577, %v581
  %585 = vst [vmem:[%s5] sm:$0xf] %v572
  %586 = vst [vmem:[%s5 + $0x4] sm:$0xf] %v582
  %vm590 = vcmask 1046528
  %v591 = vrot.slane %v541, 1
  %v592 = vrot.slane %v542, 1
  %v593 = vsel %vm590, %v591, %v592
  %v594 = vrot.slane %v543, 1
  %v595 = vsel %vm590, %v592, %v594
  %v598 = vadd.f32 %v593, %v595
  %v599 = vrot.slane %v598, 4
  %v600 = vadd.f32 %v598, %v599
  %v601 = vrot.slane %v600, 2
  %v602 = vadd.f32 %v600, %v601
  %v603 = vrot.slane %v602, 1
  %v604 = vadd.f32 %v602, %v603
  %v605 = vadd.f32 %v604, 0.0
  %v606 = vmul.f32 %v541, %v541
  %v607 = vmul.f32 %v542, %v542
  %v608 = vmul.f32 %v543, %v543
  %v612 = vrot.slane %v606, 1
  %v613 = vrot.slane %v607, 1
  %v614 = vsel %vm590, %v612, %v613
  %v615 = vrot.slane %v608, 1
  %v616 = vsel %vm590, %v613, %v615
  %v619 = vadd.f32 %v614, %v616
  %v620 = vrot.slane %v619, 4
  %v621 = vadd.f32 %v619, %v620
  %v622 = vrot.slane %v621, 2
  %v623 = vadd.f32 %v621, %v622
  %v624 = vrot.slane %v623, 1
  %v625 = vadd.f32 %v623, %v624
  %v626 = vadd.f32 %v625, 0.0
  %v627 = vpack.c.bf16 %v544, %v543
  %v628 = vpack.c.bf16 %v545, %v545
  %v631 = vunpack.c.l.b16 %v627
  %v632 = vunpack.c.h.b16 %v627
  %v633 = vunpack.c.l.b16 %v628
  %v634 = vpack.c.b16 %v631, %v631
  %v635 = vpack.c.b16 %v632, %v632
  %v636 = vpack.c.b16 %v633, %v633
  %vm637 = vsmask.f32 1280
  %vm638 = vsmask.f32 5392
  %vm639 = vmor %vm637, %vm638
  %v641 = vshrl.u32 %v634, 16
  %v643 = vrot.slane %v641, 6
  %v644 = vshll.u32 %v634, 16
  %v646 = vrot.slane %v644, 7
  %v647 = vor.u32 %v643, %v646
  %v648 = vrot.slane %v647, 4
  %v650 = vshrl.u32 %v635, 16
  %v652 = vrot.slane %v650, 6
  %v653 = vshll.u32 %v635, 16
  %v655 = vrot.slane %v653, 7
  %v656 = vor.u32 %v652, %v655
  %v657 = vsel %vm639, %v648, %v656
  %v658 = vrot.slane %v656, 4
  %v660 = vshrl.u32 %v636, 16
  %v662 = vrot.slane %v660, 6
  %v663 = vshll.u32 %v636, 16
  %v665 = vrot.slane %v663, 7
  %v666 = vor.u32 %v662, %v665
  %v667 = vsel %vm639, %v658, %v666
  %670 = vst [vmem:[%s5 + $0x8] sm:$0xf] %v657
  %671 = vst [vmem:[%s5 + $0xc] sm:$0xf] %v667
  %vm674 = vcmask 1042432
  %v675 = vrot.slane %v543, 5
  %v676 = vrot.slane %v544, 5
  %v677 = vsel %vm674, %v675, %v676
  %v678 = vrot.slane %v545, 5
  %v679 = vsel %vm674, %v676, %v678
  %v682 = vadd.f32 %v677, %v679
  %v683 = vrot.slane %v682, 4
  %v684 = vadd.f32 %v682, %v683
  %v685 = vrot.slane %v684, 2
  %v686 = vadd.f32 %v684, %v685
  %v687 = vrot.slane %v686, 1
  %v688 = vadd.f32 %v686, %v687
  %v689 = vadd.f32 %v605, %v688
  %v690 = vmul.f32 %v544, %v544
  %v691 = vmul.f32 %v545, %v545
  %v694 = vrot.slane %v608, 5
  %v695 = vrot.slane %v690, 5
  %v696 = vsel %vm674, %v694, %v695
  %v697 = vrot.slane %v691, 5
  %v698 = vsel %vm674, %v695, %v697
  %v701 = vadd.f32 %v696, %v698
  %v702 = vrot.slane %v701, 4
  %v703 = vadd.f32 %v701, %v702
  %v704 = vrot.slane %v703, 2
  %v705 = vadd.f32 %v703, %v704
  %v706 = vrot.slane %v705, 1
  %v707 = vadd.f32 %v705, %v706
  %v708 = vadd.f32 %v626, %v707
  %709 = vst [vmem:[%s6] sm:$0xff] %v689
  %710 = vst [vmem:[%s7] sm:$0xff] %v708
  // Predicated region
  $region22: #{upblock_forward.4} parent=0 // pred_check
    _
  $region23: #{upblock_forward.4} parent=0 // pred_check_branch
    %712 = sbr.rel (0) target = $region25
  $region24: #{upblock_forward.4} parent=0 // pred_region
    _
  $region25: #{upblock_forward.4} parent=0 // pred_fallthru
    _
  // Predicated region
  $region26: #{upblock_forward.4} parent=0 // pred_check
    _
  $region27: #{upblock_forward.4} parent=0 // pred_check_branch
    %714 = sbr.rel (0) target = $region29
  $region28: #{upblock_forward.4} parent=0 // pred_region
    _
  $region29: #{upblock_forward.4} parent=0 // pred_fallthru
    _
  // Predicated region
  $region30: #{upblock_forward.4} parent=0 // pred_check
    _
  $region31: #{upblock_forward.4} parent=0 // pred_check_branch
    %716 = sbr.rel (0) target = $region33
  $region32: #{upblock_forward.4} parent=0 // pred_region
    _
  $region33: #{upblock_forward.4} parent=0 // pred_fallthru
    _
  // Predicated region
  $region34: #{upblock_forward.4} parent=0 // pred_check
    _
  $region35: #{upblock_forward.4} parent=0 // pred_check_branch
    %718 = sbr.rel (0) target = $region37
  $region36: #{upblock_forward.4} parent=0 // pred_region
    _
  $region37: #{upblock_forward.4} parent=0 // pred_fallthru
    _
  // Predicated region
  $region38: #{upblock_forward.4} parent=0 // pred_check
    _
  $region39: #{upblock_forward.4} parent=0 // pred_check_branch
    %720 = sbr.rel (0) target = $region41
  $region40: #{upblock_forward.4} parent=0 // pred_region
    _
  $region41: #{upblock_forward.4} parent=0 // pred_fallthru
    _
  // Predicated region
  $region42: #{upblock_forward.4} parent=0 // pred_check
    _
  $region43: #{upblock_forward.4} parent=0 // pred_check_branch
    %722 = sbr.rel (0) target = $region45
  $region44: #{upblock_forward.4} parent=0 // pred_region
    _
  $region45: #{upblock_forward.4} parent=0 // pred_fallthru
    _

// kernel: upblock_forward.3
$region0: #{upblock_forward.3}
  #allocation0 [shape = 'u32[]', space=smem, size = 0x4, offset = 0x4, fixed_abs, tag = 'smem constant byte address 0x4 - core index']
  #allocation1 [shape = 'u32[144,128]{1,0:T(1,128)}', space=vmem, size = 0x12000, scoped, tag = 'internal scratch']
  #allocation2 [shape = 'bf16[40,64]{1,0:T(8,128)(2,1)}', space=vmem, size = 0x2800, scoped, tag = 'scratch operand']
  #allocation3 [shape = 'bf16[40,128]{1,0:T(8,128)(2,1)}', space=vmem, size = 0x2800, scoped, tag = 'scratch operand']
  %s0 = inlined_call_operand.vmem [shape: bf16[16,32], index: 0, kind: input, shape index: {}]
  %s1 = inlined_call_operand.vmem [shape: bf16[32,64], index: 1, kind: input, shape index: {}]
  %s2 = inlined_call_operand.vmem [shape: bf16[32,256], index: 2, kind: input, shape index: {}]
  %s3 = inlined_call_operand.vmem [shape: f32[1,256], index: 3, kind: input, shape index: {}]
  %s4 = inlined_call_operand.vmem [shape: bf16[2,16,8], index: 4, kind: input, shape index: {}]
  %s5 = inlined_call_operand.vmem [shape: bf16[3,64,128], index: 5, kind: input, shape index: {}]
  %s6 = inlined_call_operand.vmem [shape: bf16[3,128,128], index: 6, kind: input, shape index: {}]
  %s7 = inlined_call_operand.vmem [shape: f32[1,128], index: 7, kind: input, shape index: {}]
  %s8 = inlined_call_operand.vmem [shape: bf16[32,128], index: 8, kind: output, shape index: {0}]
  %s9 = inlined_call_operand.vmem [shape: f32[1,8,128], index: 9, kind: output, shape index: {1}]
  %s10 = inlined_call_operand.vmem [shape: f32[1,8,128], index: 10, kind: output, shape index: {2}]
  %11 = xla_tuple %s8, %s9, %s10
  %s12 = sld [smem:[#allocation0]]
  $region58: #{upblock_forward.3} parent=0
    _
  %s14 = ssub.s32 1, %s12
  %s15 = scalar_select 0, %s14, %s12
  // Predicated region
  $region2: #{upblock_forward.3} parent=0 // pred_check
    _
  $region3: #{upblock_forward.3} parent=0 // pred_check_branch
    %17 = sbr.rel (0) target = $region5
  $region4: #{upblock_forward.3} parent=0 // pred_region
    _
  $region5: #{upblock_forward.3} parent=0 // pred_fallthru
    _
  // Predicated region
  $region6: #{upblock_forward.3} parent=0 // pred_check
    _
  $region7: #{upblock_forward.3} parent=0 // pred_check_branch
    %19 = sbr.rel (0) target = $region9
  $region8: #{upblock_forward.3} parent=0 // pred_region
    _
  $region9: #{upblock_forward.3} parent=0 // pred_fallthru
    _
  // Predicated region
  $region10: #{upblock_forward.3} parent=0 // pred_check
    _
  $region11: #{upblock_forward.3} parent=0 // pred_check_branch
    %21 = sbr.rel (0) target = $region13
  $region12: #{upblock_forward.3} parent=0 // pred_region
    _
  $region13: #{upblock_forward.3} parent=0 // pred_fallthru
    _
  // Predicated region
  $region14: #{upblock_forward.3} parent=0 // pred_check
    _
  $region15: #{upblock_forward.3} parent=0 // pred_check_branch
    %23 = sbr.rel (0) target = $region17
  $region16: #{upblock_forward.3} parent=0 // pred_region
    _
  $region17: #{upblock_forward.3} parent=0 // pred_fallthru
    _
  // Predicated region
  $region18: #{upblock_forward.3} parent=0 // pred_check
    _
  $region19: #{upblock_forward.3} parent=0 // pred_check_branch
    %25 = sbr.rel (0) target = $region21
  $region20: #{upblock_forward.3} parent=0 // pred_region
    _
  $region21: #{upblock_forward.3} parent=0 // pred_fallthru
    _
  // Predicated region
  $region22: #{upblock_forward.3} parent=0 // pred_check
    _
  $region23: #{upblock_forward.3} parent=0 // pred_check_branch
    %27 = sbr.rel (0) target = $region25
  $region24: #{upblock_forward.3} parent=0 // pred_region
    _
  $region25: #{upblock_forward.3} parent=0 // pred_fallthru
    _
  // Predicated region
  $region26: #{upblock_forward.3} parent=0 // pred_check
    _
  $region27: #{upblock_forward.3} parent=0 // pred_check_branch
    %29 = sbr.rel (0) target = $region29
  $region28: #{upblock_forward.3} parent=0 // pred_region
    _
  $region29: #{upblock_forward.3} parent=0 // pred_fallthru
    _
  // Predicated region
  $region30: #{upblock_forward.3} parent=0 // pred_check
    _
  $region31: #{upblock_forward.3} parent=0 // pred_check_branch
    %31 = sbr.rel (0) target = $region33
  $region32: #{upblock_forward.3} parent=0 // pred_region
    _
  $region33: #{upblock_forward.3} parent=0 // pred_fallthru
    _
  %v33 = vld [vmem:[%s0] sm:$0xf]
  %v34 = vld [vmem:[%s0 + $0x4] sm:$0xf]
  %v35 = vld [vmem:[%s2] sm:$0xff]
  %v36 = vld [vmem:[%s2 + $0x8] sm:$0xff]
  %v37 = vld [vmem:[%s2 + $0x10] sm:$0xff]
  %v38 = vld [vmem:[%s2 + $0x18] sm:$0xff]
  %v39 = vld [vmem:[%s3] sm:$0x3]
  %v41 = vlaneseq
  %v42 = vshrl.u32 %v41, 7
  %v43 = vsub.s32 0, %v42
  %v44 = vrot.slane %v39, %v43
  %v45 = vlaneseq
  %v46 = vshrl.u32 %v45, 7
  %v47 = vsub.s32 1, %v46
  %v48 = vrot.slane %v39, %v47
  %v53 = vunpack.c.l.b16 %v33
  %v54 = vunpack.c.l.b16 %v34
  %v55 = vpack.c.b16 %v54, %v53
  %v60 = vunpack.c.l.b16 %v35
  %v61 = vunpack.c.h.b16 %v35
  %v62 = vunpack.c.l.b16 %v36
  %v63 = vunpack.c.h.b16 %v36
  %v64 = vunpack.c.l.b16 %v37
  %v65 = vunpack.c.h.b16 %v37
  %v66 = vunpack.c.l.b16 %v38
  %v67 = vunpack.c.h.b16 %v38
  %v68 = vpack.c.b16 %v62, %v60
  %v69 = vpack.c.b16 %v63, %v61
  %v70 = vpack.c.b16 %v66, %v64
  %v71 = vpack.c.b16 %v67, %v65
  %vm76 = vcmask 261120
  %v78 = vsel %vm76, %v55, 0
  %80 = vmatprep.subr.bf16.mxu0 %v69
  %81 = vmatpush1.bf16.msra.mxu0 %v68
  %82 = vmatprep.subr.bf16.mxu0 %v71
  %83 = vmatpush1.bf16.msra.mxu0 %v70
  %84 = vmatprep.subr.bf16.mxu0 0
  %85 = vmatpush1.bf16.msra.mxu0 0
  %86 = vmatprep.subr.bf16.mxu0 0
  %87 = vmatpush1.bf16.msra.mxu0 0
  %88 = vmatprep.subr.bf16.mxu0 0
  %89 = vmatpush1.bf16.msra.mxu0 0
  %90 = vmatprep.subr.bf16.mxu0 0
  %91 = vmatpush1.bf16.msra.mxu0 0
  %92 = vmatprep.subr.bf16.mxu0 0
  %93 = vmatpush1.bf16.msra.mxu0 0
  %94 = vmatprep.subr.bf16.mxu0 0
  %95 = vmatpush1.bf16.msra.mxu0 0
  %96 = vmatprep.subr.bf16.mxu0 0
  %97 = vmatpush1.bf16.msra.mxu0 0
  %98 = vmatprep.subr.bf16.mxu0 0
  %99 = vmatpush1.bf16.msra.mxu0 0
  %100 = vmatprep.subr.bf16.mxu0 0
  %101 = vmatpush1.bf16.msra.mxu0 0
  %102 = vmatprep.subr.bf16.mxu0 0
  %103 = vmatpush1.bf16.msra.mxu0 0
  %104 = vmatprep.subr.bf16.mxu0 0
  %105 = vmatpush1.bf16.msra.mxu0 0
  %106 = vmatprep.subr.bf16.mxu0 0
  %107 = vmatpush1.bf16.msra.mxu0 0
  %108 = vmatprep.subr.bf16.mxu0 0
  %109 = vmatpush1.bf16.msra.mxu0 0
  %110 = vmatprep.subr.bf16.mxu0 0
  %111 = vmatpush1.bf16.msra.mxu0 0
  %112 = vmatprep.mubr.bf16.mxu0 0
  %113 = vmatmul.mubr.bf16.gmra.mrb[0].mxu0 %v78
  %v114 = vpop.f32.mrb[0].mxu0
  %v115 = vadd.f32 %v44, %v114
  %v116 = vpop.f32.mrb[0].mxu0
  %v117 = vadd.f32 %v48, %v116
  %v118 = vpop.f32.mrb[0].mxu0
  %v119 = vadd.f32 %v44, %v118
  %v120 = vpop.f32.mrb[0].mxu0
  %v121 = vadd.f32 %v48, %v120
  %122 = vdwg.mxu0
  %v123 = vpack.c.bf16 %v119, %v115
  %v124 = vpack.c.bf16 %v121, %v117
  %vm125 = vcmask 516096
  %126 = vst.msk [vmem:[#allocation2] sm:$0x1] %vm125, 0
  %vm127 = vcmask 517121
  %128 = vst.msk [vmem:[#allocation2 + $0x8] sm:$0x2] %vm127, 0
  %v129 = vld [vmem:[%s1] sm:$0xf]
  %v130 = vld [vmem:[%s1 + $0x4] sm:$0xf]
  %vm133 = vcmask 1040384
  %vm134 = vcmask 1044484
  %vm135 = vmor %vm133, %vm134
  %v136 = vrot.slane %v129, 7
  %v137 = vrot.slane %v136, 4
  %v138 = vrot.slane %v130, 7
  %v139 = vsel %vm135, %v137, %v138
  %v140 = vrot.slane %v138, 4
  %vm144 = vcmask 519169
  %145 = vst.msk [vmem:[#allocation2] sm:$0xe] %vm144, %v136
  %vm146 = vcmask 519168
  %147 = vst.msk [vmem:[#allocation2 + $0x4] sm:$0xf] %vm146, %v139
  %148 = vst.msk [vmem:[#allocation2 + $0x8] sm:$0x1] %vm125, %v140
  %149 = vst [vmem:[#allocation3] sm:$0x1] 0
  %150 = vst [vmem:[#allocation3 + $0x8] sm:$0x2] 0
  %v151 = vld [vmem:[%s4] sm:$0xf]
  %v152 = vld [vmem:[%s4 + $0x4] sm:$0xf]
  %s153 = scalar_lea.vmem %s4, 8
  %v154 = vld [vmem:[%s153] sm:$0xf]
  %v155 = vld [vmem:[%s153 + $0x4] sm:$0xf]
  %v158 = vunpack.c.l.b16 %v154
  %v159 = vunpack.c.l.b16 %v155
  %v160 = vpack.c.b16 %v159, %v158
  %vm161 = vcmask 64512
  %v163 = vsel %vm161, %v160, 0
  %vm165 = vcmask 1043456
  %v167 = vsel %vm165, %v124, 0
  %169 = vmatprep.subr.bf16.mxu0 0
  %170 = vmatpush1.bf16.msra.mxu0 %v167
  %171 = vmatprep.subr.bf16.mxu0 0
  %172 = vmatpush1.bf16.msra.mxu0 0
  %173 = vmatprep.subr.bf16.mxu0 0
  %174 = vmatpush1.bf16.msra.mxu0 0
  %175 = vmatprep.subr.bf16.mxu0 0
  %176 = vmatpush1.bf16.msra.mxu0 0
  %177 = vmatprep.subr.bf16.mxu0 0
  %178 = vmatpush1.bf16.msra.mxu0 0
  %179 = vmatprep.subr.bf16.mxu0 0
  %180 = vmatpush1.bf16.msra.mxu0 0
  %181 = vmatprep.subr.bf16.mxu0 0
  %182 = vmatpush1.bf16.msra.mxu0 0
  %183 = vmatprep.subr.bf16.mxu0 0
  %184 = vmatpush1.bf16.msra.mxu0 0
  %185 = vmatprep.subr.bf16.mxu0 0
  %186 = vmatpush1.bf16.msra.mxu0 0
  %187 = vmatprep.subr.bf16.mxu0 0
  %188 = vmatpush1.bf16.msra.mxu0 0
  %189 = vmatprep.subr.bf16.mxu0 0
  %190 = vmatpush1.bf16.msra.mxu0 0
  %191 = vmatprep.subr.bf16.mxu0 0
  %192 = vmatpush1.bf16.msra.mxu0 0
  %193 = vmatprep.subr.bf16.mxu0 0
  %194 = vmatpush1.bf16.msra.mxu0 0
  %195 = vmatprep.subr.bf16.mxu0 0
  %196 = vmatpush1.bf16.msra.mxu0 0
  %197 = vmatprep.subr.bf16.mxu0 0
  %198 = vmatpush1.bf16.msra.mxu0 0
  %199 = vmatprep.subr.bf16.mxu0 0
  %200 = vmatpush1.bf16.msra.mxu0 0
  %201 = vmatprep.mubr.bf16.mxu0 0
  %202 = vmatmul.mubr.bf16.gmra.mrb[0].mxu0 %v163
  %v203 = vpop.f32.mrb[0].mxu0
  %v204 = vadd.f32 0.0, %v203
  %v205 = vpop.f32.mrb[0].mxu0
  %v206 = vpop.f32.mrb[0].mxu0
  %v207 = vadd.f32 0.0, %v206
  %v208 = vpop.f32.mrb[0].mxu0
  %209 = vdwg.mxu0
  %v212 = vunpack.c.l.b16 %v151
  %v213 = vunpack.c.l.b16 %v152
  %v214 = vpack.c.b16 %v213, %v212
  %v216 = vsel %vm161, %v214, 0
  %v219 = vsel %vm165, %v123, 0
  %221 = vmatprep.subr.bf16.mxu0 0
  %222 = vmatpush1.bf16.msra.mxu0 %v219
  %223 = vmatprep.subr.bf16.mxu0 0
  %224 = vmatpush1.bf16.msra.mxu0 0
  %225 = vmatprep.subr.bf16.mxu0 0
  %226 = vmatpush1.bf16.msra.mxu0 0
  %227 = vmatprep.subr.bf16.mxu0 0
  %228 = vmatpush1.bf16.msra.mxu0 0
  %229 = vmatprep.subr.bf16.mxu0 0
  %230 = vmatpush1.bf16.msra.mxu0 0
  %231 = vmatprep.subr.bf16.mxu0 0
  %232 = vmatpush1.bf16.msra.mxu0 0
  %233 = vmatprep.subr.bf16.mxu0 0
  %234 = vmatpush1.bf16.msra.mxu0 0
  %235 = vmatprep.subr.bf16.mxu0 0
  %236 = vmatpush1.bf16.msra.mxu0 0
  %237 = vmatprep.subr.bf16.mxu0 0
  %238 = vmatpush1.bf16.msra.mxu0 0
  %239 = vmatprep.subr.bf16.mxu0 0
  %240 = vmatpush1.bf16.msra.mxu0 0
  %241 = vmatprep.subr.bf16.mxu0 0
  %242 = vmatpush1.bf16.msra.mxu0 0
  %243 = vmatprep.subr.bf16.mxu0 0
  %244 = vmatpush1.bf16.msra.mxu0 0
  %245 = vmatprep.subr.bf16.mxu0 0
  %246 = vmatpush1.bf16.msra.mxu0 0
  %247 = vmatprep.subr.bf16.mxu0 0
  %248 = vmatpush1.bf16.msra.mxu0 0
  %249 = vmatprep.subr.bf16.mxu0 0
  %250 = vmatpush1.bf16.msra.mxu0 0
  %251 = vmatprep.subr.bf16.mxu0 0
  %252 = vmatpush1.bf16.msra.mxu0 0
  %253 = vmatprep.mubr.bf16.mxu0 0
  %254 = vmatmul.mubr.bf16.gmra.mrb[0].mxu0 %v216
  %v255 = vpop.f32.mrb[0].mxu0
  %v256 = vadd.f32 %v204, %v255
  %v257 = vpop.f32.mrb[0].mxu0
  %v258 = vpop.f32.mrb[0].mxu0
  %v259 = vadd.f32 %v207, %v258
  %v260 = vpop.f32.mrb[0].mxu0
  %261 = vdwg.mxu0
  %v262 = vpack.c.bf16 %v259, %v256
  %v264 = vunpack.c.l.b16 %v262
  %v265 = vunpack.c.h.b16 %v262
  %v266 = vpack.c.b16 %v264, %v264
  %v267 = vpack.c.b16 %v265, %v265
  %v268 = vrot.slane %v266, 7
  %v269 = vrot.slane %v268, 4
  %v270 = vrot.slane %v267, 7
  %v271 = vsel %vm135, %v269, %v270
  %v272 = vrot.slane %v270, 4
  %276 = vst [vmem:[#allocation3] sm:$0xe] %v268
  %277 = vst [vmem:[#allocation3 + $0x4] sm:$0xf] %v271
  %278 = vst [vmem:[#allocation3 + $0x8] sm:$0x1] %v272
  %vm279 = vcmask 518146
  %280 = vst.msk [vmem:[#allocation2 + $0x8] sm:$0x4] %vm279, 0
  %vm281 = vcmask 519171
  %282 = vst.msk [vmem:[#allocation2 + $0x10] sm:$0x8] %vm281, 0
  %v283 = vld [vmem:[%s1 + $0x8] sm:$0xf]
  %v284 = vld [vmem:[%s1 + $0xc] sm:$0xf]
  %vm287 = vcmask 1042432
  %vm288 = vcmask 1046532
  %vm289 = vmor %vm287, %vm288
  %v290 = vrot.slane %v283, 5
  %v291 = vrot.slane %v290, 4
  %v292 = vrot.slane %v284, 5
  %v293 = vsel %vm289, %v291, %v292
  %v294 = vrot.slane %v292, 4
  %298 = vst.msk [vmem:[#allocation2 + $0x8] sm:$0x8] %vm281, %v290
  %299 = vst.msk [vmem:[#allocation2 + $0xc] sm:$0xf] %vm146, %v293
  %vm300 = vcmask 518144
  %301 = vst.msk [vmem:[#allocation2 + $0x10] sm:$0x7] %vm300, %v294
  %302 = vst [vmem:[#allocation3 + $0x8] sm:$0x4] 0
  %303 = vst [vmem:[#allocation3 + $0x10] sm:$0x8] 0
  %v304 = vld [vmem:[%s4] sm:$0xf]
  %v305 = vld [vmem:[%s4 + $0x4] sm:$0xf]
  %v306 = vld [vmem:[%s153] sm:$0xf]
  %v307 = vld [vmem:[%s153 + $0x4] sm:$0xf]
  %v310 = vunpack.c.l.b16 %v306
  %v311 = vunpack.c.l.b16 %v307
  %v312 = vpack.c.b16 %v311, %v310
  %v314 = vrot.slane %v124, 4
  %v316 = vsel %vm161, %v312, 0
  %v319 = vsel %vm165, %v314, 0
  %321 = vmatprep.subr.bf16.mxu0 0
  %322 = vmatpush1.bf16.msra.mxu0 %v319
  %323 = vmatprep.subr.bf16.mxu0 0
  %324 = vmatpush1.bf16.msra.mxu0 0
  %325 = vmatprep.subr.bf16.mxu0 0
  %326 = vmatpush1.bf16.msra.mxu0 0
  %327 = vmatprep.subr.bf16.mxu0 0
  %328 = vmatpush1.bf16.msra.mxu0 0
  %329 = vmatprep.subr.bf16.mxu0 0
  %330 = vmatpush1.bf16.msra.mxu0 0
  %331 = vmatprep.subr.bf16.mxu0 0
  %332 = vmatpush1.bf16.msra.mxu0 0
  %333 = vmatprep.subr.bf16.mxu0 0
  %334 = vmatpush1.bf16.msra.mxu0 0
  %335 = vmatprep.subr.bf16.mxu0 0
  %336 = vmatpush1.bf16.msra.mxu0 0
  %337 = vmatprep.subr.bf16.mxu0 0
  %338 = vmatpush1.bf16.msra.mxu0 0
  %339 = vmatprep.subr.bf16.mxu0 0
  %340 = vmatpush1.bf16.msra.mxu0 0
  %341 = vmatprep.subr.bf16.mxu0 0
  %342 = vmatpush1.bf16.msra.mxu0 0
  %343 = vmatprep.subr.bf16.mxu0 0
  %344 = vmatpush1.bf16.msra.mxu0 0
  %345 = vmatprep.subr.bf16.mxu0 0
  %346 = vmatpush1.bf16.msra.mxu0 0
  %347 = vmatprep.subr.bf16.mxu0 0
  %348 = vmatpush1.bf16.msra.mxu0 0
  %349 = vmatprep.subr.bf16.mxu0 0
  %350 = vmatpush1.bf16.msra.mxu0 0
  %351 = vmatprep.subr.bf16.mxu0 0
  %352 = vmatpush1.bf16.msra.mxu0 0
  %353 = vmatprep.mubr.bf16.mxu0 0
  %354 = vmatmul.mubr.bf16.gmra.mrb[0].mxu0 %v316
  %v355 = vpop.f32.mrb[0].mxu0
  %v356 = vadd.f32 0.0, %v355
  %v357 = vpop.f32.mrb[0].mxu0
  %v358 = vpop.f32.mrb[0].mxu0
  %v359 = vadd.f32 0.0, %v358
  %v360 = vpop.f32.mrb[0].mxu0
  %361 = vdwg.mxu0
  %v364 = vunpack.c.l.b16 %v304
  %v365 = vunpack.c.l.b16 %v305
  %v366 = vpack.c.b16 %v365, %v364
  %v368 = vrot.slane %v123, 4
  %v370 = vsel %vm161, %v366, 0
  %v373 = vsel %vm165, %v368, 0
  %375 = vmatprep.subr.bf16.mxu0 0
  %376 = vmatpush1.bf16.msra.mxu0 %v373
  %377 = vmatprep.subr.bf16.mxu0 0
  %378 = vmatpush1.bf16.msra.mxu0 0
  %379 = vmatprep.subr.bf16.mxu0 0
  %380 = vmatpush1.bf16.msra.mxu0 0
  %381 = vmatprep.subr.bf16.mxu0 0
  %382 = vmatpush1.bf16.msra.mxu0 0
  %383 = vmatprep.subr.bf16.mxu0 0
  %384 = vmatpush1.bf16.msra.mxu0 0
  %385 = vmatprep.subr.bf16.mxu0 0
  %386 = vmatpush1.bf16.msra.mxu0 0
  %387 = vmatprep.subr.bf16.mxu0 0
  %388 = vmatpush1.bf16.msra.mxu0 0
  %389 = vmatprep.subr.bf16.mxu0 0
  %390 = vmatpush1.bf16.msra.mxu0 0
  %391 = vmatprep.subr.bf16.mxu0 0
  %392 = vmatpush1.bf16.msra.mxu0 0
  %393 = vmatprep.subr.bf16.mxu0 0
  %394 = vmatpush1.bf16.msra.mxu0 0
  %395 = vmatprep.subr.bf16.mxu0 0
  %396 = vmatpush1.bf16.msra.mxu0 0
  %397 = vmatprep.subr.bf16.mxu0 0
  %398 = vmatpush1.bf16.msra.mxu0 0
  %399 = vmatprep.subr.bf16.mxu0 0
  %400 = vmatpush1.bf16.msra.mxu0 0
  %401 = vmatprep.subr.bf16.mxu0 0
  %402 = vmatpush1.bf16.msra.mxu0 0
  %403 = vmatprep.subr.bf16.mxu0 0
  %404 = vmatpush1.bf16.msra.mxu0 0
  %405 = vmatprep.subr.bf16.mxu0 0
  %406 = vmatpush1.bf16.msra.mxu0 0
  %407 = vmatprep.mubr.bf16.mxu0 0
  %408 = vmatmul.mubr.bf16.gmra.mrb[0].mxu0 %v370
  %v409 = vpop.f32.mrb[0].mxu0
  %v410 = vadd.f32 %v356, %v409
  %v411 = vpop.f32.mrb[0].mxu0
  %v412 = vpop.f32.mrb[0].mxu0
  %v413 = vadd.f32 %v359, %v412
  %v414 = vpop.f32.mrb[0].mxu0
  %415 = vdwg.mxu0
  %v416 = vpack.c.bf16 %v413, %v410
  %v418 = vunpack.c.l.b16 %v416
  %v419 = vunpack.c.h.b16 %v416
  %v420 = vpack.c.b16 %v418, %v418
  %v421 = vpack.c.b16 %v419, %v419
  %v422 = vrot.slane %v420, 5
  %v423 = vrot.slane %v422, 4
  %v424 = vrot.slane %v421, 5
  %v425 = vsel %vm289, %v423, %v424
  %v426 = vrot.slane %v424, 4
  %430 = vst [vmem:[#allocation3 + $0x8] sm:$0x8] %v422
  %431 = vst [vmem:[#allocation3 + $0xc] sm:$0xf] %v425
  %432 = vst [vmem:[#allocation3 + $0x10] sm:$0x7] %v426
  %v433 = vld [vmem:[#allocation2] sm:$0xf]
  %v434 = vld [vmem:[#allocation2 + $0x4] sm:$0xf]
  %v435 = vld [vmem:[#allocation2 + $0x8] sm:$0xf]
  %v436 = vld [vmem:[#allocation2 + $0xc] sm:$0xf]
  %v437 = vld [vmem:[#allocation2 + $0x10] sm:$0x7]
  %v438 = vld [vmem:[%s5] sm:$0xf]
  %v439 = vld [vmem:[%s5 + $0x4] sm:$0xf]
  %v440 = vld [vmem:[%s5 + $0x8] sm:$0xf]
  %v441 = vld [vmem:[%s5 + $0xc] sm:$0xf]
  %v442 = vld [vmem:[%s5 + $0x10] sm:$0xf]
  %v443 = vld [vmem:[%s5 + $0x14] sm:$0xf]
  %v444 = vld [vmem:[%s5 + $0x18] sm:$0xf]
  %v445 = vld [vmem:[%s5 + $0x1c] sm:$0xf]
  %v446 = vld [vmem:[#allocation3] sm:$0xf]
  %v447 = vld [vmem:[#allocation3 + $0x4] sm:$0xf]
  %v448 = vld [vmem:[#allocation3 + $0x8] sm:$0xf]
  %v449 = vld [vmem:[#allocation3 + $0xc] sm:$0xf]
  %v450 = vld [vmem:[#allocation3 + $0x10] sm:$0x7]
  %v451 = vld [vmem:[%s6] sm:$0xf]
  %v452 = vld [vmem:[%s6 + $0x4] sm:$0xf]
  %v453 = vld [vmem:[%s6 + $0x8] sm:$0xf]
  %v454 = vld [vmem:[%s6 + $0xc] sm:$0xf]
  %v455 = vld [vmem:[%s6 + $0x10] sm:$0xf]
  %v456 = vld [vmem:[%s6 + $0x14] sm:$0xf]
  %v457 = vld [vmem:[%s6 + $0x18] sm:$0xf]
  %v458 = vld [vmem:[%s6 + $0x1c] sm:$0xf]
  %v459 = vld [vmem:[%s6 + $0x20] sm:$0xf]
  %v460 = vld [vmem:[%s6 + $0x24] sm:$0xf]
  %v461 = vld [vmem:[%s6 + $0x28] sm:$0xf]
  %v462 = vld [vmem:[%s6 + $0x2c] sm:$0xf]
  %v463 = vld [vmem:[%s6 + $0x30] sm:$0xf]
  %v464 = vld [vmem:[%s6 + $0x34] sm:$0xf]
  %v465 = vld [vmem:[%s6 + $0x38] sm:$0xf]
  %v466 = vld [vmem:[%s6 + $0x3c] sm:$0xf]
  %v472 = vunpack.c.l.b16 %v446
  %v473 = vunpack.c.l.b16 %v447
  %v474 = vunpack.c.l.b16 %v448
  %v475 = vunpack.c.l.b16 %v449
  %v476 = vunpack.c.l.b16 %v450
  %v477 = vpack.c.b16 %v473, %v472
  %v478 = vpack.c.b16 %v475, %v474
  %v479 = vpack.c.b16 %v476, %v476
  %v499 = vunpack.c.l.b16 %v451
  %v500 = vunpack.c.l.b16 %v452
  %v501 = vunpack.c.l.b16 %v453
  %v502 = vunpack.c.l.b16 %v454
  %v503 = vunpack.c.l.b16 %v455
  %v504 = vunpack.c.l.b16 %v456
  %v505 = vunpack.c.l.b16 %v457
  %v506 = vunpack.c.l.b16 %v458
  %v507 = vunpack.c.l.b16 %v459
  %v508 = vunpack.c.l.b16 %v460
  %v509 = vunpack.c.l.b16 %v461
  %v510 = vunpack.c.l.b16 %v462
  %v511 = vunpack.c.l.b16 %v463
  %v512 = vunpack.c.l.b16 %v464
  %v513 = vunpack.c.l.b16 %v465
  %v514 = vunpack.c.l.b16 %v466
  %v515 = vpack.c.b16 %v500, %v499
  %v516 = vpack.c.b16 %v502, %v501
  %v517 = vpack.c.b16 %v504, %v503
  %v518 = vpack.c.b16 %v506, %v505
  %v519 = vpack.c.b16 %v508, %v507
  %v520 = vpack.c.b16 %v510, %v509
  %v521 = vpack.c.b16 %v512, %v511
  %v522 = vpack.c.b16 %v514, %v513
  %531 = vmatprep.subr.bf16.mxu0 0
  %532 = vmatpush1.bf16.msra.mxu0 %v515
  %533 = vmatprep.subr.bf16.mxu0 0
  %534 = vmatpush1.bf16.msra.mxu0 %v516
  %535 = vmatprep.subr.bf16.mxu0 0
  %536 = vmatpush1.bf16.msra.mxu0 %v517
  %537 = vmatprep.subr.bf16.mxu0 0
  %538 = vmatpush1.bf16.msra.mxu0 %v518
  %539 = vmatprep.subr.bf16.mxu0 0
  %540 = vmatpush1.bf16.msra.mxu0 %v519
  %541 = vmatprep.subr.bf16.mxu0 0
  %542 = vmatpush1.bf16.msra.mxu0 %v520
  %543 = vmatprep.subr.bf16.mxu0 0
  %544 = vmatpush1.bf16.msra.mxu0 %v521
  %545 = vmatprep.subr.bf16.mxu0 0
  %546 = vmatpush1.bf16.msra.mxu0 %v522
  %547 = vmatprep.subr.bf16.mxu0 0
  %548 = vmatpush1.bf16.msra.mxu0 0
  %549 = vmatprep.subr.bf16.mxu0 0
  %550 = vmatpush1.bf16.msra.mxu0 0
  %551 = vmatprep.subr.bf16.mxu0 0
  %552 = vmatpush1.bf16.msra.mxu0 0
  %553 = vmatprep.subr.bf16.mxu0 0
  %554 = vmatpush1.bf16.msra.mxu0 0
  %555 = vmatprep.subr.bf16.mxu0 0
  %556 = vmatpush1.bf16.msra.mxu0 0
  %557 = vmatprep.subr.bf16.mxu0 0
  %558 = vmatpush1.bf16.msra.mxu0 0
  %559 = vmatprep.subr.bf16.mxu0 0
  %560 = vmatpush1.bf16.msra.mxu0 0
  %561 = vmatprep.subr.bf16.mxu0 0
  %562 = vmatpush1.bf16.msra.mxu0 0
  %563 = vmatprep.mubr.bf16.mxu0 0
  %564 = vmatmul.mubr.bf16.gmra.mrb[0].mxu0 %v477
  %v565 = vpop.f32.mrb[0].mxu0
  %v566 = vadd.f32 0.0, %v565
  %v567 = vpop.f32.mrb[0].mxu0
  %v568 = vpop.f32.mrb[0].mxu0
  %v569 = vadd.f32 0.0, %v568
  %v570 = vpop.f32.mrb[0].mxu0
  %571 = vmatprep.mubr.bf16.mxu0 0
  %572 = vmatmul.mubr.bf16.gmra.mrb[0].mxu0 %v478
  %v573 = vpop.f32.mrb[0].mxu0
  %v574 = vadd.f32 0.0, %v573
  %v575 = vpop.f32.mrb[0].mxu0
  %v576 = vpop.f32.mrb[0].mxu0
  %v577 = vadd.f32 0.0, %v576
  %v578 = vpop.f32.mrb[0].mxu0
  %579 = vmatprep.mubr.bf16.mxu0 0
  %580 = vmatmul.mubr.bf16.gmra.mrb[0].mxu0 %v479
  %v581 = vpop.f32.mrb[0].mxu0
  %v582 = vadd.f32 0.0, %v581
  %v583 = vpop.f32.mrb[0].mxu0
  %v584 = vpop.f32.mrb[0].mxu0
  %v585 = vpop.f32.mrb[0].mxu0
  %586 = vdwg.mxu0
  %v592 = vunpack.c.l.b16 %v433
  %v593 = vunpack.c.l.b16 %v434
  %v594 = vunpack.c.l.b16 %v435
  %v595 = vunpack.c.l.b16 %v436
  %v596 = vunpack.c.l.b16 %v437
  %v597 = vpack.c.b16 %v593, %v592
  %v598 = vpack.c.b16 %v595, %v594
  %v599 = vpack.c.b16 %v596, %v596
  %v608 = vunpack.c.l.b16 %v438
  %v609 = vunpack.c.l.b16 %v439
  %v610 = vunpack.c.l.b16 %v440
  %v611 = vunpack.c.l.b16 %v441
  %v612 = vunpack.c.l.b16 %v442
  %v613 = vunpack.c.l.b16 %v443
  %v614 = vunpack.c.l.b16 %v444
  %v615 = vunpack.c.l.b16 %v445
  %v616 = vpack.c.b16 %v609, %v608
  %v617 = vpack.c.b16 %v611, %v610
  %v618 = vpack.c.b16 %v613, %v612
  %v619 = vpack.c.b16 %v615, %v614
  %vm624 = vcmask 523264
  %v626 = vsel %vm624, %v597, 0
  %v629 = vsel %vm624, %v598, 0
  %v632 = vsel %vm624, %v599, 0
  %634 = vmatprep.subr.bf16.mxu0 0
  %635 = vmatpush1.bf16.msra.mxu0 %v616
  %636 = vmatprep.subr.bf16.mxu0 0
  %637 = vmatpush1.bf16.msra.mxu0 %v617
  %638 = vmatprep.subr.bf16.mxu0 0
  %639 = vmatpush1.bf16.msra.mxu0 %v618
  %640 = vmatprep.subr.bf16.mxu0 0
  %641 = vmatpush1.bf16.msra.mxu0 %v619
  %642 = vmatprep.subr.bf16.mxu0 0
  %643 = vmatpush1.bf16.msra.mxu0 0
  %644 = vmatprep.subr.bf16.mxu0 0
  %645 = vmatpush1.bf16.msra.mxu0 0
  %646 = vmatprep.subr.bf16.mxu0 0
  %647 = vmatpush1.bf16.msra.mxu0 0
  %648 = vmatprep.subr.bf16.mxu0 0
  %649 = vmatpush1.bf16.msra.mxu0 0
  %650 = vmatprep.subr.bf16.mxu0 0
  %651 = vmatpush1.bf16.msra.mxu0 0
  %652 = vmatprep.subr.bf16.mxu0 0
  %653 = vmatpush1.bf16.msra.mxu0 0
  %654 = vmatprep.subr.bf16.mxu0 0
  %655 = vmatpush1.bf16.msra.mxu0 0
  %656 = vmatprep.subr.bf16.mxu0 0
  %657 = vmatpush1.bf16.msra.mxu0 0
  %658 = vmatprep.subr.bf16.mxu0 0
  %659 = vmatpush1.bf16.msra.mxu0 0
  %660 = vmatprep.subr.bf16.mxu0 0
  %661 = vmatpush1.bf16.msra.mxu0 0
  %662 = vmatprep.subr.bf16.mxu0 0
  %663 = vmatpush1.bf16.msra.mxu0 0
  %664 = vmatprep.subr.bf16.mxu0 0
  %665 = vmatpush1.bf16.msra.mxu0 0
  %666 = vmatprep.mubr.bf16.mxu0 0
  %667 = vmatmul.mubr.bf16.gmra.mrb[0].mxu0 %v626
  %v668 = vpop.f32.mrb[0].mxu0
  %v669 = vadd.f32 %v566, %v668
  %v670 = vpop.f32.mrb[0].mxu0
  %v671 = vpop.f32.mrb[0].mxu0
  %v672 = vadd.f32 %v569, %v671
  %v673 = vpop.f32.mrb[0].mxu0
  %674 = vmatprep.mubr.bf16.mxu0 0
  %675 = vmatmul.mubr.bf16.gmra.mrb[0].mxu0 %v629
  %v676 = vpop.f32.mrb[0].mxu0
  %v677 = vadd.f32 %v574, %v676
  %v678 = vpop.f32.mrb[0].mxu0
  %v679 = vpop.f32.mrb[0].mxu0
  %v680 = vadd.f32 %v577, %v679
  %v681 = vpop.f32.mrb[0].mxu0
  %682 = vmatprep.mubr.bf16.mxu0 0
  %683 = vmatmul.mubr.bf16.gmra.mrb[0].mxu0 %v632
  %v684 = vpop.f32.mrb[0].mxu0
  %v685 = vadd.f32 %v582, %v684
  %v686 = vpop.f32.mrb[0].mxu0
  %v687 = vpop.f32.mrb[0].mxu0
  %v688 = vpop.f32.mrb[0].mxu0
  %689 = vdwg.mxu0
  %v690 = vld [vmem:[#allocation2 + $0x10] sm:$0xf]
  %s691 = scalar_lea.vmem %s5, 32
  %v692 = vld [vmem:[%s691] sm:$0xf]
  %v693 = vld [vmem:[%s691 + $0x4] sm:$0xf]
  %v694 = vld [vmem:[%s691 + $0x8] sm:$0xf]
  %v695 = vld [vmem:[%s691 + $0xc] sm:$0xf]
  %v696 = vld [vmem:[%s691 + $0x10] sm:$0xf]
  %v697 = vld [vmem:[%s691 + $0x14] sm:$0xf]
  %v698 = vld [vmem:[%s691 + $0x18] sm:$0xf]
  %v699 = vld [vmem:[%s691 + $0x1c] sm:$0xf]
  %v701 = vunpack.c.l.b16 %v690
  %v702 = vpack.c.b16 %v701, %v701
  %vm703 = vsmask.f32 7424
  %v704 = vshrl.u32 %v597, 16
  %v706 = vshll.u32 %v597, 16
  %v708 = vrot.slane %v706, 1
  %v709 = vor.u32 %v704, %v708
  %v710 = vshll.u32 %v598, 16
  %v712 = vrot.slane %v710, 1
  %v713 = vsel %vm703, %v709, %v712
  %v714 = vshrl.u32 %v598, 16
  %v716 = vor.u32 %v714, %v712
  %v718 = vshll.u32 %v702, 16
  %v720 = vrot.slane %v718, 1
  %v721 = vsel %vm703, %v716, %v720
  %v722 = vshrl.u32 %v702, 16
  %v724 = vor.u32 %v722, %v720
  %v733 = vunpack.c.l.b16 %v692
  %v734 = vunpack.c.l.b16 %v693
  %v735 = vunpack.c.l.b16 %v694
  %v736 = vunpack.c.l.b16 %v695
  %v737 = vunpack.c.l.b16 %v696
  %v738 = vunpack.c.l.b16 %v697
  %v739 = vunpack.c.l.b16 %v698
  %v740 = vunpack.c.l.b16 %v699
  %v741 = vpack.c.b16 %v734, %v733
  %v742 = vpack.c.b16 %v736, %v735
  %v743 = vpack.c.b16 %v738, %v737
  %v744 = vpack.c.b16 %v740, %v739
  %v750 = vsel %vm624, %v713, 0
  %v753 = vsel %vm624, %v721, 0
  %v756 = vsel %vm624, %v724, 0
  %758 = vmatprep.subr.bf16.mxu0 0
  %759 = vmatpush1.bf16.msra.mxu0 %v741
  %760 = vmatprep.subr.bf16.mxu0 0
  %761 = vmatpush1.bf16.msra.mxu0 %v742
  %762 = vmatprep.subr.bf16.mxu0 0
  %763 = vmatpush1.bf16.msra.mxu0 %v743
  %764 = vmatprep.subr.bf16.mxu0 0
  %765 = vmatpush1.bf16.msra.mxu0 %v744
  %766 = vmatprep.subr.bf16.mxu0 0
  %767 = vmatpush1.bf16.msra.mxu0 0
  %768 = vmatprep.subr.bf16.mxu0 0
  %769 = vmatpush1.bf16.msra.mxu0 0
  %770 = vmatprep.subr.bf16.mxu0 0
  %771 = vmatpush1.bf16.msra.mxu0 0
  %772 = vmatprep.subr.bf16.mxu0 0
  %773 = vmatpush1.bf16.msra.mxu0 0
  %774 = vmatprep.subr.bf16.mxu0 0
  %775 = vmatpush1.bf16.msra.mxu0 0
  %776 = vmatprep.subr.bf16.mxu0 0
  %777 = vmatpush1.bf16.msra.mxu0 0
  %778 = vmatprep.subr.bf16.mxu0 0
  %779 = vmatpush1.bf16.msra.mxu0 0
  %780 = vmatprep.subr.bf16.mxu0 0
  %781 = vmatpush1.bf16.msra.mxu0 0
  %782 = vmatprep.subr.bf16.mxu0 0
  %783 = vmatpush1.bf16.msra.mxu0 0
  %784 = vmatprep.subr.bf16.mxu0 0
  %785 = vmatpush1.bf16.msra.mxu0 0
  %786 = vmatprep.subr.bf16.mxu0 0
  %787 = vmatpush1.bf16.msra.mxu0 0
  %788 = vmatprep.subr.bf16.mxu0 0
  %789 = vmatpush1.bf16.msra.mxu0 0
  %790 = vmatprep.mubr.bf16.mxu0 0
  %791 = vmatmul.mubr.bf16.gmra.mrb[0].mxu0 %v750
  %v792 = vpop.f32.mrb[0].mxu0
  %v793 = vadd.f32 0.0, %v792
  %v794 = vpop.f32.mrb[0].mxu0
  %v795 = vpop.f32.mrb[0].mxu0
  %v796 = vadd.f32 0.0, %v795
  %v797 = vpop.f32.mrb[0].mxu0
  %798 = vmatprep.mubr.bf16.mxu0 0
  %799 = vmatmul.mubr.bf16.gmra.mrb[0].mxu0 %v753
  %v800 = vpop.f32.mrb[0].mxu0
  %v801 = vadd.f32 0.0, %v800
  %v802 = vpop.f32.mrb[0].mxu0
  %v803 = vpop.f32.mrb[0].mxu0
  %v804 = vadd.f32 0.0, %v803
  %v805 = vpop.f32.mrb[0].mxu0
  %806 = vmatprep.mubr.bf16.mxu0 0
  %807 = vmatmul.mubr.bf16.gmra.mrb[0].mxu0 %v756
  %v808 = vpop.f32.mrb[0].mxu0
  %v809 = vadd.f32 0.0, %v808
  %v810 = vpop.f32.mrb[0].mxu0
  %v811 = vpop.f32.mrb[0].mxu0
  %v812 = vpop.f32.mrb[0].mxu0
  %813 = vdwg.mxu0
  %v814 = vadd.f32 %v669, %v793
  %v815 = vadd.f32 %v672, %v796
  %v816 = vadd.f32 %v677, %v801
  %v817 = vadd.f32 %v680, %v804
  %v818 = vadd.f32 %v685, %v809
  %v819 = vld [vmem:[#allocation3 + $0x10] sm:$0xf]
  %s820 = scalar_lea.vmem %s6, 64
  %v821 = vld [vmem:[%s820] sm:$0xf]
  %v822 = vld [vmem:[%s820 + $0x4] sm:$0xf]
  %v823 = vld [vmem:[%s820 + $0x8] sm:$0xf]
  %v824 = vld [vmem:[%s820 + $0xc] sm:$0xf]
  %v825 = vld [vmem:[%s820 + $0x10] sm:$0xf]
  %v826 = vld [vmem:[%s820 + $0x14] sm:$0xf]
  %v827 = vld [vmem:[%s820 + $0x18] sm:$0xf]
  %v828 = vld [vmem:[%s820 + $0x1c] sm:$0xf]
  %v829 = vld [vmem:[%s820 + $0x20] sm:$0xf]
  %v830 = vld [vmem:[%s820 + $0x24] sm:$0xf]
  %v831 = vld [vmem:[%s820 + $0x28] sm:$0xf]
  %v832 = vld [vmem:[%s820 + $0x2c] sm:$0xf]
  %v833 = vld [vmem:[%s820 + $0x30] sm:$0xf]
  %v834 = vld [vmem:[%s820 + $0x34] sm:$0xf]
  %v835 = vld [vmem:[%s820 + $0x38] sm:$0xf]
  %v836 = vld [vmem:[%s820 + $0x3c] sm:$0xf]
  %v838 = vunpack.c.l.b16 %v819
  %v839 = vpack.c.b16 %v838, %v838
  %v841 = vshrl.u32 %v477, 16
  %v843 = vshll.u32 %v477, 16
  %v845 = vrot.slane %v843, 1
  %v846 = vor.u32 %v841, %v845
  %v848 = vshll.u32 %v478, 16
  %v850 = vrot.slane %v848, 1
  %v851 = vsel %vm703, %v846, %v850
  %v852 = vshrl.u32 %v478, 16
  %v854 = vor.u32 %v852, %v850
  %v856 = vshll.u32 %v839, 16
  %v858 = vrot.slane %v856, 1
  %v859 = vsel %vm703, %v854, %v858
  %v860 = vshrl.u32 %v839, 16
  %v862 = vor.u32 %v860, %v858
  %v882 = vunpack.c.l.b16 %v821
  %v883 = vunpack.c.l.b16 %v822
  %v884 = vunpack.c.l.b16 %v823
  %v885 = vunpack.c.l.b16 %v824
  %v886 = vunpack.c.l.b16 %v825
  %v887 = vunpack.c.l.b16 %v826
  %v888 = vunpack.c.l.b16 %v827
  %v889 = vunpack.c.l.b16 %v828
  %v890 = vunpack.c.l.b16 %v829
  %v891 = vunpack.c.l.b16 %v830
  %v892 = vunpack.c.l.b16 %v831
  %v893 = vunpack.c.l.b16 %v832
  %v894 = vunpack.c.l.b16 %v833
  %v895 = vunpack.c.l.b16 %v834
  %v896 = vunpack.c.l.b16 %v835
  %v897 = vunpack.c.l.b16 %v836
  %v898 = vpack.c.b16 %v883, %v882
  %v899 = vpack.c.b16 %v885, %v884
  %v900 = vpack.c.b16 %v887, %v886
  %v901 = vpack.c.b16 %v889, %v888
  %v902 = vpack.c.b16 %v891, %v890
  %v903 = vpack.c.b16 %v893, %v892
  %v904 = vpack.c.b16 %v895, %v894
  %v905 = vpack.c.b16 %v897, %v896
  %914 = vmatprep.subr.bf16.mxu0 0
  %915 = vmatpush1.bf16.msra.mxu0 %v898
  %916 = vmatprep.subr.bf16.mxu0 0
  %917 = vmatpush1.bf16.msra.mxu0 %v899
  %918 = vmatprep.subr.bf16.mxu0 0
  %919 = vmatpush1.bf16.msra.mxu0 %v900
  %920 = vmatprep.subr.bf16.mxu0 0
  %921 = vmatpush1.bf16.msra.mxu0 %v901
  %922 = vmatprep.subr.bf16.mxu0 0
  %923 = vmatpush1.bf16.msra.mxu0 %v902
  %924 = vmatprep.subr.bf16.mxu0 0
  %925 = vmatpush1.bf16.msra.mxu0 %v903
  %926 = vmatprep.subr.bf16.mxu0 0
  %927 = vmatpush1.bf16.msra.mxu0 %v904
  %928 = vmatprep.subr.bf16.mxu0 0
  %929 = vmatpush1.bf16.msra.mxu0 %v905
  %930 = vmatprep.subr.bf16.mxu0 0
  %931 = vmatpush1.bf16.msra.mxu0 0
  %932 = vmatprep.subr.bf16.mxu0 0
  %933 = vmatpush1.bf16.msra.mxu0 0
  %934 = vmatprep.subr.bf16.mxu0 0
  %935 = vmatpush1.bf16.msra.mxu0 0
  %936 = vmatprep.subr.bf16.mxu0 0
  %937 = vmatpush1.bf16.msra.mxu0 0
  %938 = vmatprep.subr.bf16.mxu0 0
  %939 = vmatpush1.bf16.msra.mxu0 0
  %940 = vmatprep.subr.bf16.mxu0 0
  %941 = vmatpush1.bf16.msra.mxu0 0
  %942 = vmatprep.subr.bf16.mxu0 0
  %943 = vmatpush1.bf16.msra.mxu0 0
  %944 = vmatprep.subr.bf16.mxu0 0
  %945 = vmatpush1.bf16.msra.mxu0 0
  %946 = vmatprep.mubr.bf16.mxu0 0
  %947 = vmatmul.mubr.bf16.gmra.mrb[0].mxu0 %v851
  %v948 = vpop.f32.mrb[0].mxu0
  %v949 = vadd.f32 0.0, %v948
  %v950 = vpop.f32.mrb[0].mxu0
  %v951 = vpop.f32.mrb[0].mxu0
  %v952 = vadd.f32 0.0, %v951
  %v953 = vpop.f32.mrb[0].mxu0
  %954 = vmatprep.mubr.bf16.mxu0 0
  %955 = vmatmul.mubr.bf16.gmra.mrb[0].mxu0 %v859
  %v956 = vpop.f32.mrb[0].mxu0
  %v957 = vadd.f32 0.0, %v956
  %v958 = vpop.f32.mrb[0].mxu0
  %v959 = vpop.f32.mrb[0].mxu0
  %v960 = vadd.f32 0.0, %v959
  %v961 = vpop.f32.mrb[0].mxu0
  %962 = vmatprep.mubr.bf16.mxu0 0
  %963 = vmatmul.mubr.bf16.gmra.mrb[0].mxu0 %v862
  %v964 = vpop.f32.mrb[0].mxu0
  %v965 = vadd.f32 0.0, %v964
  %v966 = vpop.f32.mrb[0].mxu0
  %v967 = vpop.f32.mrb[0].mxu0
  %v968 = vpop.f32.mrb[0].mxu0
  %969 = vdwg.mxu0
  %v970 = vadd.f32 %v814, %v949
  %v971 = vadd.f32 %v815, %v952
  %v972 = vadd.f32 %v816, %v957
  %v973 = vadd.f32 %v817, %v960
  %v974 = vadd.f32 %v818, %v965
  %v975 = vld [vmem:[#allocation2] sm:$0xe]
  %s976 = scalar_lea.vmem %s5, 64
  %v977 = vld [vmem:[%s976] sm:$0xf]
  %v978 = vld [vmem:[%s976 + $0x4] sm:$0xf]
  %v979 = vld [vmem:[%s976 + $0x8] sm:$0xf]
  %v980 = vld [vmem:[%s976 + $0xc] sm:$0xf]
  %v981 = vld [vmem:[%s976 + $0x10] sm:$0xf]
  %v982 = vld [vmem:[%s976 + $0x14] sm:$0xf]
  %v983 = vld [vmem:[%s976 + $0x18] sm:$0xf]
  %v984 = vld [vmem:[%s976 + $0x1c] sm:$0xf]
  %v986 = vunpack.c.l.b16 %v975
  %v987 = vpack.c.b16 %v593, %v986
  %vm988 = vcmask 1046528
  %v989 = vrot.slane %v987, 1
  %v990 = vrot.slane %v598, 1
  %v991 = vsel %vm988, %v989, %v990
  %v992 = vrot.slane %v702, 1
  %v993 = vsel %vm988, %v990, %v992
  %v1002 = vunpack.c.l.b16 %v977
  %v1003 = vunpack.c.l.b16 %v978
  %v1004 = vunpack.c.l.b16 %v979
  %v1005 = vunpack.c.l.b16 %v980
  %v1006 = vunpack.c.l.b16 %v981
  %v1007 = vunpack.c.l.b16 %v982
  %v1008 = vunpack.c.l.b16 %v983
  %v1009 = vunpack.c.l.b16 %v984
  %v1010 = vpack.c.b16 %v1003, %v1002
  %v1011 = vpack.c.b16 %v1005, %v1004
  %v1012 = vpack.c.b16 %v1007, %v1006
  %v1013 = vpack.c.b16 %v1009, %v1008
  %v1019 = vsel %vm624, %v991, 0
  %v1022 = vsel %vm624, %v993, 0
  %v1025 = vsel %vm624, %v992, 0
  %1027 = vmatprep.subr.bf16.mxu0 0
  %1028 = vmatpush1.bf16.msra.mxu0 %v1010
  %1029 = vmatprep.subr.bf16.mxu0 0
  %1030 = vmatpush1.bf16.msra.mxu0 %v1011
  %1031 = vmatprep.subr.bf16.mxu0 0
  %1032 = vmatpush1.bf16.msra.mxu0 %v1012
  %1033 = vmatprep.subr.bf16.mxu0 0
  %1034 = vmatpush1.bf16.msra.mxu0 %v1013
  %1035 = vmatprep.subr.bf16.mxu0 0
  %1036 = vmatpush1.bf16.msra.mxu0 0
  %1037 = vmatprep.subr.bf16.mxu0 0
  %1038 = vmatpush1.bf16.msra.mxu0 0
  %1039 = vmatprep.subr.bf16.mxu0 0
  %1040 = vmatpush1.bf16.msra.mxu0 0
  %1041 = vmatprep.subr.bf16.mxu0 0
  %1042 = vmatpush1.bf16.msra.mxu0 0
  %1043 = vmatprep.subr.bf16.mxu0 0
  %1044 = vmatpush1.bf16.msra.mxu0 0
  %1045 = vmatprep.subr.bf16.mxu0 0
  %1046 = vmatpush1.bf16.msra.mxu0 0
  %1047 = vmatprep.subr.bf16.mxu0 0
  %1048 = vmatpush1.bf16.msra.mxu0 0
  %1049 = vmatprep.subr.bf16.mxu0 0
  %1050 = vmatpush1.bf16.msra.mxu0 0
  %1051 = vmatprep.subr.bf16.mxu0 0
  %1052 = vmatpush1.bf16.msra.mxu0 0
  %1053 = vmatprep.subr.bf16.mxu0 0
  %1054 = vmatpush1.bf16.msra.mxu0 0
  %1055 = vmatprep.subr.bf16.mxu0 0
  %1056 = vmatpush1.bf16.msra.mxu0 0
  %1057 = vmatprep.subr.bf16.mxu0 0
  %1058 = vmatpush1.bf16.msra.mxu0 0
  %1059 = vmatprep.mubr.bf16.mxu0 0
  %1060 = vmatmul.mubr.bf16.gmra.mrb[0].mxu0 %v1019
  %v1061 = vpop.f32.mrb[0].mxu0
  %v1062 = vadd.f32 0.0, %v1061
  %v1063 = vpop.f32.mrb[0].mxu0
  %v1064 = vpop.f32.mrb[0].mxu0
  %v1065 = vadd.f32 0.0, %v1064
  %v1066 = vpop.f32.mrb[0].mxu0
  %1067 = vmatprep.mubr.bf16.mxu0 0
  %1068 = vmatmul.mubr.bf16.gmra.mrb[0].mxu0 %v1022
  %v1069 = vpop.f32.mrb[0].mxu0
  %v1070 = vadd.f32 0.0, %v1069
  %v1071 = vpop.f32.mrb[0].mxu0
  %v1072 = vpop.f32.mrb[0].mxu0
  %v1073 = vadd.f32 0.0, %v1072
  %v1074 = vpop.f32.mrb[0].mxu0
  %1075 = vmatprep.mubr.bf16.mxu0 0
  %1076 = vmatmul.mubr.bf16.gmra.mrb[0].mxu0 %v1025
  %v1077 = vpop.f32.mrb[0].mxu0
  %v1078 = vadd.f32 0.0, %v1077
  %v1079 = vpop.f32.mrb[0].mxu0
  %v1080 = vpop.f32.mrb[0].mxu0
  %v1081 = vpop.f32.mrb[0].mxu0
  %1082 = vdwg.mxu0
  %v1083 = vadd.f32 %v970, %v1062
  %v1084 = vadd.f32 %v971, %v1065
  %v1085 = vadd.f32 %v972, %v1070
  %v1086 = vadd.f32 %v973, %v1073
  %v1087 = vadd.f32 %v974, %v1078
  %v1088 = vld [vmem:[#allocation3] sm:$0xe]
  %s1089 = scalar_lea.vmem %s6, 128
  %v1090 = vld [vmem:[%s1089] sm:$0xf]
  %v1091 = vld [vmem:[%s1089 + $0x4] sm:$0xf]
  %v1092 = vld [vmem:[%s1089 + $0x8] sm:$0xf]
  %v1093 = vld [vmem:[%s1089 + $0xc] sm:$0xf]
  %v1094 = vld [vmem:[%s1089 + $0x10] sm:$0xf]
  %v1095 = vld [vmem:[%s1089 + $0x14] sm:$0xf]
  %v1096 = vld [vmem:[%s1089 + $0x18] sm:$0xf]
  %v1097 = vld [vmem:[%s1089 + $0x1c] sm:$0xf]
  %v1098 = vld [vmem:[%s1089 + $0x20] sm:$0xf]
  %v1099 = vld [vmem:[%s1089 + $0x24] sm:$0xf]
  %v1100 = vld [vmem:[%s1089 + $0x28] sm:$0xf]
  %v1101 = vld [vmem:[%s1089 + $0x2c] sm:$0xf]
  %v1102 = vld [vmem:[%s1089 + $0x30] sm:$0xf]
  %v1103 = vld [vmem:[%s1089 + $0x34] sm:$0xf]
  %v1104 = vld [vmem:[%s1089 + $0x38] sm:$0xf]
  %v1105 = vld [vmem:[%s1089 + $0x3c] sm:$0xf]
  %v1107 = vunpack.c.l.b16 %v1088
  %v1108 = vpack.c.b16 %v473, %v1107
  %v1109 = vrot.slane %v1108, 1
  %v1110 = vrot.slane %v478, 1
  %v1111 = vsel %vm988, %v1109, %v1110
  %v1112 = vrot.slane %v839, 1
  %v1113 = vsel %vm988, %v1110, %v1112
  %v1133 = vunpack.c.l.b16 %v1090
  %v1134 = vunpack.c.l.b16 %v1091
  %v1135 = vunpack.c.l.b16 %v1092
  %v1136 = vunpack.c.l.b16 %v1093
  %v1137 = vunpack.c.l.b16 %v1094
  %v1138 = vunpack.c.l.b16 %v1095
  %v1139 = vunpack.c.l.b16 %v1096
  %v1140 = vunpack.c.l.b16 %v1097
  %v1141 = vunpack.c.l.b16 %v1098
  %v1142 = vunpack.c.l.b16 %v1099
  %v1143 = vunpack.c.l.b16 %v1100
  %v1144 = vunpack.c.l.b16 %v1101
  %v1145 = vunpack.c.l.b16 %v1102
  %v1146 = vunpack.c.l.b16 %v1103
  %v1147 = vunpack.c.l.b16 %v1104
  %v1148 = vunpack.c.l.b16 %v1105
  %v1149 = vpack.c.b16 %v1134, %v1133
  %v1150 = vpack.c.b16 %v1136, %v1135
  %v1151 = vpack.c.b16 %v1138, %v1137
  %v1152 = vpack.c.b16 %v1140, %v1139
  %v1153 = vpack.c.b16 %v1142, %v1141
  %v1154 = vpack.c.b16 %v1144, %v1143
  %v1155 = vpack.c.b16 %v1146, %v1145
  %v1156 = vpack.c.b16 %v1148, %v1147
  %1165 = vmatprep.subr.bf16.mxu0 0
  %1166 = vmatpush1.bf16.msra.mxu0 %v1149
  %1167 = vmatprep.subr.bf16.mxu0 0
  %1168 = vmatpush1.bf16.msra.mxu0 %v1150
  %1169 = vmatprep.subr.bf16.mxu0 0
  %1170 = vmatpush1.bf16.msra.mxu0 %v1151
  %1171 = vmatprep.subr.bf16.mxu0 0
  %1172 = vmatpush1.bf16.msra.mxu0 %v1152
  %1173 = vmatprep.subr.bf16.mxu0 0
  %1174 = vmatpush1.bf16.msra.mxu0 %v1153
  %1175 = vmatprep.subr.bf16.mxu0 0
  %1176 = vmatpush1.bf16.msra.mxu0 %v1154
  %1177 = vmatprep.subr.bf16.mxu0 0
  %1178 = vmatpush1.bf16.msra.mxu0 %v1155
  %1179 = vmatprep.subr.bf16.mxu0 0
  %1180 = vmatpush1.bf16.msra.mxu0 %v1156
  %1181 = vmatprep.subr.bf16.mxu0 0
  %1182 = vmatpush1.bf16.msra.mxu0 0
  %1183 = vmatprep.subr.bf16.mxu0 0
  %1184 = vmatpush1.bf16.msra.mxu0 0
  %1185 = vmatprep.subr.bf16.mxu0 0
  %1186 = vmatpush1.bf16.msra.mxu0 0
  %1187 = vmatprep.subr.bf16.mxu0 0
  %1188 = vmatpush1.bf16.msra.mxu0 0
  %1189 = vmatprep.subr.bf16.mxu0 0
  %1190 = vmatpush1.bf16.msra.mxu0 0
  %1191 = vmatprep.subr.bf16.mxu0 0
  %1192 = vmatpush1.bf16.msra.mxu0 0
  %1193 = vmatprep.subr.bf16.mxu0 0
  %1194 = vmatpush1.bf16.msra.mxu0 0
  %1195 = vmatprep.subr.bf16.mxu0 0
  %1196 = vmatpush1.bf16.msra.mxu0 0
  %1197 = vmatprep.mubr.bf16.mxu0 0
  %1198 = vmatmul.mubr.bf16.gmra.mrb[0].mxu0 %v1111
  %v1199 = vpop.f32.mrb[0].mxu0
  %v1200 = vadd.f32 0.0, %v1199
  %v1201 = vpop.f32.mrb[0].mxu0
  %v1202 = vpop.f32.mrb[0].mxu0
  %v1203 = vadd.f32 0.0, %v1202
  %v1204 = vpop.f32.mrb[0].mxu0
  %1205 = vmatprep.mubr.bf16.mxu0 0
  %1206 = vmatmul.mubr.bf16.gmra.mrb[0].mxu0 %v1113
  %v1207 = vpop.f32.mrb[0].mxu0
  %v1208 = vadd.f32 0.0, %v1207
  %v1209 = vpop.f32.mrb[0].mxu0
  %v1210 = vpop.f32.mrb[0].mxu0
  %v1211 = vadd.f32 0.0, %v1210
  %v1212 = vpop.f32.mrb[0].mxu0
  %1213 = vmatprep.mubr.bf16.mxu0 0
  %1214 = vmatmul.mubr.bf16.gmra.mrb[0].mxu0 %v1112
  %v1215 = vpop.f32.mrb[0].mxu0
  %v1216 = vadd.f32 0.0, %v1215
  %v1217 = vpop.f32.mrb[0].mxu0
  %v1218 = vpop.f32.mrb[0].mxu0
  %v1219 = vpop.f32.mrb[0].mxu0
  %1220 = vdwg.mxu0
  %v1221 = vadd.f32 %v1083, %v1200
  %v1222 = vadd.f32 %v1084, %v1203
  %v1223 = vadd.f32 %v1085, %v1208
  %v1224 = vadd.f32 %v1086, %v1211
  %v1225 = vadd.f32 %v1087, %v1216
  %v1226 = vld [vmem:[%s7] sm:$0x1]
  %v1228 = vlaneseq
  %v1229 = vshrl.u32 %v1228, 7
  %v1230 = vsub.s32 0, %v1229
  %v1231 = vrot.slane %v1226, %v1230
  %v1233 = vadd.f32 %v1221, %v1231
  %v1234 = vadd.f32 %v1222, %v1231
  %v1235 = vadd.f32 %v1223, %v1231
  %v1236 = vadd.f32 %v1224, %v1231
  %v1237 = vadd.f32 %v1225, %v1231
  %v1238 = vpack.c.bf16 %v1234, %v1233
  %v1239 = vpack.c.bf16 %v1235, %v1235
  %v1242 = vunpack.c.l.b16 %v1238
  %v1243 = vunpack.c.h.b16 %v1238
  %v1244 = vunpack.c.l.b16 %v1239
  %v1245 = vpack.c.b16 %v1242, %v1242
  %v1246 = vpack.c.b16 %v1243, %v1243
  %v1247 = vpack.c.b16 %v1244, %v1244
  %vm1248 = vsmask.f32 3328
  %vm1249 = vsmask.f32 7440
  %vm1250 = vmor %vm1248, %vm1249
  %v1252 = vshrl.u32 %v1245, 16
  %v1254 = vrot.slane %v1252, 4
  %v1255 = vshll.u32 %v1245, 16
  %v1257 = vrot.slane %v1255, 5
  %v1258 = vor.u32 %v1254, %v1257
  %v1259 = vrot.slane %v1258, 4
  %v1261 = vshll.u32 %v1246, 16
  %v1263 = vrot.slane %v1261, 5
  %v1264 = vsel %vm1250, %v1259, %v1263
  %v1265 = vshrl.u32 %v1246, 16
  %v1267 = vrot.slane %v1265, 4
  %v1268 = vor.u32 %v1267, %v1263
  %v1269 = vrot.slane %v1268, 4
  %v1271 = vshll.u32 %v1247, 16
  %v1273 = vrot.slane %v1271, 5
  %v1274 = vsel %vm1250, %v1269, %v1273
  %1277 = vst [vmem:[%s8] sm:$0xf] %v1264
  %1278 = vst [vmem:[%s8 + $0x4] sm:$0xf] %v1274
  %vm1282 = vcmask 1046528
  %v1283 = vrot.slane %v1233, 1
  %v1284 = vrot.slane %v1234, 1
  %v1285 = vsel %vm1282, %v1283, %v1284
  %v1286 = vrot.slane %v1235, 1
  %v1287 = vsel %vm1282, %v1284, %v1286
  %v1290 = vadd.f32 %v1285, %v1287
  %v1291 = vrot.slane %v1290, 4
  %v1292 = vadd.f32 %v1290, %v1291
  %v1293 = vrot.slane %v1292, 2
  %v1294 = vadd.f32 %v1292, %v1293
  %v1295 = vrot.slane %v1294, 1
  %v1296 = vadd.f32 %v1294, %v1295
  %v1297 = vadd.f32 %v1296, 0.0
  %v1298 = vmul.f32 %v1233, %v1233
  %v1299 = vmul.f32 %v1234, %v1234
  %v1300 = vmul.f32 %v1235, %v1235
  %v1304 = vrot.slane %v1298, 1
  %v1305 = vrot.slane %v1299, 1
  %v1306 = vsel %vm1282, %v1304, %v1305
  %v1307 = vrot.slane %v1300, 1
  %v1308 = vsel %vm1282, %v1305, %v1307
  %v1311 = vadd.f32 %v1306, %v1308
  %v1312 = vrot.slane %v1311, 4
  %v1313 = vadd.f32 %v1311, %v1312
  %v1314 = vrot.slane %v1313, 2
  %v1315 = vadd.f32 %v1313, %v1314
  %v1316 = vrot.slane %v1315, 1
  %v1317 = vadd.f32 %v1315, %v1316
  %v1318 = vadd.f32 %v1317, 0.0
  %v1319 = vpack.c.bf16 %v1236, %v1235
  %v1320 = vpack.c.bf16 %v1237, %v1237
  %v1323 = vunpack.c.l.b16 %v1319
  %v1324 = vunpack.c.h.b16 %v1319
  %v1325 = vunpack.c.l.b16 %v1320
  %v1326 = vpack.c.b16 %v1323, %v1323
  %v1327 = vpack.c.b16 %v1324, %v1324
  %v1328 = vpack.c.b16 %v1325, %v1325
  %vm1329 = vsmask.f32 1280
  %vm1330 = vsmask.f32 5392
  %vm1331 = vmor %vm1329, %vm1330
  %v1333 = vshrl.u32 %v1326, 16
  %v1335 = vrot.slane %v1333, 6
  %v1336 = vshll.u32 %v1326, 16
  %v1338 = vrot.slane %v1336, 7
  %v1339 = vor.u32 %v1335, %v1338
  %v1340 = vrot.slane %v1339, 4
  %v1342 = vshrl.u32 %v1327, 16
  %v1344 = vrot.slane %v1342, 6
  %v1345 = vshll.u32 %v1327, 16
  %v1347 = vrot.slane %v1345, 7
  %v1348 = vor.u32 %v1344, %v1347
  %v1349 = vsel %vm1331, %v1340, %v1348
  %v1350 = vrot.slane %v1348, 4
  %v1352 = vshrl.u32 %v1328, 16
  %v1354 = vrot.slane %v1352, 6
  %v1355 = vshll.u32 %v1328, 16
  %v1357 = vrot.slane %v1355, 7
  %v1358 = vor.u32 %v1354, %v1357
  %v1359 = vsel %vm1331, %v1350, %v1358
  %1362 = vst [vmem:[%s8 + $0x8] sm:$0xf] %v1349
  %1363 = vst [vmem:[%s8 + $0xc] sm:$0xf] %v1359
  %vm1366 = vcmask 1042432
  %v1367 = vrot.slane %v1235, 5
  %v1368 = vrot.slane %v1236, 5
  %v1369 = vsel %vm1366, %v1367, %v1368
  %v1370 = vrot.slane %v1237, 5
  %v1371 = vsel %vm1366, %v1368, %v1370
  %v1374 = vadd.f32 %v1369, %v1371
  %v1375 = vrot.slane %v1374, 4
  %v1376 = vadd.f32 %v1374, %v1375
  %v1377 = vrot.slane %v1376, 2
  %v1378 = vadd.f32 %v1376, %v1377
  %v1379 = vrot.slane %v1378, 1
  %v1380 = vadd.f32 %v1378, %v1379
  %v1381 = vadd.f32 %v1297, %v1380
  %v1382 = vmul.f32 %v1236, %v1236
  %v1383 = vmul.f32 %v1237, %v1237
  %v1386 = vrot.slane %v1300, 5
  %v1387 = vrot.slane %v1382, 5
  %v1388 = vsel %vm1366, %v1386, %v1387
  %v1389 = vrot.slane %v1383, 5
  %v1390 = vsel %vm1366, %v1387, %v1389
  %v1393 = vadd.f32 %v1388, %v1390
  %v1394 = vrot.slane %v1393, 4
  %v1395 = vadd.f32 %v1393, %v1394
  %v1396 = vrot.slane %v1395, 2
  %v1397 = vadd.f32 %v1395, %v1396
  %v1398 = vrot.slane %v1397, 1
  %v1399 = vadd.f32 %v1397, %v1398
  %v1400 = vadd.f32 %v1318, %v1399
  %1401 = vst [vmem:[%s9] sm:$0xff] %v1381
  %1402 = vst [vmem:[%s10] sm:$0xff] %v1400
  // Predicated region
  $region34: #{upblock_forward.3} parent=0 // pred_check
    _
  $region35: #{upblock_forward.3} parent=0 // pred_check_branch
    %1404 = sbr.rel (0) target = $region37
  $region36: #{upblock_forward.3} parent=0 // pred_region
    _
  $region37: #{upblock_forward.3} parent=0 // pred_fallthru
    _
  // Predicated region
  $region38: #{upblock_forward.3} parent=0 // pred_check
    _
  $region39: #{upblock_forward.3} parent=0 // pred_check_branch
    %1406 = sbr.rel (0) target = $region41
  $region40: #{upblock_forward.3} parent=0 // pred_region
    _
  $region41: #{upblock_forward.3} parent=0 // pred_fallthru
    _
  // Predicated region
  $region42: #{upblock_forward.3} parent=0 // pred_check
    _
  $region43: #{upblock_forward.3} parent=0 // pred_check_branch
    %1408 = sbr.rel (0) target = $region45
  $region44: #{upblock_forward.3} parent=0 // pred_region
    _
  $region45: #{upblock_forward.3} parent=0 // pred_fallthru
    _
  // Predicated region
  $region46: #{upblock_forward.3} parent=0 // pred_check
    _
  $region47: #{upblock_forward.3} parent=0 // pred_check_branch
    %1410 = sbr.rel (0) target = $region49
  $region48: #{upblock_forward.3} parent=0 // pred_region
    _
  $region49: #{upblock_forward.3} parent=0 // pred_fallthru
    _
  // Predicated region
  $region50: #{upblock_forward.3} parent=0 // pred_check
    _
  $region51: #{upblock_forward.3} parent=0 // pred_check_branch
    %1412 = sbr.rel (0) target = $region53
  $region52: #{upblock_forward.3} parent=0 // pred_region
    _
  $region53: #{upblock_forward.3} parent=0 // pred_fallthru
    _
  // Predicated region
  $region54: #{upblock_forward.3} parent=0 // pred_check
    _
  $region55: #{upblock_forward.3} parent=0 // pred_check_branch
    %1414 = sbr.rel (0) target = $region57
  $region56: #{upblock_forward.3} parent=0 // pred_region
    _
  $region57: #{upblock_forward.3} parent=0 // pred_fallthru
    _

</llo_original>
